<compile_context>
chip_gen: v7x
topology: tpu7x:2x2x1
jax: 0.10.0
libtpu: 0.0.40
codegen_flags: <defaults>
</compile_context>

<pallas_src>
import functools

import jax
import jax.numpy as jnp
from jax.experimental import pallas as pl
from jax.experimental.pallas import tpu as pltpu

N_HEADS = 2          # scaled-down: D=256 -> head_size=128 (one lane-tile per head)
EPS = 1e-12
SQRT2 = 2.0 ** 0.5


# ---------------------------------------------------------------------------
# in-kernel math helpers (all f32)
# ---------------------------------------------------------------------------
def _gelu_tanh(x):
    # tanh-approximation GELU: one EUP tanh per element.  Max deviation from the
    # exact erf-GELU is ~3e-4 (at |x|~2.5); pre-activations here are ~N(0, 0.3),
    # where the approximation error is <1e-5.
    c = 0.7978845608028654  # sqrt(2/pi)
    return 0.5 * x * (1.0 + jnp.tanh(c * (x + 0.044715 * x * x * x)))


def _layernorm(x, g, b, eps):
    u = jnp.mean(x, axis=-1, keepdims=True)
    c = x - u
    var = jnp.mean(c * c, axis=-1, keepdims=True)
    return g * (c * jax.lax.rsqrt(var + eps)) + b


# ---------------------------------------------------------------------------
# Fused kernel: one grid step = (modality branch, row block)
#   ctx    = MultiheadCrossAttention(q, k, mask)
#   x_att  = LN_a(ctx + k)            (residual is the key input)
#   h      = gelu(x_att @ W1 + b1)
#   y      = h @ W2 + b2
#   x_     = LN_b(y + x_att)
#   out    = LN_c(x_ + x_att)
# ---------------------------------------------------------------------------
def _fused_branch_kernel(q_ref, k_ref, m_ref,
                         wq_ref, bq_ref, wkv_ref, bkv_ref,
                         ga_ref, ba_ref,
                         w1_ref, b1_ref, w2_ref, b2_ref,
                         gb_ref, bb_ref, gc_ref, bc_ref,
                         o_ref, ctx_ref, *, head_size, eps):
    f32, bf16 = jnp.float32, jnp.bfloat16
    Bb, S, D = q_ref.shape
    M = Bb * S

    q2 = q_ref[...].reshape(M, D)
    k2 = k_ref[...].reshape(M, D)

    # Projections: bf16 weights + bf16 activation operands, f32 MXU accumulation,
    # f32 bias add.  wkv is the fused (D, 2D) Wk|Wv slab.
    Q = jnp.dot(q2.astype(bf16), wq_ref[...], preferred_element_type=f32) + bq_ref[...]
    KV = jnp.dot(k2.astype(bf16), wkv_ref[...], preferred_element_type=f32) + bkv_ref[...]
    K = KV[:, :D]
    V = KV[:, D:]
    Q3 = Q.reshape(Bb, S, D)
    K3 = K.reshape(Bb, S, D)
    V3 = V.reshape(Bb, S, D)

    # branch 0 (image branch: q=txt, k=img) is unmasked; branch 1 applies the text
    # key mask.  Single mask DMA, blended with 1.0 on the scalar branch id.
    is_text = (pl.program_id(0) == 1).astype(f32)
    key_mask = is_text * m_ref[...] + (1.0 - is_text)           # (Bb, 1, S)

    scale = 1.0 / (head_size ** 0.5)
    for h in range(N_HEADS):                 # static loop; 128-wide lane-aligned slices
        lo = h * head_size
        Qh = Q3[:, :, lo:lo + head_size]
        Kh = K3[:, :, lo:lo + head_size]
        Vh = V3[:, :, lo:lo + head_size]
        s = jnp.einsum("bqd,bkd->bqk", Qh, Kh,
                       preferred_element_type=f32) * scale
        s = s * key_mask                     # torch: scores * mask.unsqueeze(1).unsqueeze(2)
        e = jnp.exp(s - jnp.max(s, axis=-1, keepdims=True))
        p = e / jnp.sum(e, axis=-1, keepdims=True)   # exact divide (off critical path)
        # dropout(p=0.01) on probs is identity in eval mode
        ctx_h = jnp.einsum("bqk,bkd->bqd", p, Vh, preferred_element_type=f32)
        ctx_ref[:, lo:lo + head_size] = ctx_h.reshape(M, head_size)   # write head in place

    # AddNorm 1 (residual = key input of this branch)
    x_att = _layernorm(ctx_ref[...] + k2, ga_ref[...], ba_ref[...], eps)

    # FCN + AddNorm (dropout = identity)
    hdn = jnp.dot(x_att.astype(bf16), w1_ref[...], preferred_element_type=f32) + b1_ref[...]
    hdn = _gelu_tanh(hdn)
    y = jnp.dot(hdn.astype(bf16), w2_ref[...], preferred_element_type=f32) + b2_ref[...]
    x_ = _layernorm(y + x_att, gb_ref[...], bb_ref[...], eps)

    # final AddNorm
    out = _layernorm(x_ + x_att, gc_ref[...], bc_ref[...], eps)
    o_ref[...] = out.reshape(Bb, S, D).astype(o_ref.dtype)


# ---------------------------------------------------------------------------
# parameter packing (one-time, outside the hot path): stack both branches along a
# leading axis of 2, fuse Wk|Wv into (D, 2D), and store big weights in bf16.
# ---------------------------------------------------------------------------
def pack_params(params, weight_dtype=jnp.bfloat16):
    def st(a, b, dt=jnp.float32):
        return jnp.stack([a, b], axis=0).astype(dt)

    ai, at = params["att_img"], params["att_text"]
    return dict(
        wq=st(ai["wq"], at["wq"], weight_dtype),
        bq=st(ai["bq"], at["bq"]),
        wkv=st(jnp.concatenate([ai["wk"], ai["wv"]], axis=1),
               jnp.concatenate([at["wk"], at["wv"]], axis=1), weight_dtype),
        bkv=st(jnp.concatenate([ai["bk"], ai["bv"]], axis=1),
               jnp.concatenate([at["bk"], at["bv"]], axis=1)),
        ga=st(params["norm_img"]["gamma"], params["norm_text"]["gamma"]),
        ba=st(params["norm_img"]["beta"], params["norm_text"]["beta"]),
        w1=st(params["img_enc"]["w1"], params["text_enc"]["w1"], weight_dtype),
        b1=st(params["img_enc"]["b1"], params["text_enc"]["b1"]),
        w2=st(params["img_enc"]["w2"], params["text_enc"]["w2"], weight_dtype),
        b2=st(params["img_enc"]["b2"], params["text_enc"]["b2"]),
        gb=st(params["img_enc"]["gamma"], params["text_enc"]["gamma"]),
        bb=st(params["img_enc"]["beta"], params["text_enc"]["beta"]),
        gc=st(params["norm_img_"]["gamma"], params["norm_text_"]["gamma"]),
        bc=st(params["norm_img_"]["beta"], params["norm_text_"]["beta"]),
    )


def _nbytes(shape, dtype):
    n = 1
    for d in shape:
        n *= int(d)
    return n * jnp.dtype(dtype).itemsize


# ---------------------------------------------------------------------------
# Full CrossmodalSentimentEncoder forward: ONE pallas_call, grid=(2 branches, row blocks)
# ---------------------------------------------------------------------------
def crossmodal_forward(img, txt, input_mask, packed, *,
                       batch_block=None, core_parallel=False):
    B, S, D = img.shape
    HD = D // N_HEADS
    I = packed["w1"].shape[-1]
    wdt = packed["wq"].dtype

    b_blk = B if batch_block is None else batch_block
    assert B % b_blk == 0, "batch_block must divide the batch"
    nb = B // b_blk

    # branch 0: att_img(query=txt, key=img), unmasked
    # branch 1: att_text(query=img, key=txt), key-masked
    q_stack = jnp.stack([txt, img], axis=0)                        # (2, B, S, D)
    k_stack = jnp.stack([img, txt], axis=0)                        # (2, B, S, D)
    key_mask = input_mask.reshape(B, 1, S).astype(jnp.float32)     # text mask only

    def param_spec(shape):
        n = len(shape)
        # weights/LN params: index depends only on the branch axis -> reused across
        # all row blocks of that branch (amortizes the weight stream for large B).
        return pl.BlockSpec((None,) + shape, lambda br, ib, _n=n: (br,) + (0,) * _n)

    act_spec = pl.BlockSpec((None, b_blk, S, D), lambda br, ib: (br, ib, 0, 0))
    mask_spec = pl.BlockSpec((b_blk, 1, S), lambda br, ib: (ib, 0, 0))

    # explicit VMEM budget: double-buffered io blocks + scratch + headroom
    io_bytes = (
        3 * _nbytes((b_blk, S, D), jnp.float32)          # q, k, out blocks
        + _nbytes((b_blk, 1, S), jnp.float32)            # mask
        + _nbytes((D, D), wdt) + _nbytes((D, 2 * D), wdt)
        + _nbytes((D, I), wdt) + _nbytes((I, D), wdt)
        + _nbytes((1, 2 * D), jnp.float32) + _nbytes((1, I), jnp.float32)
        + 8 * _nbytes((1, D), jnp.float32))
    scratch_bytes = _nbytes((b_blk * S, D), jnp.float32)
    vmem_limit = int(min(max(2 * io_bytes + scratch_bytes + (6 << 20), 16 << 20),
                         100 << 20))

    branch_sem = pltpu.CORE_PARALLEL if core_parallel else pltpu.PARALLEL

    out = pl.pallas_call(
        functools.partial(_fused_branch_kernel, head_size=HD, eps=EPS),
        out_shape=jax.ShapeDtypeStruct((2, B, S, D), img.dtype),
        grid=(2, nb),
        in_specs=[
            act_spec,                 # q
            act_spec,                 # k
            mask_spec,                # text key mask
            param_spec((D, D)),       # wq   (bf16)
            param_spec((1, D)),       # bq
            param_spec((D, 2 * D)),   # wkv  (bf16)
            param_spec((1, 2 * D)),   # bkv
            param_spec((1, D)),       # ln_a gamma
            param_spec((1, D)),       # ln_a beta
            param_spec((D, I)),       # w1   (bf16)
            param_spec((1, I)),       # b1
            param_spec((I, D)),       # w2   (bf16)
            param_spec((1, D)),       # b2
            param_spec((1, D)),       # ln_b gamma
            param_spec((1, D)),       # ln_b beta
            param_spec((1, D)),       # ln_c gamma
            param_spec((1, D)),       # ln_c beta
        ],
        out_specs=act_spec,
        scratch_shapes=[pltpu.VMEM((b_blk * S, D), jnp.float32)],   # per-head ctx slab
        compiler_params=pltpu.CompilerParams(
            dimension_semantics=(branch_sem, pltpu.PARALLEL),
            vmem_limit_bytes=vmem_limit),
    )(q_stack, k_stack, key_mask,
      packed["wq"], packed["bq"], packed["wkv"], packed["bkv"],
      packed["ga"], packed["ba"],
      packed["w1"], packed["b1"], packed["w2"], packed["b2"],
      packed["gb"], packed["bb"], packed["gc"], packed["bc"])

    return out[0], out[1]


# ---------------------------------------------------------------------------
# deterministic parameter init (shapes implied by the module __init__)
# ---------------------------------------------------------------------------
def init_params(key, D, I):
    keys = iter(jax.random.split(key, 32))

    def linear(din, dout):
        w = 0.02 * jax.random.normal(next(keys), (din, dout), jnp.float32)
        b = 0.02 * jax.random.normal(next(keys), (1, dout), jnp.float32)
        return w, b

    def ln(d):
        return {"gamma": jnp.ones((1, d), jnp.float32),
                "beta": jnp.zeros((1, d), jnp.float32)}

    def attn():
        wq, bq = linear(D, D)
        wk, bk = linear(D, D)
        wv, bv = linear(D, D)
        return dict(wq=wq, bq=bq, wk=wk, bk=bk, wv=wv, bv=bv)

    def ffn_block():
        w1, b1 = linear(D, I)
        w2, b2 = linear(I, D)
        l = ln(D)
        return dict(w1=w1, b1=b1, w2=w2, b2=b2, gamma=l["gamma"], beta=l["beta"])

    return dict(
        att_img=attn(), att_text=attn(),
        norm_img=ln(D), norm_text=ln(D),
        img_enc=ffn_block(), text_enc=ffn_block(),
        norm_img_=ln(D), norm_text_=ln(D),
    )


def quantize_weights(params, dtype=jnp.bfloat16):
    """Round the big matmul weights exactly as pack_params stores them (bf16->f32)."""
    def q(p, names):
        return {k: (v.astype(dtype).astype(jnp.float32) if k in names else v)
                for k, v in p.items()}
    out = dict(params)
    out["att_img"] = q(params["att_img"], {"wq", "wk", "wv"})
    out["att_text"] = q(params["att_text"], {"wq", "wk", "wv"})
    out["img_enc"] = q(params["img_enc"], {"w1", "w2"})
    out["text_enc"] = q(params["text_enc"], {"w1", "w2"})
    return out


# ---------------------------------------------------------------------------
# pure-JAX reference (exact erf GELU, exact divides, f32 math throughout)
# ---------------------------------------------------------------------------
def ref_forward(img, txt, input_mask, params):
    def lin(x, w, b):
        return x @ w + b[0]

    def attn(q_in, k_in, p, mask=None):
        B, S, D = q_in.shape
        H, HD = N_HEADS, D // N_HEADS
        Q = lin(q_in, p["wq"], p["bq"]).reshape(B, S, H, HD).transpose(0, 2, 1, 3)
        K = lin(k_in, p["wk"], p["bk"]).reshape(B, S, H, HD).transpose(0, 2, 1, 3)
        V = lin(k_in, p["wv"], p["bv"]).reshape(B, S, H, HD).transpose(0, 2, 1, 3)
        s = jnp.einsum("bhqd,bhkd->bhqk", Q, K) / (HD ** 0.5)
        if mask is not None:
            s = s * mask[:, None, None, :]
        pr = jax.nn.softmax(s, axis=-1)
        o = jnp.einsum("bhqk,bhkd->bhqd", pr, V)
        return o.transpose(0, 2, 1, 3).reshape(B, S, D)

    def ln(x, p, eps=EPS):
        u = x.mean(-1, keepdims=True)
        v = ((x - u) ** 2).mean(-1, keepdims=True)
        return p["gamma"] * ((x - u) / jnp.sqrt(v + eps)) + p["beta"]

    def gelu(x):
        return x * 0.5 * (1.0 + jax.scipy.special.erf(x / SQRT2))

    def ffn(x, p):
        h = gelu(lin(x, p["w1"], p["b1"]))
        y = lin(h, p["w2"], p["b2"])
        return ln(y + x, p)

    x1 = attn(txt, img, params["att_img"])
    x2 = attn(img, txt, params["att_text"], input_mask.astype(jnp.float32))
    x1_att = ln(x1 + img, params["norm_img"])
    x2_att = ln(x2 + txt, params["norm_text"])
    x1_ = ffn(x1_att, params["img_enc"])
    x2_ = ffn(x2_att, params["text_enc"])
    x1_out = ln(x1_ + x1_att, params["norm_img_"])
    x2_out = ln(x2_ + x2_att, params["norm_text_"])
    return x1_out, x2_out


if __name__ == "__main__":
    B, S, D, I = 2, 8, 256, 1024
    key = jax.random.PRNGKey(0)
    k_img, k_txt, k_mask, k_par = jax.random.split(key, 4)

    img = jax.random.normal(k_img, (B, S, D), jnp.float32)
    txt = jax.random.normal(k_txt, (B, S, D), jnp.float32)
    input_mask = (jax.random.uniform(k_mask, (B, S)) > 0.25).astype(jnp.float32)
    params = init_params(k_par, D, I)
    packed = pack_params(params)          # one-time packing; weights stored bf16

    x1_out, x2_out = crossmodal_forward(img, txt, input_mask, packed)
    jax.block_until_ready((x1_out, x2_out))
    assert x1_out.shape == (B, S, D) and x2_out.shape == (B, S, D)

    # Check 1 (tight): exact-f32-math reference on the SAME bf16-stored parameters.
    # Isolates kernel-implementation error (bf16 MXU operand rounding, tanh-GELU,
    # accumulation order) — measured well under 2e-3.
    qparams = quantize_weights(params, jnp.bfloat16)
    r1q, r2q = ref_forward(img, txt, input_mask, qparams)
    assert jnp.allclose(x1_out, r1q, atol=2e-3, rtol=2e-3), \
        float(jnp.max(jnp.abs(x1_out - r1q)))
    assert jnp.allclose(x2_out, r2q, atol=2e-3, rtol=2e-3), \
        float(jnp.max(jnp.abs(x2_out - r2q)))

    # Check 2 (sanity bound): original full-f32-parameter reference.  Includes the
    # deliberate bf16 weight-storage quantization; stays within 5e-3.
    r1f, r2f = ref_forward(img, txt, input_mask, params)
    assert jnp.allclose(x1_out, r1f, atol=5e-3, rtol=5e-3), \
        float(jnp.max(jnp.abs(x1_out - r1f)))
    assert jnp.allclose(x2_out, r2f, atol=5e-3, rtol=5e-3), \
        float(jnp.max(jnp.abs(x2_out - r2f)))

    print("KERNEL_OK")
</pallas_src>

<mosaic_0001>
module attributes {stable_mosaic.version = 11 : i64} {
  func.func @_fused_branch_kernel(%arg0: i32, %arg1: i32, %arg2: memref<1x2x8x256xf32, #tpu.memory_space<vmem>>, %arg3: memref<1x2x8x256xf32, #tpu.memory_space<vmem>>, %arg4: memref<2x1x8xf32, #tpu.memory_space<vmem>>, %arg5: memref<1x256x256xbf16, #tpu.memory_space<vmem>>, %arg6: memref<1x1x256xf32, #tpu.memory_space<vmem>>, %arg7: memref<1x256x512xbf16, #tpu.memory_space<vmem>>, %arg8: memref<1x1x512xf32, #tpu.memory_space<vmem>>, %arg9: memref<1x1x256xf32, #tpu.memory_space<vmem>>, %arg10: memref<1x1x256xf32, #tpu.memory_space<vmem>>, %arg11: memref<1x256x1024xbf16, #tpu.memory_space<vmem>>, %arg12: memref<1x1x1024xf32, #tpu.memory_space<vmem>>, %arg13: memref<1x1024x256xbf16, #tpu.memory_space<vmem>>, %arg14: memref<1x1x256xf32, #tpu.memory_space<vmem>>, %arg15: memref<1x1x256xf32, #tpu.memory_space<vmem>>, %arg16: memref<1x1x256xf32, #tpu.memory_space<vmem>>, %arg17: memref<1x1x256xf32, #tpu.memory_space<vmem>>, %arg18: memref<1x1x256xf32, #tpu.memory_space<vmem>>, %arg19: memref<1x2x8x256xf32, #tpu.memory_space<vmem>>, %arg20: memref<16x256xf32, #tpu.memory_space<vmem>>) attributes {dimension_semantics = [#tpu.dimension_semantics<parallel>, #tpu.dimension_semantics<parallel>], iteration_bounds = array<i64: 2, 1>, scalar_prefetch = 0 : i64, scratch_operands = 1 : i64, tpu.core_type = #tpu.core_type<tc>, window_params = [{transform_indices = @transform_0, window_bounds = array<i64: 1, 2, 8, 256>}, {transform_indices = @transform_1, window_bounds = array<i64: 1, 2, 8, 256>}, {transform_indices = @transform_2, window_bounds = array<i64: 2, 1, 8>}, {transform_indices = @transform_3, window_bounds = array<i64: 1, 256, 256>}, {transform_indices = @transform_4, window_bounds = array<i64: 1, 1, 256>}, {transform_indices = @transform_5, window_bounds = array<i64: 1, 256, 512>}, {transform_indices = @transform_6, window_bounds = array<i64: 1, 1, 512>}, {transform_indices = @transform_7, window_bounds = array<i64: 1, 1, 256>}, {transform_indices = @transform_8, window_bounds = array<i64: 1, 1, 256>}, {transform_indices = @transform_9, window_bounds = array<i64: 1, 256, 1024>}, {transform_indices = @transform_10, window_bounds = array<i64: 1, 1, 1024>}, {transform_indices = @transform_11, window_bounds = array<i64: 1, 1024, 256>}, {transform_indices = @transform_12, window_bounds = array<i64: 1, 1, 256>}, {transform_indices = @transform_13, window_bounds = array<i64: 1, 1, 256>}, {transform_indices = @transform_14, window_bounds = array<i64: 1, 1, 256>}, {transform_indices = @transform_15, window_bounds = array<i64: 1, 1, 256>}, {transform_indices = @transform_16, window_bounds = array<i64: 1, 1, 256>}, {transform_indices = @transform_17, window_bounds = array<i64: 1, 2, 8, 256>}]} {
    %c0 = arith.constant 0 : index
    %c0_0 = arith.constant 0 : index
    %c0_1 = arith.constant 0 : index
    %c0_2 = arith.constant 0 : index
    %0 = vector.load %arg2[%c0, %c0_0, %c0_1, %c0_2] : memref<1x2x8x256xf32, #tpu.memory_space<vmem>>, vector<1x2x8x256xf32>
    %1 = vector.shape_cast %0 : vector<1x2x8x256xf32> to vector<2x8x256xf32>
    %2 = vector.shape_cast %1 : vector<2x8x256xf32> to vector<16x256xf32>
    %c0_3 = arith.constant 0 : index
    %c0_4 = arith.constant 0 : index
    %c0_5 = arith.constant 0 : index
    %c0_6 = arith.constant 0 : index
    %3 = vector.load %arg3[%c0_3, %c0_4, %c0_5, %c0_6] : memref<1x2x8x256xf32, #tpu.memory_space<vmem>>, vector<1x2x8x256xf32>
    %4 = vector.shape_cast %3 : vector<1x2x8x256xf32> to vector<2x8x256xf32>
    %5 = vector.shape_cast %4 : vector<2x8x256xf32> to vector<16x256xf32>
    %6 = arith.truncf %2 : vector<16x256xf32> to vector<16x256xbf16>
    %c0_7 = arith.constant 0 : index
    %c0_8 = arith.constant 0 : index
    %c0_9 = arith.constant 0 : index
    %7 = vector.load %arg5[%c0_7, %c0_8, %c0_9] : memref<1x256x256xbf16, #tpu.memory_space<vmem>>, vector<1x256x256xbf16>
    %8 = vector.shape_cast %7 : vector<1x256x256xbf16> to vector<256x256xbf16>
    %cst = arith.constant dense<0.000000e+00> : vector<16x256xf32>
    %9 = tpu.matmul %6, %8, %cst {dimension_numbers = #tpu.dot_dimension_numbers<[1], [0], [0], [1], [0, 0, 1, 1], [], []>} : vector<16x256xbf16>, vector<256x256xbf16>, vector<16x256xf32> -> vector<16x256xf32>
    %c0_10 = arith.constant 0 : index
    %c0_11 = arith.constant 0 : index
    %c0_12 = arith.constant 0 : index
    %10 = vector.load %arg6[%c0_10, %c0_11, %c0_12] : memref<1x1x256xf32, #tpu.memory_space<vmem>>, vector<1x1x256xf32>
    %11 = vector.shape_cast %10 : vector<1x1x256xf32> to vector<1x256xf32>
    %12 = vector.broadcast %11 : vector<1x256xf32> to vector<16x256xf32>
    %13 = arith.addf %9, %12 : vector<16x256xf32>
    %14 = arith.truncf %5 : vector<16x256xf32> to vector<16x256xbf16>
    %c0_13 = arith.constant 0 : index
    %c0_14 = arith.constant 0 : index
    %c0_15 = arith.constant 0 : index
    %15 = vector.load %arg7[%c0_13, %c0_14, %c0_15] : memref<1x256x512xbf16, #tpu.memory_space<vmem>>, vector<1x256x512xbf16>
    %16 = vector.shape_cast %15 : vector<1x256x512xbf16> to vector<256x512xbf16>
    %cst_16 = arith.constant dense<0.000000e+00> : vector<16x512xf32>
    %17 = tpu.matmul %14, %16, %cst_16 {dimension_numbers = #tpu.dot_dimension_numbers<[1], [0], [0], [1], [0, 0, 1, 1], [], []>} : vector<16x256xbf16>, vector<256x512xbf16>, vector<16x512xf32> -> vector<16x512xf32>
    %c0_17 = arith.constant 0 : index
    %c0_18 = arith.constant 0 : index
    %c0_19 = arith.constant 0 : index
    %18 = vector.load %arg8[%c0_17, %c0_18, %c0_19] : memref<1x1x512xf32, #tpu.memory_space<vmem>>, vector<1x1x512xf32>
    %19 = vector.shape_cast %18 : vector<1x1x512xf32> to vector<1x512xf32>
    %20 = vector.broadcast %19 : vector<1x512xf32> to vector<16x512xf32>
    %21 = arith.addf %17, %20 : vector<16x512xf32>
    %22 = vector.extract_strided_slice %21 {offsets = [0, 0], sizes = [16, 256], strides = [1, 1]} : vector<16x512xf32> to vector<16x256xf32>
    %23 = vector.extract_strided_slice %21 {offsets = [0, 256], sizes = [16, 256], strides = [1, 1]} : vector<16x512xf32> to vector<16x256xf32>
    %24 = vector.shape_cast %13 : vector<16x256xf32> to vector<2x8x256xf32>
    %25 = vector.shape_cast %22 : vector<16x256xf32> to vector<2x8x256xf32>
    %26 = vector.shape_cast %23 : vector<16x256xf32> to vector<2x8x256xf32>
    %c1_i32 = arith.constant 1 : i32
    %27 = arith.cmpi eq, %arg0, %c1_i32 : i32
    %28 = arith.extui %27 : i1 to i32
    %29 = arith.sitofp %28 : i32 to f32
    %c0_20 = arith.constant 0 : index
    %c0_21 = arith.constant 0 : index
    %c0_22 = arith.constant 0 : index
    %30 = vector.load %arg4[%c0_20, %c0_21, %c0_22] : memref<2x1x8xf32, #tpu.memory_space<vmem>>, vector<2x1x8xf32>
    %31 = vector.broadcast %29 : f32 to vector<2x1x8xf32>
    %32 = arith.mulf %31, %30 : vector<2x1x8xf32>
    %cst_23 = arith.constant 1.000000e+00 : f32
    %33 = arith.subf %cst_23, %29 : f32
    %34 = vector.broadcast %33 : f32 to vector<2x1x8xf32>
    %35 = arith.addf %32, %34 : vector<2x1x8xf32>
    %36 = vector.extract_strided_slice %24 {offsets = [0, 0, 0], sizes = [2, 8, 128], strides = [1, 1, 1]} : vector<2x8x256xf32> to vector<2x8x128xf32>
    %37 = vector.extract_strided_slice %25 {offsets = [0, 0, 0], sizes = [2, 8, 128], strides = [1, 1, 1]} : vector<2x8x256xf32> to vector<2x8x128xf32>
    %38 = vector.extract_strided_slice %26 {offsets = [0, 0, 0], sizes = [2, 8, 128], strides = [1, 1, 1]} : vector<2x8x256xf32> to vector<2x8x128xf32>
    "tpu.trace_start"() <{level = 10 : i32, message = "bqd,bkd->bqk"}> : () -> ()
    %cst_24 = arith.constant dense<0.000000e+00> : vector<2x8x8xf32>
    %39 = tpu.matmul %36, %37, %cst_24 {dimension_numbers = #tpu.dot_dimension_numbers<[2], [2], [1], [1], [0, 0, 0, 1, 1, 1], [0], [0]>} : vector<2x8x128xf32>, vector<2x8x128xf32>, vector<2x8x8xf32> -> vector<2x8x8xf32>
    "tpu.trace_stop"() : () -> ()
    %cst_25 = arith.constant 0.0883883461 : f32
    %40 = vector.broadcast %cst_25 : f32 to vector<2x8x8xf32>
    %41 = arith.mulf %39, %40 : vector<2x8x8xf32>
    %42 = vector.broadcast %35 : vector<2x1x8xf32> to vector<2x8x8xf32>
    %43 = arith.mulf %41, %42 : vector<2x8x8xf32>
    %cst_26 = arith.constant dense<0xFF800000> : vector<2x8xf32>
    %44 = vector.multi_reduction <maximumf>, %43, %cst_26 [2] : vector<2x8x8xf32> to vector<2x8xf32>
    %45 = vector.shape_cast %44 : vector<2x8xf32> to vector<2x8x1xf32>
    %46 = vector.broadcast %45 : vector<2x8x1xf32> to vector<2x8x8xf32>
    %47 = arith.subf %43, %46 : vector<2x8x8xf32>
    %48 = math.exp %47 : vector<2x8x8xf32>
    %cst_27 = arith.constant dense<0.000000e+00> : vector<2x8xf32>
    %49 = vector.multi_reduction <add>, %48, %cst_27 [2] : vector<2x8x8xf32> to vector<2x8xf32>
    %50 = vector.shape_cast %49 : vector<2x8xf32> to vector<2x8x1xf32>
    %51 = vector.broadcast %50 : vector<2x8x1xf32> to vector<2x8x8xf32>
    %52 = arith.divf %48, %51 : vector<2x8x8xf32>
    "tpu.trace_start"() <{level = 10 : i32, message = "bqk,bkd->bqd"}> : () -> ()
    %cst_28 = arith.constant dense<0.000000e+00> : vector<2x8x128xf32>
    %53 = tpu.matmul %52, %38, %cst_28 {dimension_numbers = #tpu.dot_dimension_numbers<[2], [1], [1], [2], [0, 0, 0, 1, 1, 2], [0], [0]>} : vector<2x8x8xf32>, vector<2x8x128xf32>, vector<2x8x128xf32> -> vector<2x8x128xf32>
    "tpu.trace_stop"() : () -> ()
    %54 = vector.shape_cast %53 : vector<2x8x128xf32> to vector<16x128xf32>
    %c0_29 = arith.constant 0 : index
    %c0_30 = arith.constant 0 : index
    %55 = vector.load %arg20[%c0_29, %c0_30] : memref<16x256xf32, #tpu.memory_space<vmem>>, vector<16x128xf32>
    tpu.vector_store %arg20[%c0_29, %c0_30], %54 {strides = array<i32>} : memref<16x256xf32, #tpu.memory_space<vmem>>, vector<16x128xf32>,
    %56 = vector.extract_strided_slice %24 {offsets = [0, 0, 128], sizes = [2, 8, 128], strides = [1, 1, 1]} : vector<2x8x256xf32> to vector<2x8x128xf32>
    %57 = vector.extract_strided_slice %25 {offsets = [0, 0, 128], sizes = [2, 8, 128], strides = [1, 1, 1]} : vector<2x8x256xf32> to vector<2x8x128xf32>
    %58 = vector.extract_strided_slice %26 {offsets = [0, 0, 128], sizes = [2, 8, 128], strides = [1, 1, 1]} : vector<2x8x256xf32> to vector<2x8x128xf32>
    "tpu.trace_start"() <{level = 10 : i32, message = "bqd,bkd->bqk"}> : () -> ()
    %cst_31 = arith.constant dense<0.000000e+00> : vector<2x8x8xf32>
    %59 = tpu.matmul %56, %57, %cst_31 {dimension_numbers = #tpu.dot_dimension_numbers<[2], [2], [1], [1], [0, 0, 0, 1, 1, 1], [0], [0]>} : vector<2x8x128xf32>, vector<2x8x128xf32>, vector<2x8x8xf32> -> vector<2x8x8xf32>
    "tpu.trace_stop"() : () -> ()
    %cst_32 = arith.constant 0.0883883461 : f32
    %60 = vector.broadcast %cst_32 : f32 to vector<2x8x8xf32>
    %61 = arith.mulf %59, %60 : vector<2x8x8xf32>
    %62 = vector.broadcast %35 : vector<2x1x8xf32> to vector<2x8x8xf32>
    %63 = arith.mulf %61, %62 : vector<2x8x8xf32>
    %cst_33 = arith.constant dense<0xFF800000> : vector<2x8xf32>
    %64 = vector.multi_reduction <maximumf>, %63, %cst_33 [2] : vector<2x8x8xf32> to vector<2x8xf32>
    %65 = vector.shape_cast %64 : vector<2x8xf32> to vector<2x8x1xf32>
    %66 = vector.broadcast %65 : vector<2x8x1xf32> to vector<2x8x8xf32>
    %67 = arith.subf %63, %66 : vector<2x8x8xf32>
    %68 = math.exp %67 : vector<2x8x8xf32>
    %cst_34 = arith.constant dense<0.000000e+00> : vector<2x8xf32>
    %69 = vector.multi_reduction <add>, %68, %cst_34 [2] : vector<2x8x8xf32> to vector<2x8xf32>
    %70 = vector.shape_cast %69 : vector<2x8xf32> to vector<2x8x1xf32>
    %71 = vector.broadcast %70 : vector<2x8x1xf32> to vector<2x8x8xf32>
    %72 = arith.divf %68, %71 : vector<2x8x8xf32>
    "tpu.trace_start"() <{level = 10 : i32, message = "bqk,bkd->bqd"}> : () -> ()
    %cst_35 = arith.constant dense<0.000000e+00> : vector<2x8x128xf32>
    %73 = tpu.matmul %72, %58, %cst_35 {dimension_numbers = #tpu.dot_dimension_numbers<[2], [1], [1], [2], [0, 0, 0, 1, 1, 2], [0], [0]>} : vector<2x8x8xf32>, vector<2x8x128xf32>, vector<2x8x128xf32> -> vector<2x8x128xf32>
    "tpu.trace_stop"() : () -> ()
    %74 = vector.shape_cast %73 : vector<2x8x128xf32> to vector<16x128xf32>
    %c0_36 = arith.constant 0 : index
    %c128 = arith.constant 128 : index
    %75 = vector.load %arg20[%c0_36, %c128] : memref<16x256xf32, #tpu.memory_space<vmem>>, vector<16x128xf32>
    tpu.vector_store %arg20[%c0_36, %c128], %74 {strides = array<i32>} : memref<16x256xf32, #tpu.memory_space<vmem>>, vector<16x128xf32>,
    %c0_37 = arith.constant 0 : index
    %c0_38 = arith.constant 0 : index
    %76 = vector.load %arg20[%c0_37, %c0_38] : memref<16x256xf32, #tpu.memory_space<vmem>>, vector<16x256xf32>
    %77 = arith.addf %76, %5 : vector<16x256xf32>
    %c0_39 = arith.constant 0 : index
    %c0_40 = arith.constant 0 : index
    %c0_41 = arith.constant 0 : index
    %78 = vector.load %arg9[%c0_39, %c0_40, %c0_41] : memref<1x1x256xf32, #tpu.memory_space<vmem>>, vector<1x1x256xf32>
    %79 = vector.shape_cast %78 : vector<1x1x256xf32> to vector<1x256xf32>
    %c0_42 = arith.constant 0 : index
    %c0_43 = arith.constant 0 : index
    %c0_44 = arith.constant 0 : index
    %80 = vector.load %arg10[%c0_42, %c0_43, %c0_44] : memref<1x1x256xf32, #tpu.memory_space<vmem>>, vector<1x1x256xf32>
    %81 = vector.shape_cast %80 : vector<1x1x256xf32> to vector<1x256xf32>
    %cst_45 = arith.constant dense<0.000000e+00> : vector<16xf32>
    %82 = vector.multi_reduction <add>, %77, %cst_45 [1] : vector<16x256xf32> to vector<16xf32>
    %83 = vector.shape_cast %82 : vector<16xf32> to vector<16x1xf32>
    %cst_46 = arith.constant 2.560000e+02 : f32
    %84 = vector.broadcast %cst_46 : f32 to vector<16x1xf32>
    %85 = arith.divf %83, %84 : vector<16x1xf32>
    %86 = vector.broadcast %85 : vector<16x1xf32> to vector<16x256xf32>
    %87 = arith.subf %77, %86 : vector<16x256xf32>
    %88 = arith.mulf %87, %87 : vector<16x256xf32>
    %cst_47 = arith.constant dense<0.000000e+00> : vector<16xf32>
    %89 = vector.multi_reduction <add>, %88, %cst_47 [1] : vector<16x256xf32> to vector<16xf32>
    %90 = vector.shape_cast %89 : vector<16xf32> to vector<16x1xf32>
    %cst_48 = arith.constant 2.560000e+02 : f32
    %91 = vector.broadcast %cst_48 : f32 to vector<16x1xf32>
    %92 = arith.divf %90, %91 : vector<16x1xf32>
    %cst_49 = arith.constant 9.99999996E-13 : f32
    %93 = vector.broadcast %cst_49 : f32 to vector<16x1xf32>
    %94 = arith.addf %92, %93 : vector<16x1xf32>
    %95 = math.rsqrt %94 : vector<16x1xf32>
    %96 = vector.broadcast %95 : vector<16x1xf32> to vector<16x256xf32>
    %97 = arith.mulf %87, %96 : vector<16x256xf32>
    %98 = vector.broadcast %79 : vector<1x256xf32> to vector<16x256xf32>
    %99 = arith.mulf %98, %97 : vector<16x256xf32>
    %100 = vector.broadcast %81 : vector<1x256xf32> to vector<16x256xf32>
    %101 = arith.addf %99, %100 : vector<16x256xf32>
    %102 = arith.truncf %101 : vector<16x256xf32> to vector<16x256xbf16>
    %c0_50 = arith.constant 0 : index
    %c0_51 = arith.constant 0 : index
    %c0_52 = arith.constant 0 : index
    %103 = vector.load %arg11[%c0_50, %c0_51, %c0_52] : memref<1x256x1024xbf16, #tpu.memory_space<vmem>>, vector<1x256x1024xbf16>
    %104 = vector.shape_cast %103 : vector<1x256x1024xbf16> to vector<256x1024xbf16>
    %cst_53 = arith.constant dense<0.000000e+00> : vector<16x1024xf32>
    %105 = tpu.matmul %102, %104, %cst_53 {dimension_numbers = #tpu.dot_dimension_numbers<[1], [0], [0], [1], [0, 0, 1, 1], [], []>} : vector<16x256xbf16>, vector<256x1024xbf16>, vector<16x1024xf32> -> vector<16x1024xf32>
    %c0_54 = arith.constant 0 : index
    %c0_55 = arith.constant 0 : index
    %c0_56 = arith.constant 0 : index
    %106 = vector.load %arg12[%c0_54, %c0_55, %c0_56] : memref<1x1x1024xf32, #tpu.memory_space<vmem>>, vector<1x1x1024xf32>
    %107 = vector.shape_cast %106 : vector<1x1x1024xf32> to vector<1x1024xf32>
    %108 = vector.broadcast %107 : vector<1x1024xf32> to vector<16x1024xf32>
    %109 = arith.addf %105, %108 : vector<16x1024xf32>
    %cst_57 = arith.constant 5.000000e-01 : f32
    %110 = vector.broadcast %cst_57 : f32 to vector<16x1024xf32>
    %111 = arith.mulf %110, %109 : vector<16x1024xf32>
    %cst_58 = arith.constant 4.471500e-02 : f32
    %112 = vector.broadcast %cst_58 : f32 to vector<16x1024xf32>
    %113 = arith.mulf %112, %109 : vector<16x1024xf32>
    %114 = arith.mulf %113, %109 : vector<16x1024xf32>
    %115 = arith.mulf %114, %109 : vector<16x1024xf32>
    %116 = arith.addf %109, %115 : vector<16x1024xf32>
    %cst_59 = arith.constant 0.797884583 : f32
    %117 = vector.broadcast %cst_59 : f32 to vector<16x1024xf32>
    %118 = arith.mulf %117, %116 : vector<16x1024xf32>
    %119 = math.tanh %118 : vector<16x1024xf32>
    %cst_60 = arith.constant 1.000000e+00 : f32
    %120 = vector.broadcast %cst_60 : f32 to vector<16x1024xf32>
    %121 = arith.addf %120, %119 : vector<16x1024xf32>
    %122 = arith.mulf %111, %121 : vector<16x1024xf32>
    %123 = arith.truncf %122 : vector<16x1024xf32> to vector<16x1024xbf16>
    %c0_61 = arith.constant 0 : index
    %c0_62 = arith.constant 0 : index
    %c0_63 = arith.constant 0 : index
    %124 = vector.load %arg13[%c0_61, %c0_62, %c0_63] : memref<1x1024x256xbf16, #tpu.memory_space<vmem>>, vector<1x1024x256xbf16>
    %125 = vector.shape_cast %124 : vector<1x1024x256xbf16> to vector<1024x256xbf16>
    %cst_64 = arith.constant dense<0.000000e+00> : vector<16x256xf32>
    %126 = tpu.matmul %123, %125, %cst_64 {dimension_numbers = #tpu.dot_dimension_numbers<[1], [0], [0], [1], [0, 0, 1, 1], [], []>} : vector<16x1024xbf16>, vector<1024x256xbf16>, vector<16x256xf32> -> vector<16x256xf32>
    %c0_65 = arith.constant 0 : index
    %c0_66 = arith.constant 0 : index
    %c0_67 = arith.constant 0 : index
    %127 = vector.load %arg14[%c0_65, %c0_66, %c0_67] : memref<1x1x256xf32, #tpu.memory_space<vmem>>, vector<1x1x256xf32>
    %128 = vector.shape_cast %127 : vector<1x1x256xf32> to vector<1x256xf32>
    %129 = vector.broadcast %128 : vector<1x256xf32> to vector<16x256xf32>
    %130 = arith.addf %126, %129 : vector<16x256xf32>
    %131 = arith.addf %130, %101 : vector<16x256xf32>
    %c0_68 = arith.constant 0 : index
    %c0_69 = arith.constant 0 : index
    %c0_70 = arith.constant 0 : index
    %132 = vector.load %arg15[%c0_68, %c0_69, %c0_70] : memref<1x1x256xf32, #tpu.memory_space<vmem>>, vector<1x1x256xf32>
    %133 = vector.shape_cast %132 : vector<1x1x256xf32> to vector<1x256xf32>
    %c0_71 = arith.constant 0 : index
    %c0_72 = arith.constant 0 : index
    %c0_73 = arith.constant 0 : index
    %134 = vector.load %arg16[%c0_71, %c0_72, %c0_73] : memref<1x1x256xf32, #tpu.memory_space<vmem>>, vector<1x1x256xf32>
    %135 = vector.shape_cast %134 : vector<1x1x256xf32> to vector<1x256xf32>
    %cst_74 = arith.constant dense<0.000000e+00> : vector<16xf32>
    %136 = vector.multi_reduction <add>, %131, %cst_74 [1] : vector<16x256xf32> to vector<16xf32>
    %137 = vector.shape_cast %136 : vector<16xf32> to vector<16x1xf32>
    %cst_75 = arith.constant 2.560000e+02 : f32
    %138 = vector.broadcast %cst_75 : f32 to vector<16x1xf32>
    %139 = arith.divf %137, %138 : vector<16x1xf32>
    %140 = vector.broadcast %139 : vector<16x1xf32> to vector<16x256xf32>
    %141 = arith.subf %131, %140 : vector<16x256xf32>
    %142 = arith.mulf %141, %141 : vector<16x256xf32>
    %cst_76 = arith.constant dense<0.000000e+00> : vector<16xf32>
    %143 = vector.multi_reduction <add>, %142, %cst_76 [1] : vector<16x256xf32> to vector<16xf32>
    %144 = vector.shape_cast %143 : vector<16xf32> to vector<16x1xf32>
    %cst_77 = arith.constant 2.560000e+02 : f32
    %145 = vector.broadcast %cst_77 : f32 to vector<16x1xf32>
    %146 = arith.divf %144, %145 : vector<16x1xf32>
    %cst_78 = arith.constant 9.99999996E-13 : f32
    %147 = vector.broadcast %cst_78 : f32 to vector<16x1xf32>
    %148 = arith.addf %146, %147 : vector<16x1xf32>
    %149 = math.rsqrt %148 : vector<16x1xf32>
    %150 = vector.broadcast %149 : vector<16x1xf32> to vector<16x256xf32>
    %151 = arith.mulf %141, %150 : vector<16x256xf32>
    %152 = vector.broadcast %133 : vector<1x256xf32> to vector<16x256xf32>
    %153 = arith.mulf %152, %151 : vector<16x256xf32>
    %154 = vector.broadcast %135 : vector<1x256xf32> to vector<16x256xf32>
    %155 = arith.addf %153, %154 : vector<16x256xf32>
    %156 = arith.addf %155, %101 : vector<16x256xf32>
    %c0_79 = arith.constant 0 : index
    %c0_80 = arith.constant 0 : index
    %c0_81 = arith.constant 0 : index
    %157 = vector.load %arg17[%c0_79, %c0_80, %c0_81] : memref<1x1x256xf32, #tpu.memory_space<vmem>>, vector<1x1x256xf32>
    %158 = vector.shape_cast %157 : vector<1x1x256xf32> to vector<1x256xf32>
    %c0_82 = arith.constant 0 : index
    %c0_83 = arith.constant 0 : index
    %c0_84 = arith.constant 0 : index
    %159 = vector.load %arg18[%c0_82, %c0_83, %c0_84] : memref<1x1x256xf32, #tpu.memory_space<vmem>>, vector<1x1x256xf32>
    %160 = vector.shape_cast %159 : vector<1x1x256xf32> to vector<1x256xf32>
    %cst_85 = arith.constant dense<0.000000e+00> : vector<16xf32>
    %161 = vector.multi_reduction <add>, %156, %cst_85 [1] : vector<16x256xf32> to vector<16xf32>
    %162 = vector.shape_cast %161 : vector<16xf32> to vector<16x1xf32>
    %cst_86 = arith.constant 2.560000e+02 : f32
    %163 = vector.broadcast %cst_86 : f32 to vector<16x1xf32>
    %164 = arith.divf %162, %163 : vector<16x1xf32>
    %165 = vector.broadcast %164 : vector<16x1xf32> to vector<16x256xf32>
    %166 = arith.subf %156, %165 : vector<16x256xf32>
    %167 = arith.mulf %166, %166 : vector<16x256xf32>
    %cst_87 = arith.constant dense<0.000000e+00> : vector<16xf32>
    %168 = vector.multi_reduction <add>, %167, %cst_87 [1] : vector<16x256xf32> to vector<16xf32>
    %169 = vector.shape_cast %168 : vector<16xf32> to vector<16x1xf32>
    %cst_88 = arith.constant 2.560000e+02 : f32
    %170 = vector.broadcast %cst_88 : f32 to vector<16x1xf32>
    %171 = arith.divf %169, %170 : vector<16x1xf32>
    %cst_89 = arith.constant 9.99999996E-13 : f32
    %172 = vector.broadcast %cst_89 : f32 to vector<16x1xf32>
    %173 = arith.addf %171, %172 : vector<16x1xf32>
    %174 = math.rsqrt %173 : vector<16x1xf32>
    %175 = vector.broadcast %174 : vector<16x1xf32> to vector<16x256xf32>
    %176 = arith.mulf %166, %175 : vector<16x256xf32>
    %177 = vector.broadcast %158 : vector<1x256xf32> to vector<16x256xf32>
    %178 = arith.mulf %177, %176 : vector<16x256xf32>
    %179 = vector.broadcast %160 : vector<1x256xf32> to vector<16x256xf32>
    %180 = arith.addf %178, %179 : vector<16x256xf32>
    %181 = vector.shape_cast %180 : vector<16x256xf32> to vector<2x8x256xf32>
    %c0_90 = arith.constant 0 : index
    %c0_91 = arith.constant 0 : index
    %c0_92 = arith.constant 0 : index
    %c0_93 = arith.constant 0 : index
    %182 = vector.load %arg19[%c0_90, %c0_91, %c0_92, %c0_93] : memref<1x2x8x256xf32, #tpu.memory_space<vmem>>, vector<1x2x8x256xf32>
    %183 = vector.shape_cast %182 : vector<1x2x8x256xf32> to vector<2x8x256xf32>
    %184 = vector.shape_cast %181 : vector<2x8x256xf32> to vector<1x2x8x256xf32>
    tpu.vector_store %arg19[%c0_90, %c0_91, %c0_92, %c0_93], %184 {strides = array<i32>} : memref<1x2x8x256xf32, #tpu.memory_space<vmem>>, vector<1x2x8x256xf32>,
    return
  }
  func.func @transform_0(%arg0: i32, %arg1: i32) -> (i32, i32, i32, i32) {
    %c0_i32 = arith.constant 0 : i32
    %c0_i32_0 = arith.constant 0 : i32
    %c0_i32_1 = arith.constant 0 : i32
    return %arg0, %arg1, %c0_i32, %c0_i32_0 : i32, i32, i32, i32
  }
  func.func @transform_1(%arg0: i32, %arg1: i32) -> (i32, i32, i32, i32) {
    %c0_i32 = arith.constant 0 : i32
    %c0_i32_0 = arith.constant 0 : i32
    %c0_i32_1 = arith.constant 0 : i32
    return %arg0, %arg1, %c0_i32, %c0_i32_0 : i32, i32, i32, i32
  }
  func.func @transform_2(%arg0: i32, %arg1: i32) -> (i32, i32, i32) {
    %c0_i32 = arith.constant 0 : i32
    %c0_i32_0 = arith.constant 0 : i32
    %c0_i32_1 = arith.constant 0 : i32
    return %arg1, %c0_i32, %c0_i32_0 : i32, i32, i32
  }
  func.func @transform_3(%arg0: i32, %arg1: i32) -> (i32, i32, i32) {
    %c0_i32 = arith.constant 0 : i32
    %c0_i32_0 = arith.constant 0 : i32
    %c0_i32_1 = arith.constant 0 : i32
    return %arg0, %c0_i32, %c0_i32_0 : i32, i32, i32
  }
  func.func @transform_4(%arg0: i32, %arg1: i32) -> (i32, i32, i32) {
    %c0_i32 = arith.constant 0 : i32
    %c0_i32_0 = arith.constant 0 : i32
    %c0_i32_1 = arith.constant 0 : i32
    return %arg0, %c0_i32, %c0_i32_0 : i32, i32, i32
  }
  func.func @transform_5(%arg0: i32, %arg1: i32) -> (i32, i32, i32) {
    %c0_i32 = arith.constant 0 : i32
    %c0_i32_0 = arith.constant 0 : i32
    %c0_i32_1 = arith.constant 0 : i32
    return %arg0, %c0_i32, %c0_i32_0 : i32, i32, i32
  }
  func.func @transform_6(%arg0: i32, %arg1: i32) -> (i32, i32, i32) {
    %c0_i32 = arith.constant 0 : i32
    %c0_i32_0 = arith.constant 0 : i32
    %c0_i32_1 = arith.constant 0 : i32
    return %arg0, %c0_i32, %c0_i32_0 : i32, i32, i32
  }
  func.func @transform_7(%arg0: i32, %arg1: i32) -> (i32, i32, i32) {
    %c0_i32 = arith.constant 0 : i32
    %c0_i32_0 = arith.constant 0 : i32
    %c0_i32_1 = arith.constant 0 : i32
    return %arg0, %c0_i32, %c0_i32_0 : i32, i32, i32
  }
  func.func @transform_8(%arg0: i32, %arg1: i32) -> (i32, i32, i32) {
    %c0_i32 = arith.constant 0 : i32
    %c0_i32_0 = arith.constant 0 : i32
    %c0_i32_1 = arith.constant 0 : i32
    return %arg0, %c0_i32, %c0_i32_0 : i32, i32, i32
  }
  func.func @transform_9(%arg0: i32, %arg1: i32) -> (i32, i32, i32) {
    %c0_i32 = arith.constant 0 : i32
    %c0_i32_0 = arith.constant 0 : i32
    %c0_i32_1 = arith.constant 0 : i32
    return %arg0, %c0_i32, %c0_i32_0 : i32, i32, i32
  }
  func.func @transform_10(%arg0: i32, %arg1: i32) -> (i32, i32, i32) {
    %c0_i32 = arith.constant 0 : i32
    %c0_i32_0 = arith.constant 0 : i32
    %c0_i32_1 = arith.constant 0 : i32
    return %arg0, %c0_i32, %c0_i32_0 : i32, i32, i32
  }
  func.func @transform_11(%arg0: i32, %arg1: i32) -> (i32, i32, i32) {
    %c0_i32 = arith.constant 0 : i32
    %c0_i32_0 = arith.constant 0 : i32
    %c0_i32_1 = arith.constant 0 : i32
    return %arg0, %c0_i32, %c0_i32_0 : i32, i32, i32
  }
  func.func @transform_12(%arg0: i32, %arg1: i32) -> (i32, i32, i32) {
    %c0_i32 = arith.constant 0 : i32
    %c0_i32_0 = arith.constant 0 : i32
    %c0_i32_1 = arith.constant 0 : i32
    return %arg0, %c0_i32, %c0_i32_0 : i32, i32, i32
  }
  func.func @transform_13(%arg0: i32, %arg1: i32) -> (i32, i32, i32) {
    %c0_i32 = arith.constant 0 : i32
    %c0_i32_0 = arith.constant 0 : i32
    %c0_i32_1 = arith.constant 0 : i32
    return %arg0, %c0_i32, %c0_i32_0 : i32, i32, i32
  }
  func.func @transform_14(%arg0: i32, %arg1: i32) -> (i32, i32, i32) {
    %c0_i32 = arith.constant 0 : i32
    %c0_i32_0 = arith.constant 0 : i32
    %c0_i32_1 = arith.constant 0 : i32
    return %arg0, %c0_i32, %c0_i32_0 : i32, i32, i32
  }
  func.func @transform_15(%arg0: i32, %arg1: i32) -> (i32, i32, i32) {
    %c0_i32 = arith.constant 0 : i32
    %c0_i32_0 = arith.constant 0 : i32
    %c0_i32_1 = arith.constant 0 : i32
    return %arg0, %c0_i32, %c0_i32_0 : i32, i32, i32
  }
  func.func @transform_16(%arg0: i32, %arg1: i32) -> (i32, i32, i32) {
    %c0_i32 = arith.constant 0 : i32
    %c0_i32_0 = arith.constant 0 : i32
    %c0_i32_1 = arith.constant 0 : i32
    return %arg0, %c0_i32, %c0_i32_0 : i32, i32, i32
  }
  func.func @transform_17(%arg0: i32, %arg1: i32) -> (i32, i32, i32, i32) {
    %c0_i32 = arith.constant 0 : i32
    %c0_i32_0 = arith.constant 0 : i32
    %c0_i32_1 = arith.constant 0 : i32
    return %arg0, %arg1, %c0_i32, %c0_i32_0 : i32, i32, i32, i32
  }
}

</mosaic_0001>

<llo_original>
// kernel: tpu_custom_call.1
$region0: #{tpu_custom_call.1}
  #allocation0 [shape = 'u32[]', space=smem, size = 0x4, offset = 0x4, fixed_abs, tag = 'smem constant byte address 0x4 - core index']
  #allocation1 [shape = 'u32[144,128]{1,0:T(1,128)}', space=vmem, size = 0x12000, scoped, tag = 'internal scratch']
  #allocation2 [shape = 'f32[16,256]{1,0:T(8,128)}', space=vmem, size = 0x4000, scoped, tag = 'scratch operand']
  %s0 = inlined_call_operand.hbm [shape: f32[2,2,8,256], index: 0, kind: input, shape index: {}]
  %s1 = inlined_call_operand.hbm [shape: f32[2,2,8,256], index: 1, kind: input, shape index: {}]
  %s2 = inlined_call_operand.hbm [shape: f32[2,1,8], index: 2, kind: input, shape index: {}]
  %s3 = inlined_call_operand.hbm [shape: bf16[2,256,256], index: 3, kind: input, shape index: {}]
  %s4 = inlined_call_operand.vmem [shape: f32[2,1,256], index: 4, kind: input, shape index: {}]
  %s5 = inlined_call_operand.hbm [shape: bf16[2,256,512], index: 5, kind: input, shape index: {}]
  %s6 = inlined_call_operand.vmem [shape: f32[2,1,512], index: 6, kind: input, shape index: {}]
  %s7 = inlined_call_operand.hbm [shape: f32[2,1,256], index: 7, kind: input, shape index: {}]
  %s8 = inlined_call_operand.hbm [shape: f32[2,1,256], index: 8, kind: input, shape index: {}]
  %s9 = inlined_call_operand.hbm [shape: bf16[2,256,1024], index: 9, kind: input, shape index: {}]
  %s10 = inlined_call_operand.vmem [shape: f32[2,1,1024], index: 10, kind: input, shape index: {}]
  %s11 = inlined_call_operand.hbm [shape: bf16[2,1024,256], index: 11, kind: input, shape index: {}]
  %s12 = inlined_call_operand.vmem [shape: f32[2,1,256], index: 12, kind: input, shape index: {}]
  %s13 = inlined_call_operand.vmem [shape: f32[2,1,256], index: 13, kind: input, shape index: {}]
  %s14 = inlined_call_operand.vmem [shape: f32[2,1,256], index: 14, kind: input, shape index: {}]
  %s15 = inlined_call_operand.vmem [shape: f32[2,1,256], index: 15, kind: input, shape index: {}]
  %s16 = inlined_call_operand.vmem [shape: f32[2,1,256], index: 16, kind: input, shape index: {}]
  %s17 = inlined_call_operand.hbm [shape: f32[2,2,8,256], index: 17, kind: output, shape index: {}]
  %s18 = sld [smem:[#allocation0]]
  $region137: #{tpu_custom_call.1} parent=0
    _
  %s20 = ssub.s32 1, %s18
  %s21 = scalar_select 0, %s20, %s18
  $region1: #{tpu_custom_call.1} parent=0
    #allocation3 [shape = 'u8[32768]{0}', space=vmem, size = 0x8000, scoped, tag = 'input window, operand 0']
    #allocation4 [shape = 's32[2]{0}', space=sflag, size = 0x8, scoped, tag = 'scoped memory for tpu_custom_call.1']
    #allocation5 [shape = 's32[2]{0}', space=sflag, size = 0x8, scoped, tag = 'scoped memory for tpu_custom_call.1']
    #allocation6 [shape = 'u8[32768]{0}', space=vmem, size = 0x8000, scoped, tag = 'input window, operand 1']
    #allocation7 [shape = 's32[2]{0}', space=sflag, size = 0x8, scoped, tag = 'scoped memory for tpu_custom_call.1']
    #allocation8 [shape = 'u8[1024]{0}', space=vmem, size = 0x400, scoped, tag = 'input window, operand 2, single buffered']
    #allocation9 [shape = 'u8[262144]{0}', space=vmem, size = 0x40000, scoped, tag = 'input window, operand 3']
    #allocation10 [shape = 's32[2]{0}', space=sflag, size = 0x8, scoped, tag = 'scoped memory for tpu_custom_call.1']
    #allocation11 [shape = 'u8[524288]{0}', space=vmem, size = 0x80000, scoped, tag = 'input window, operand 5']
    #allocation12 [shape = 'u8[2048]{0}', space=vmem, size = 0x800, scoped, tag = 'input window, operand 7']
    #allocation13 [shape = 's32[2]{0}', space=sflag, size = 0x8, scoped, tag = 'scoped memory for tpu_custom_call.1']
    #allocation14 [shape = 'u8[2048]{0}', space=vmem, size = 0x800, scoped, tag = 'input window, operand 8']
    #allocation15 [shape = 'u8[1048576]{0}', space=vmem, size = 0x100000, scoped, tag = 'input window, operand 9']
    #allocation16 [shape = 's32[2]{0}', space=sflag, size = 0x8, scoped, tag = 'scoped memory for tpu_custom_call.1']
    #allocation17 [shape = 'u8[1048576]{0}', space=vmem, size = 0x100000, scoped, tag = 'input window, operand 11']
    #allocation18 [shape = 'u8[32768]{0}', space=vmem, size = 0x8000, scoped, tag = 'output window, operand 0']
    %22 = vsyncpa [#allocation4], 0
    %s23 = scalar_lea.sflag [#allocation4], 1
    %24 = vsyncpa %s23, 0
    %25 = vsyncpa [#allocation7], 0
    %s26 = scalar_lea.sflag [#allocation7], 1
    %27 = vsyncpa %s26, 0
    %28 = vsyncpa [#allocation10], 0
    %s29 = scalar_lea.sflag [#allocation10], 1
    %30 = vsyncpa %s29, 0
    %31 = vsyncpa [#allocation13], 0
    %s32 = scalar_lea.sflag [#allocation13], 1
    %33 = vsyncpa %s32, 0
    %34 = vsyncpa [#allocation16], 0
    %s35 = scalar_lea.sflag [#allocation16], 1
    %36 = vsyncpa %s35, 0
    %37 = vsyncpa [#allocation5], 0
    %s38 = scalar_lea.sflag [#allocation5], 1
    %39 = vsyncpa %s38, 0
    loop: start=0, step=1, limit=4
    $region2: #{tpu_custom_call.1} parent=1 // loop_pre_header
      _
    $region3: #{tpu_custom_call.1} parent=1 // loop_header
      %s41 = sphi 0, %s45
      %p42 = scmp.ge.s32.totalorder %s41, 4
      %s48 = sphi 0, %s60
      %s49 = sphi 0, %s56
      %s50 = sphi 0, %s48
      %s51 = sphi 0, %s49
      %s52 = sphi 0, %s50
      %s53 = sphi 0, %s51
      %s65 = sphi 0, %s67
      %s68 = sphi 0, %s65
      %s69 = sphi 0, %s68
      %s85 = sphi 0, %s69
      %s93 = sphi 0, %s95
      %s96 = sphi 0, %s93
      %s97 = sphi 0, %s96
      %s113 = sphi 0, %s97
      %s119 = sphi 0, %s121
      %s122 = sphi 0, %s119
      %s123 = sphi 0, %s122
      %s139 = sphi 0, %s123
      %s145 = sphi 0, %s147
      %s148 = sphi 0, %s145
      %s149 = sphi 0, %s148
      %s165 = sphi 0, %s149
      %s171 = sphi 0, %s173
      %s174 = sphi 0, %s171
      %s175 = sphi 0, %s174
      %s191 = sphi 0, %s175
      %s197 = sphi 0, %s199
      %s200 = sphi 0, %s197
      %s201 = sphi 0, %s200
      %s217 = sphi 0, %s201
      %s223 = sphi 0, %s225
      %s226 = sphi 0, %s223
      %s227 = sphi 0, %s226
      %s243 = sphi 0, %s227
      %s249 = sphi 0, %s251
      %s252 = sphi 0, %s249
      %s253 = sphi 0, %s252
      %s269 = sphi 0, %s253
      %s275 = sphi 0, %s277
      %s278 = sphi 0, %s275
      %s279 = sphi 0, %s278
      %s295 = sphi 0, %s279
      %s301 = sphi 0, %s303
      %s304 = sphi 0, %s301
      %s305 = sphi 0, %s304
      %s321 = sphi 0, %s305
      %s327 = sphi 0, %s329
      %s330 = sphi 0, %s327
      %s331 = sphi 0, %s330
      %s347 = sphi 0, %s331
      %s353 = sphi 0, %s355
      %s356 = sphi 0, %s353
      %s357 = sphi 0, %s356
      %s373 = sphi 0, %s357
      %s379 = sphi 0, %s381
      %s382 = sphi 0, %s379
      %s383 = sphi 0, %s382
      %s399 = sphi 0, %s383
      %s405 = sphi 0, %s407
      %s408 = sphi 0, %s405
      %s409 = sphi 0, %s408
      %s425 = sphi 0, %s409
      %s431 = sphi 0, %s433
      %s434 = sphi 0, %s431
      %s435 = sphi 0, %s434
      %s451 = sphi 0, %s435
      %s457 = sphi 0, %s459
      %s460 = sphi 0, %s457
      %s461 = sphi 0, %s460
      %s477 = sphi 0, %s461
      %s483 = sphi 0, %s485
      %s486 = sphi 0, %s483
      %s487 = sphi 0, %s486
      %s503 = sphi 0, %s487
      %s511 = sphi 0, %s513
      %s514 = sphi 0, %s511
      %s515 = sphi 0, %s514
      %s531 = sphi 0, %s515
    $region4: #{tpu_custom_call.1} parent=1 // loop_header_branch
      %44 = sbr.rel (%p42) target = $region8
    $region5: #{tpu_custom_call.1} parent=1 // loop_body
      %s46 = ssub.s32 %s41, 1
      %s47 = ssub.s32 %s41, 2
      %s54 = sadd.s32 1, %s49
      %p55 = scmp.ge.s32.totalorder %s54, 1
      %s56 = scalar_select %p55, 0, %s54
      %s57 = sadd.s32 1, %s48
      %s58 = scalar_select %p55, %s57, %s48
      %p59 = scmp.ge.s32.totalorder %s58, 2
      %s60 = scalar_select %p59, 0, %s58
      %s61 = ssub.s32 %s48, %s60
      %s62 = ssub.s32 %s49, %s56
      %s63 = sor.u32 %s61, %s62
      %p64 = scmp.eq.s32.totalorder %s63, 0
      %s66 = sadd.s32 %s65, 1
      %s67 = scalar_select %p64, %s65, %s66
      %p70 = pneg %p64
      %p71 = scmp.eq.s32.totalorder %s41, 1
      %p72 = por %p70, %p71
      %p73 = scmp.ne.s32.totalorder %s65, %s68
      %p74 = scmp.eq.s32.totalorder %s41, 0
      %p75 = por %p73, %p74
      %p76 = scmp.ne.s32.totalorder %s65, %s68
      %p77 = scmp.eq.s32.totalorder %s46, 1
      %p78 = por %p76, %p77
      %p79 = scmp.ne.s32.totalorder %s68, %s69
      %p80 = scmp.eq.s32.totalorder %s46, 0
      %p81 = por %p79, %p80
      %p82 = scmp.ne.s32.totalorder %s68, %s69
      %p83 = scmp.eq.s32.totalorder %s47, 1
      %p84 = por %p82, %p83
      %p86 = scmp.ne.s32.totalorder %s69, %s85
      %p87 = scmp.eq.s32.totalorder %s47, 0
      %p88 = por %p86, %p87
      %s89 = ssub.s32 %s48, %s60
      %s90 = ssub.s32 %s49, %s56
      %s91 = sor.u32 %s89, %s90
      %p92 = scmp.eq.s32.totalorder %s91, 0
      %s94 = sadd.s32 %s93, 1
      %s95 = scalar_select %p92, %s93, %s94
      %p98 = pneg %p92
      %p99 = scmp.eq.s32.totalorder %s41, 1
      %p100 = por %p98, %p99
      %p101 = scmp.ne.s32.totalorder %s93, %s96
      %p102 = scmp.eq.s32.totalorder %s41, 0
      %p103 = por %p101, %p102
      %p104 = scmp.ne.s32.totalorder %s93, %s96
      %p105 = scmp.eq.s32.totalorder %s46, 1
      %p106 = por %p104, %p105
      %p107 = scmp.ne.s32.totalorder %s96, %s97
      %p108 = scmp.eq.s32.totalorder %s46, 0
      %p109 = por %p107, %p108
      %p110 = scmp.ne.s32.totalorder %s96, %s97
      %p111 = scmp.eq.s32.totalorder %s47, 1
      %p112 = por %p110, %p111
      %p114 = scmp.ne.s32.totalorder %s97, %s113
      %p115 = scmp.eq.s32.totalorder %s47, 0
      %p116 = por %p114, %p115
      %s117 = ssub.s32 %s49, %s56
      %p118 = scmp.eq.s32.totalorder %s117, 0
      %s120 = sadd.s32 %s119, 1
      %s121 = scalar_select %p118, %s119, %s120
      %p124 = pneg %p118
      %p125 = scmp.eq.s32.totalorder %s41, 1
      %p126 = por %p124, %p125
      %p127 = scmp.ne.s32.totalorder %s119, %s122
      %p128 = scmp.eq.s32.totalorder %s41, 0
      %p129 = por %p127, %p128
      %p130 = scmp.ne.s32.totalorder %s119, %s122
      %p131 = scmp.eq.s32.totalorder %s46, 1
      %p132 = por %p130, %p131
      %p133 = scmp.ne.s32.totalorder %s122, %s123
      %p134 = scmp.eq.s32.totalorder %s46, 0
      %p135 = por %p133, %p134
      %p136 = scmp.ne.s32.totalorder %s122, %s123
      %p137 = scmp.eq.s32.totalorder %s47, 1
      %p138 = por %p136, %p137
      %p140 = scmp.ne.s32.totalorder %s123, %s139
      %p141 = scmp.eq.s32.totalorder %s47, 0
      %p142 = por %p140, %p141
      %s143 = ssub.s32 %s48, %s60
      %p144 = scmp.eq.s32.totalorder %s143, 0
      %s146 = sadd.s32 %s145, 1
      %s147 = scalar_select %p144, %s145, %s146
      %p150 = pneg %p144
      %p151 = scmp.eq.s32.totalorder %s41, 1
      %p152 = por %p150, %p151
      %p153 = scmp.ne.s32.totalorder %s145, %s148
      %p154 = scmp.eq.s32.totalorder %s41, 0
      %p155 = por %p153, %p154
      %p156 = scmp.ne.s32.totalorder %s145, %s148
      %p157 = scmp.eq.s32.totalorder %s46, 1
      %p158 = por %p156, %p157
      %p159 = scmp.ne.s32.totalorder %s148, %s149
      %p160 = scmp.eq.s32.totalorder %s46, 0
      %p161 = por %p159, %p160
      %p162 = scmp.ne.s32.totalorder %s148, %s149
      %p163 = scmp.eq.s32.totalorder %s47, 1
      %p164 = por %p162, %p163
      %p166 = scmp.ne.s32.totalorder %s149, %s165
      %p167 = scmp.eq.s32.totalorder %s47, 0
      %p168 = por %p166, %p167
      %s169 = ssub.s32 %s48, %s60
      %p170 = scmp.eq.s32.totalorder %s169, 0
      %s172 = sadd.s32 %s171, 1
      %s173 = scalar_select %p170, %s171, %s172
      %p176 = pneg %p170
      %p177 = scmp.eq.s32.totalorder %s41, 1
      %p178 = por %p176, %p177
      %p179 = scmp.ne.s32.totalorder %s171, %s174
      %p180 = scmp.eq.s32.totalorder %s41, 0
      %p181 = por %p179, %p180
      %p182 = scmp.ne.s32.totalorder %s171, %s174
      %p183 = scmp.eq.s32.totalorder %s46, 1
      %p184 = por %p182, %p183
      %p185 = scmp.ne.s32.totalorder %s174, %s175
      %p186 = scmp.eq.s32.totalorder %s46, 0
      %p187 = por %p185, %p186
      %p188 = scmp.ne.s32.totalorder %s174, %s175
      %p189 = scmp.eq.s32.totalorder %s47, 1
      %p190 = por %p188, %p189
      %p192 = scmp.ne.s32.totalorder %s175, %s191
      %p193 = scmp.eq.s32.totalorder %s47, 0
      %p194 = por %p192, %p193
      %s195 = ssub.s32 %s48, %s60
      %p196 = scmp.eq.s32.totalorder %s195, 0
      %s198 = sadd.s32 %s197, 1
      %s199 = scalar_select %p196, %s197, %s198
      %p202 = pneg %p196
      %p203 = scmp.eq.s32.totalorder %s41, 1
      %p204 = por %p202, %p203
      %p205 = scmp.ne.s32.totalorder %s197, %s200
      %p206 = scmp.eq.s32.totalorder %s41, 0
      %p207 = por %p205, %p206
      %p208 = scmp.ne.s32.totalorder %s197, %s200
      %p209 = scmp.eq.s32.totalorder %s46, 1
      %p210 = por %p208, %p209
      %p211 = scmp.ne.s32.totalorder %s200, %s201
      %p212 = scmp.eq.s32.totalorder %s46, 0
      %p213 = por %p211, %p212
      %p214 = scmp.ne.s32.totalorder %s200, %s201
      %p215 = scmp.eq.s32.totalorder %s47, 1
      %p216 = por %p214, %p215
      %p218 = scmp.ne.s32.totalorder %s201, %s217
      %p219 = scmp.eq.s32.totalorder %s47, 0
      %p220 = por %p218, %p219
      %s221 = ssub.s32 %s48, %s60
      %p222 = scmp.eq.s32.totalorder %s221, 0
      %s224 = sadd.s32 %s223, 1
      %s225 = scalar_select %p222, %s223, %s224
      %p228 = pneg %p222
      %p229 = scmp.eq.s32.totalorder %s41, 1
      %p230 = por %p228, %p229
      %p231 = scmp.ne.s32.totalorder %s223, %s226
      %p232 = scmp.eq.s32.totalorder %s41, 0
      %p233 = por %p231, %p232
      %p234 = scmp.ne.s32.totalorder %s223, %s226
      %p235 = scmp.eq.s32.totalorder %s46, 1
      %p236 = por %p234, %p235
      %p237 = scmp.ne.s32.totalorder %s226, %s227
      %p238 = scmp.eq.s32.totalorder %s46, 0
      %p239 = por %p237, %p238
      %p240 = scmp.ne.s32.totalorder %s226, %s227
      %p241 = scmp.eq.s32.totalorder %s47, 1
      %p242 = por %p240, %p241
      %p244 = scmp.ne.s32.totalorder %s227, %s243
      %p245 = scmp.eq.s32.totalorder %s47, 0
      %p246 = por %p244, %p245
      %s247 = ssub.s32 %s48, %s60
      %p248 = scmp.eq.s32.totalorder %s247, 0
      %s250 = sadd.s32 %s249, 1
      %s251 = scalar_select %p248, %s249, %s250
      %p254 = pneg %p248
      %p255 = scmp.eq.s32.totalorder %s41, 1
      %p256 = por %p254, %p255
      %p257 = scmp.ne.s32.totalorder %s249, %s252
      %p258 = scmp.eq.s32.totalorder %s41, 0
      %p259 = por %p257, %p258
      %p260 = scmp.ne.s32.totalorder %s249, %s252
      %p261 = scmp.eq.s32.totalorder %s46, 1
      %p262 = por %p260, %p261
      %p263 = scmp.ne.s32.totalorder %s252, %s253
      %p264 = scmp.eq.s32.totalorder %s46, 0
      %p265 = por %p263, %p264
      %p266 = scmp.ne.s32.totalorder %s252, %s253
      %p267 = scmp.eq.s32.totalorder %s47, 1
      %p268 = por %p266, %p267
      %p270 = scmp.ne.s32.totalorder %s253, %s269
      %p271 = scmp.eq.s32.totalorder %s47, 0
      %p272 = por %p270, %p271
      %s273 = ssub.s32 %s48, %s60
      %p274 = scmp.eq.s32.totalorder %s273, 0
      %s276 = sadd.s32 %s275, 1
      %s277 = scalar_select %p274, %s275, %s276
      %p280 = pneg %p274
      %p281 = scmp.eq.s32.totalorder %s41, 1
      %p282 = por %p280, %p281
      %p283 = scmp.ne.s32.totalorder %s275, %s278
      %p284 = scmp.eq.s32.totalorder %s41, 0
      %p285 = por %p283, %p284
      %p286 = scmp.ne.s32.totalorder %s275, %s278
      %p287 = scmp.eq.s32.totalorder %s46, 1
      %p288 = por %p286, %p287
      %p289 = scmp.ne.s32.totalorder %s278, %s279
      %p290 = scmp.eq.s32.totalorder %s46, 0
      %p291 = por %p289, %p290
      %p292 = scmp.ne.s32.totalorder %s278, %s279
      %p293 = scmp.eq.s32.totalorder %s47, 1
      %p294 = por %p292, %p293
      %p296 = scmp.ne.s32.totalorder %s279, %s295
      %p297 = scmp.eq.s32.totalorder %s47, 0
      %p298 = por %p296, %p297
      %s299 = ssub.s32 %s48, %s60
      %p300 = scmp.eq.s32.totalorder %s299, 0
      %s302 = sadd.s32 %s301, 1
      %s303 = scalar_select %p300, %s301, %s302
      %p306 = pneg %p300
      %p307 = scmp.eq.s32.totalorder %s41, 1
      %p308 = por %p306, %p307
      %p309 = scmp.ne.s32.totalorder %s301, %s304
      %p310 = scmp.eq.s32.totalorder %s41, 0
      %p311 = por %p309, %p310
      %p312 = scmp.ne.s32.totalorder %s301, %s304
      %p313 = scmp.eq.s32.totalorder %s46, 1
      %p314 = por %p312, %p313
      %p315 = scmp.ne.s32.totalorder %s304, %s305
      %p316 = scmp.eq.s32.totalorder %s46, 0
      %p317 = por %p315, %p316
      %p318 = scmp.ne.s32.totalorder %s304, %s305
      %p319 = scmp.eq.s32.totalorder %s47, 1
      %p320 = por %p318, %p319
      %p322 = scmp.ne.s32.totalorder %s305, %s321
      %p323 = scmp.eq.s32.totalorder %s47, 0
      %p324 = por %p322, %p323
      %s325 = ssub.s32 %s48, %s60
      %p326 = scmp.eq.s32.totalorder %s325, 0
      %s328 = sadd.s32 %s327, 1
      %s329 = scalar_select %p326, %s327, %s328
      %p332 = pneg %p326
      %p333 = scmp.eq.s32.totalorder %s41, 1
      %p334 = por %p332, %p333
      %p335 = scmp.ne.s32.totalorder %s327, %s330
      %p336 = scmp.eq.s32.totalorder %s41, 0
      %p337 = por %p335, %p336
      %p338 = scmp.ne.s32.totalorder %s327, %s330
      %p339 = scmp.eq.s32.totalorder %s46, 1
      %p340 = por %p338, %p339
      %p341 = scmp.ne.s32.totalorder %s330, %s331
      %p342 = scmp.eq.s32.totalorder %s46, 0
      %p343 = por %p341, %p342
      %p344 = scmp.ne.s32.totalorder %s330, %s331
      %p345 = scmp.eq.s32.totalorder %s47, 1
      %p346 = por %p344, %p345
      %p348 = scmp.ne.s32.totalorder %s331, %s347
      %p349 = scmp.eq.s32.totalorder %s47, 0
      %p350 = por %p348, %p349
      %s351 = ssub.s32 %s48, %s60
      %p352 = scmp.eq.s32.totalorder %s351, 0
      %s354 = sadd.s32 %s353, 1
      %s355 = scalar_select %p352, %s353, %s354
      %p358 = pneg %p352
      %p359 = scmp.eq.s32.totalorder %s41, 1
      %p360 = por %p358, %p359
      %p361 = scmp.ne.s32.totalorder %s353, %s356
      %p362 = scmp.eq.s32.totalorder %s41, 0
      %p363 = por %p361, %p362
      %p364 = scmp.ne.s32.totalorder %s353, %s356
      %p365 = scmp.eq.s32.totalorder %s46, 1
      %p366 = por %p364, %p365
      %p367 = scmp.ne.s32.totalorder %s356, %s357
      %p368 = scmp.eq.s32.totalorder %s46, 0
      %p369 = por %p367, %p368
      %p370 = scmp.ne.s32.totalorder %s356, %s357
      %p371 = scmp.eq.s32.totalorder %s47, 1
      %p372 = por %p370, %p371
      %p374 = scmp.ne.s32.totalorder %s357, %s373
      %p375 = scmp.eq.s32.totalorder %s47, 0
      %p376 = por %p374, %p375
      %s377 = ssub.s32 %s48, %s60
      %p378 = scmp.eq.s32.totalorder %s377, 0
      %s380 = sadd.s32 %s379, 1
      %s381 = scalar_select %p378, %s379, %s380
      %p384 = pneg %p378
      %p385 = scmp.eq.s32.totalorder %s41, 1
      %p386 = por %p384, %p385
      %p387 = scmp.ne.s32.totalorder %s379, %s382
      %p388 = scmp.eq.s32.totalorder %s41, 0
      %p389 = por %p387, %p388
      %p390 = scmp.ne.s32.totalorder %s379, %s382
      %p391 = scmp.eq.s32.totalorder %s46, 1
      %p392 = por %p390, %p391
      %p393 = scmp.ne.s32.totalorder %s382, %s383
      %p394 = scmp.eq.s32.totalorder %s46, 0
      %p395 = por %p393, %p394
      %p396 = scmp.ne.s32.totalorder %s382, %s383
      %p397 = scmp.eq.s32.totalorder %s47, 1
      %p398 = por %p396, %p397
      %p400 = scmp.ne.s32.totalorder %s383, %s399
      %p401 = scmp.eq.s32.totalorder %s47, 0
      %p402 = por %p400, %p401
      %s403 = ssub.s32 %s48, %s60
      %p404 = scmp.eq.s32.totalorder %s403, 0
      %s406 = sadd.s32 %s405, 1
      %s407 = scalar_select %p404, %s405, %s406
      %p410 = pneg %p404
      %p411 = scmp.eq.s32.totalorder %s41, 1
      %p412 = por %p410, %p411
      %p413 = scmp.ne.s32.totalorder %s405, %s408
      %p414 = scmp.eq.s32.totalorder %s41, 0
      %p415 = por %p413, %p414
      %p416 = scmp.ne.s32.totalorder %s405, %s408
      %p417 = scmp.eq.s32.totalorder %s46, 1
      %p418 = por %p416, %p417
      %p419 = scmp.ne.s32.totalorder %s408, %s409
      %p420 = scmp.eq.s32.totalorder %s46, 0
      %p421 = por %p419, %p420
      %p422 = scmp.ne.s32.totalorder %s408, %s409
      %p423 = scmp.eq.s32.totalorder %s47, 1
      %p424 = por %p422, %p423
      %p426 = scmp.ne.s32.totalorder %s409, %s425
      %p427 = scmp.eq.s32.totalorder %s47, 0
      %p428 = por %p426, %p427
      %s429 = ssub.s32 %s48, %s60
      %p430 = scmp.eq.s32.totalorder %s429, 0
      %s432 = sadd.s32 %s431, 1
      %s433 = scalar_select %p430, %s431, %s432
      %p436 = pneg %p430
      %p437 = scmp.eq.s32.totalorder %s41, 1
      %p438 = por %p436, %p437
      %p439 = scmp.ne.s32.totalorder %s431, %s434
      %p440 = scmp.eq.s32.totalorder %s41, 0
      %p441 = por %p439, %p440
      %p442 = scmp.ne.s32.totalorder %s431, %s434
      %p443 = scmp.eq.s32.totalorder %s46, 1
      %p444 = por %p442, %p443
      %p445 = scmp.ne.s32.totalorder %s434, %s435
      %p446 = scmp.eq.s32.totalorder %s46, 0
      %p447 = por %p445, %p446
      %p448 = scmp.ne.s32.totalorder %s434, %s435
      %p449 = scmp.eq.s32.totalorder %s47, 1
      %p450 = por %p448, %p449
      %p452 = scmp.ne.s32.totalorder %s435, %s451
      %p453 = scmp.eq.s32.totalorder %s47, 0
      %p454 = por %p452, %p453
      %s455 = ssub.s32 %s48, %s60
      %p456 = scmp.eq.s32.totalorder %s455, 0
      %s458 = sadd.s32 %s457, 1
      %s459 = scalar_select %p456, %s457, %s458
      %p462 = pneg %p456
      %p463 = scmp.eq.s32.totalorder %s41, 1
      %p464 = por %p462, %p463
      %p465 = scmp.ne.s32.totalorder %s457, %s460
      %p466 = scmp.eq.s32.totalorder %s41, 0
      %p467 = por %p465, %p466
      %p468 = scmp.ne.s32.totalorder %s457, %s460
      %p469 = scmp.eq.s32.totalorder %s46, 1
      %p470 = por %p468, %p469
      %p471 = scmp.ne.s32.totalorder %s460, %s461
      %p472 = scmp.eq.s32.totalorder %s46, 0
      %p473 = por %p471, %p472
      %p474 = scmp.ne.s32.totalorder %s460, %s461
      %p475 = scmp.eq.s32.totalorder %s47, 1
      %p476 = por %p474, %p475
      %p478 = scmp.ne.s32.totalorder %s461, %s477
      %p479 = scmp.eq.s32.totalorder %s47, 0
      %p480 = por %p478, %p479
      %s481 = ssub.s32 %s48, %s60
      %p482 = scmp.eq.s32.totalorder %s481, 0
      %s484 = sadd.s32 %s483, 1
      %s485 = scalar_select %p482, %s483, %s484
      %p488 = pneg %p482
      %p489 = scmp.eq.s32.totalorder %s41, 1
      %p490 = por %p488, %p489
      %p491 = scmp.ne.s32.totalorder %s483, %s486
      %p492 = scmp.eq.s32.totalorder %s41, 0
      %p493 = por %p491, %p492
      %p494 = scmp.ne.s32.totalorder %s483, %s486
      %p495 = scmp.eq.s32.totalorder %s46, 1
      %p496 = por %p494, %p495
      %p497 = scmp.ne.s32.totalorder %s486, %s487
      %p498 = scmp.eq.s32.totalorder %s46, 0
      %p499 = por %p497, %p498
      %p500 = scmp.ne.s32.totalorder %s486, %s487
      %p501 = scmp.eq.s32.totalorder %s47, 1
      %p502 = por %p500, %p501
      %p504 = scmp.ne.s32.totalorder %s487, %s503
      %p505 = scmp.eq.s32.totalorder %s47, 0
      %p506 = por %p504, %p505
      %s507 = ssub.s32 %s48, %s60
      %s508 = ssub.s32 %s49, %s56
      %s509 = sor.u32 %s507, %s508
      %p510 = scmp.eq.s32.totalorder %s509, 0
      %s512 = sadd.s32 %s511, 1
      %s513 = scalar_select %p510, %s511, %s512
      %p516 = pneg %p510
      %p517 = scmp.eq.s32.totalorder %s41, 1
      %p518 = por %p516, %p517
      %p519 = scmp.ne.s32.totalorder %s511, %s514
      %p520 = scmp.eq.s32.totalorder %s41, 0
      %p521 = por %p519, %p520
      %p522 = scmp.ne.s32.totalorder %s511, %s514
      %p523 = scmp.eq.s32.totalorder %s46, 1
      %p524 = por %p522, %p523
      %p525 = scmp.ne.s32.totalorder %s514, %s515
      %p526 = scmp.eq.s32.totalorder %s46, 0
      %p527 = por %p525, %p526
      %p528 = scmp.ne.s32.totalorder %s514, %s515
      %p529 = scmp.eq.s32.totalorder %s47, 1
      %p530 = por %p528, %p529
      %p532 = scmp.ne.s32.totalorder %s515, %s531
      %p533 = scmp.eq.s32.totalorder %s47, 0
      %p534 = por %p532, %p533
      %p535 = scmp.le.s32.totalorder 1, %s41
      %p536 = scmp.lt.s32.totalorder %s41, 3
      %p537 = pnand %p535, %p536
      %p538 = pneg %p537
      // Predicated region
      $region9: #{tpu_custom_call.1} parent=5 // pred_check
        _
      $region10: #{tpu_custom_call.1} parent=5 // pred_check_branch
        %540 = sbr.rel (%p537) target = $region12
      $region11: #{tpu_custom_call.1} parent=5 // pred_region
        %s541 = ssub.s32 %s41, 1
        // Predicated region
        $region13: #{tpu_custom_call.1} parent=11 // pred_check
          %p542 = pneg %p135
        $region14: #{tpu_custom_call.1} parent=11 // pred_check_branch
          %544 = sbr.rel (%p542) target = $region16
        $region15: #{tpu_custom_call.1} parent=11 // pred_region
          %s545 = smul.u32 2, %s51
          %s547 = ssub.s32 32, 32
          %548 = vsyncadd [#allocation7], %s547
          %s549 = smul.addr %s545, 16
          %s550 = scalar_lea.hbm %s2, %s549
          %s551 = sshll.u32 [#allocation8], 4
          %s552 = int_to_ptr.vmem [resolvable:$true] %s551
          %557 = dma.hbm_to_vmem [thread:$0]  %s550, 32, %s552, [#allocation7], 16, 16, 1
        $region16: #{tpu_custom_call.1} parent=11 // pred_fallthru
          _
      $region12: #{tpu_custom_call.1} parent=5 // pred_fallthru
        _
      %p558 = scmp.lt.s32.totalorder %s41, 2
      // Predicated region
      $region17: #{tpu_custom_call.1} parent=5 // pred_check
        %p559 = pneg %p558
      $region18: #{tpu_custom_call.1} parent=5 // pred_check_branch
        %561 = sbr.rel (%p559) target = $region20
      $region19: #{tpu_custom_call.1} parent=5 // pred_region
        // Predicated region
        $region21: #{tpu_custom_call.1} parent=19 // pred_check
          %p562 = pneg %p75
        $region22: #{tpu_custom_call.1} parent=19 // pred_check_branch
          %564 = sbr.rel (%p562) target = $region24
        $region23: #{tpu_custom_call.1} parent=19 // pred_region
          %s565 = sand.u32 %s65, 1
          %s566 = scalar_lea.sflag [#allocation4], %s565
          %s567 = sand.u32 %s65, 1
          %s568 = smul.addr %s567, 32
          %s569 = scalar_lea.vmem [#allocation3], %s568
          %s570 = smul.u32 2, %s49
          %s572 = ssub.s32 512, 512
          %573 = vsyncadd %s566, %s572
          %s574 = smul.addr %s570, 2
          %s575 = smul.addr %s48, 4
          %s576 = sadd.s32 %s574, %s575
          %s577 = smul.addr %s576, 128
          %s578 = scalar_lea.hbm %s0, %s577
          %s579 = sshll.u32 %s569, 4
          %s580 = int_to_ptr.vmem [resolvable:$true] %s579
          %585 = dma.hbm_to_vmem [thread:$0]  %s578, 512, %s580, %s566, 256, 256, 16
        $region24: #{tpu_custom_call.1} parent=19 // pred_fallthru
          _
        // Predicated region
        $region25: #{tpu_custom_call.1} parent=19 // pred_check
          %p586 = pneg %p103
        $region26: #{tpu_custom_call.1} parent=19 // pred_check_branch
          %588 = sbr.rel (%p586) target = $region28
        $region27: #{tpu_custom_call.1} parent=19 // pred_region
          %s589 = sand.u32 %s41, 1
          %s590 = scalar_lea.sflag [#allocation7], %s589
          %s591 = sand.u32 %s93, 1
          %s592 = smul.addr %s591, 32
          %s593 = scalar_lea.vmem [#allocation6], %s592
          %s594 = smul.u32 2, %s49
          %s596 = ssub.s32 512, 512
          %597 = vsyncadd %s590, %s596
          %s598 = smul.addr %s594, 2
          %s599 = smul.addr %s48, 4
          %s600 = sadd.s32 %s598, %s599
          %s601 = smul.addr %s600, 128
          %s602 = scalar_lea.hbm %s1, %s601
          %s603 = sshll.u32 %s593, 4
          %s604 = int_to_ptr.vmem [resolvable:$true] %s603
          %609 = dma.hbm_to_vmem [thread:$0]  %s602, 512, %s604, %s590, 256, 256, 16
        $region28: #{tpu_custom_call.1} parent=19 // pred_fallthru
          _
        // Predicated region
        $region29: #{tpu_custom_call.1} parent=19 // pred_check
          %p610 = pneg %p155
        $region30: #{tpu_custom_call.1} parent=19 // pred_check_branch
          %612 = sbr.rel (%p610) target = $region32
        $region31: #{tpu_custom_call.1} parent=19 // pred_region
          %s613 = sand.u32 %s41, 1
          %s614 = scalar_lea.sflag [#allocation10], %s613
          %s615 = sand.u32 %s145, 1
          %s616 = smul.addr %s615, 256
          %s617 = scalar_lea.vmem [#allocation9], %s616
          %s619 = ssub.s32 4096, 4096
          %620 = vsyncadd %s614, %s619
          %s621 = smul.addr %s48, 64
          %s622 = smul.addr %s621, 64
          %s623 = scalar_lea.hbm %s3, %s622
          %s624 = sshll.u32 %s617, 4
          %s625 = int_to_ptr.vmem [resolvable:$true] %s624
          %630 = dma.hbm_to_vmem [thread:$0]  %s623, 4096, %s625, %s614, 128, 128, 8
        $region32: #{tpu_custom_call.1} parent=19 // pred_fallthru
          _
        // Predicated region
        $region33: #{tpu_custom_call.1} parent=19 // pred_check
          %p631 = pneg %p181
        $region34: #{tpu_custom_call.1} parent=19 // pred_check_branch
          %633 = sbr.rel (%p631) target = $region36
        $region35: #{tpu_custom_call.1} parent=19 // pred_region
          %p634 = scmp.lt.s32.totalorder %s48, 1
          %s635 = scalar_select %p634, %s48, 1
          %s636 = smul.addr %s635, 2
          %s637 = scalar_lea.vmem %s4, %s636
        $region36: #{tpu_custom_call.1} parent=19 // pred_fallthru
          _
        // Predicated region
        $region37: #{tpu_custom_call.1} parent=19 // pred_check
          %p638 = pneg %p207
        $region38: #{tpu_custom_call.1} parent=19 // pred_check_branch
          %640 = sbr.rel (%p638) target = $region40
        $region39: #{tpu_custom_call.1} parent=19 // pred_region
          %s641 = sand.u32 %s41, 1
          %s642 = scalar_lea.sflag [#allocation10], %s641
          %s643 = sand.u32 %s197, 1
          %s644 = smul.addr %s643, 512
          %s645 = scalar_lea.vmem [#allocation11], %s644
          %s647 = ssub.s32 8192, 8192
          %648 = vsyncadd %s642, %s647
          %s649 = smul.addr %s48, 128
          %s650 = smul.addr %s649, 64
          %s651 = scalar_lea.hbm %s5, %s650
          %s652 = sshll.u32 %s645, 4
          %s653 = int_to_ptr.vmem [resolvable:$true] %s652
          %658 = dma.hbm_to_vmem [thread:$0]  %s651, 8192, %s653, %s642, 256, 256, 16
        $region40: #{tpu_custom_call.1} parent=19 // pred_fallthru
          _
        // Predicated region
        $region41: #{tpu_custom_call.1} parent=19 // pred_check
          %p659 = pneg %p233
        $region42: #{tpu_custom_call.1} parent=19 // pred_check_branch
          %661 = sbr.rel (%p659) target = $region44
        $region43: #{tpu_custom_call.1} parent=19 // pred_region
          %p662 = scmp.lt.s32.totalorder %s48, 1
          %s663 = scalar_select %p662, %s48, 1
          %s664 = smul.addr %s663, 4
          %s665 = scalar_lea.vmem %s6, %s664
        $region44: #{tpu_custom_call.1} parent=19 // pred_fallthru
          _
        // Predicated region
        $region45: #{tpu_custom_call.1} parent=19 // pred_check
          %p666 = pneg %p259
        $region46: #{tpu_custom_call.1} parent=19 // pred_check_branch
          %668 = sbr.rel (%p666) target = $region48
        $region47: #{tpu_custom_call.1} parent=19 // pred_region
          %s669 = sand.u32 %s41, 1
          %s670 = scalar_lea.sflag [#allocation13], %s669
          %s671 = sand.u32 %s249, 1
          %s672 = smul.addr %s671, 2
          %s673 = scalar_lea.vmem [#allocation12], %s672
          %s675 = ssub.s32 32, 32
          %676 = vsyncadd %s670, %s675
          %s677 = smul.addr %s48, 2
          %s678 = smul.addr %s677, 16
          %s679 = scalar_lea.hbm %s7, %s678
          %s681 = sshll.u32 %s673, 4
          %s682 = int_to_ptr.vmem [resolvable:$true] %s681
          %684 = dma.hbm_to_vmem [thread:$0]  %s679, 32, %s682, %s670
        $region48: #{tpu_custom_call.1} parent=19 // pred_fallthru
          _
        // Predicated region
        $region49: #{tpu_custom_call.1} parent=19 // pred_check
          %p685 = pneg %p285
        $region50: #{tpu_custom_call.1} parent=19 // pred_check_branch
          %687 = sbr.rel (%p685) target = $region52
        $region51: #{tpu_custom_call.1} parent=19 // pred_region
          %s688 = sand.u32 %s41, 1
          %s689 = scalar_lea.sflag [#allocation13], %s688
          %s690 = sand.u32 %s275, 1
          %s691 = smul.addr %s690, 2
          %s692 = scalar_lea.vmem [#allocation14], %s691
          %s694 = ssub.s32 32, 32
          %695 = vsyncadd %s689, %s694
          %s696 = smul.addr %s48, 2
          %s697 = smul.addr %s696, 16
          %s698 = scalar_lea.hbm %s8, %s697
          %s700 = sshll.u32 %s692, 4
          %s701 = int_to_ptr.vmem [resolvable:$true] %s700
          %703 = dma.hbm_to_vmem [thread:$0]  %s698, 32, %s701, %s689
        $region52: #{tpu_custom_call.1} parent=19 // pred_fallthru
          _
        // Predicated region
        $region53: #{tpu_custom_call.1} parent=19 // pred_check
          %p704 = pneg %p311
        $region54: #{tpu_custom_call.1} parent=19 // pred_check_branch
          %706 = sbr.rel (%p704) target = $region56
        $region55: #{tpu_custom_call.1} parent=19 // pred_region
          %s707 = sand.u32 %s41, 1
          %s708 = scalar_lea.sflag [#allocation16], %s707
          %s709 = sand.u32 %s301, 1
          %s710 = smul.addr %s709, 1024
          %s711 = scalar_lea.vmem [#allocation15], %s710
          %s713 = ssub.s32 16384, 16384
          %714 = vsyncadd %s708, %s713
          %s715 = smul.addr %s48, 256
          %s716 = smul.addr %s715, 64
          %s717 = scalar_lea.hbm %s9, %s716
          %s718 = sshll.u32 %s711, 4
          %s719 = int_to_ptr.vmem [resolvable:$true] %s718
          %724 = dma.hbm_to_vmem [thread:$0]  %s717, 16384, %s719, %s708, 512, 512, 32
        $region56: #{tpu_custom_call.1} parent=19 // pred_fallthru
          _
        // Predicated region
        $region57: #{tpu_custom_call.1} parent=19 // pred_check
          %p725 = pneg %p337
        $region58: #{tpu_custom_call.1} parent=19 // pred_check_branch
          %727 = sbr.rel (%p725) target = $region60
        $region59: #{tpu_custom_call.1} parent=19 // pred_region
          %p728 = scmp.lt.s32.totalorder %s48, 1
          %s729 = scalar_select %p728, %s48, 1
          %s730 = smul.addr %s729, 8
          %s731 = scalar_lea.vmem %s10, %s730
        $region60: #{tpu_custom_call.1} parent=19 // pred_fallthru
          _
        // Predicated region
        $region61: #{tpu_custom_call.1} parent=19 // pred_check
          %p732 = pneg %p363
        $region62: #{tpu_custom_call.1} parent=19 // pred_check_branch
          %734 = sbr.rel (%p732) target = $region64
        $region63: #{tpu_custom_call.1} parent=19 // pred_region
          %s735 = sand.u32 %s41, 1
          %s736 = scalar_lea.sflag [#allocation16], %s735
          %s737 = sand.u32 %s353, 1
          %s738 = smul.addr %s737, 1024
          %s739 = scalar_lea.vmem [#allocation17], %s738
          %s741 = ssub.s32 16384, 16384
          %742 = vsyncadd %s736, %s741
          %s743 = smul.addr %s48, 256
          %s744 = smul.addr %s743, 64
          %s745 = scalar_lea.hbm %s11, %s744
          %s746 = sshll.u32 %s739, 4
          %s747 = int_to_ptr.vmem [resolvable:$true] %s746
          %752 = dma.hbm_to_vmem [thread:$0]  %s745, 16384, %s747, %s736, 128, 128, 8
        $region64: #{tpu_custom_call.1} parent=19 // pred_fallthru
          _
        // Predicated region
        $region65: #{tpu_custom_call.1} parent=19 // pred_check
          %p753 = pneg %p389
        $region66: #{tpu_custom_call.1} parent=19 // pred_check_branch
          %755 = sbr.rel (%p753) target = $region68
        $region67: #{tpu_custom_call.1} parent=19 // pred_region
          %p756 = scmp.lt.s32.totalorder %s48, 1
          %s757 = scalar_select %p756, %s48, 1
          %s758 = smul.addr %s757, 2
          %s759 = scalar_lea.vmem %s12, %s758
        $region68: #{tpu_custom_call.1} parent=19 // pred_fallthru
          _
        // Predicated region
        $region69: #{tpu_custom_call.1} parent=19 // pred_check
          %p760 = pneg %p415
        $region70: #{tpu_custom_call.1} parent=19 // pred_check_branch
          %762 = sbr.rel (%p760) target = $region72
        $region71: #{tpu_custom_call.1} parent=19 // pred_region
          %p763 = scmp.lt.s32.totalorder %s48, 1
          %s764 = scalar_select %p763, %s48, 1
          %s765 = smul.addr %s764, 2
          %s766 = scalar_lea.vmem %s13, %s765
        $region72: #{tpu_custom_call.1} parent=19 // pred_fallthru
          _
        // Predicated region
        $region73: #{tpu_custom_call.1} parent=19 // pred_check
          %p767 = pneg %p441
        $region74: #{tpu_custom_call.1} parent=19 // pred_check_branch
          %769 = sbr.rel (%p767) target = $region76
        $region75: #{tpu_custom_call.1} parent=19 // pred_region
          %p770 = scmp.lt.s32.totalorder %s48, 1
          %s771 = scalar_select %p770, %s48, 1
          %s772 = smul.addr %s771, 2
          %s773 = scalar_lea.vmem %s14, %s772
        $region76: #{tpu_custom_call.1} parent=19 // pred_fallthru
          _
        // Predicated region
        $region77: #{tpu_custom_call.1} parent=19 // pred_check
          %p774 = pneg %p467
        $region78: #{tpu_custom_call.1} parent=19 // pred_check_branch
          %776 = sbr.rel (%p774) target = $region80
        $region79: #{tpu_custom_call.1} parent=19 // pred_region
          %p777 = scmp.lt.s32.totalorder %s48, 1
          %s778 = scalar_select %p777, %s48, 1
          %s779 = smul.addr %s778, 2
          %s780 = scalar_lea.vmem %s15, %s779
        $region80: #{tpu_custom_call.1} parent=19 // pred_fallthru
          _
        // Predicated region
        $region81: #{tpu_custom_call.1} parent=19 // pred_check
          %p781 = pneg %p493
        $region82: #{tpu_custom_call.1} parent=19 // pred_check_branch
          %783 = sbr.rel (%p781) target = $region84
        $region83: #{tpu_custom_call.1} parent=19 // pred_region
          %p784 = scmp.lt.s32.totalorder %s48, 1
          %s785 = scalar_select %p784, %s48, 1
          %s786 = smul.addr %s785, 2
          %s787 = scalar_lea.vmem %s16, %s786
        $region84: #{tpu_custom_call.1} parent=19 // pred_fallthru
          _
      $region20: #{tpu_custom_call.1} parent=5 // pred_fallthru
        _
      %p788 = scmp.le.s32.totalorder 1, %s41
      %p789 = scmp.lt.s32.totalorder %s41, 3
      %p790 = pnand %p788, %p789
      %p791 = pneg %p790
      // Predicated region
      $region85: #{tpu_custom_call.1} parent=5 // pred_check
        _
      $region86: #{tpu_custom_call.1} parent=5 // pred_check_branch
        %793 = sbr.rel (%p790) target = $region88
      $region87: #{tpu_custom_call.1} parent=5 // pred_region
        %s794 = ssub.s32 %s41, 1
        %s795 = sand.u32 %s68, 1
        %s796 = scalar_lea.sflag [#allocation4], %s795
        %s797 = sand.u32 %s68, 1
        %s798 = smul.addr %s797, 32
        %s799 = scalar_lea.vmem [#allocation3], %s798
        // Predicated region
        $region89: #{tpu_custom_call.1} parent=87 // pred_check
          %p800 = pneg %p81
        $region90: #{tpu_custom_call.1} parent=87 // pred_check_branch
          %802 = sbr.rel (%p800) target = $region92
        $region91: #{tpu_custom_call.1} parent=87 // pred_region
          %803 = dma.done %s796, 512
        $region92: #{tpu_custom_call.1} parent=87 // pred_fallthru
          _
        %s804 = sand.u32 %s46, 1
        %s805 = scalar_lea.sflag [#allocation7], %s804
        %s806 = sand.u32 %s96, 1
        %s807 = smul.addr %s806, 32
        %s808 = scalar_lea.vmem [#allocation6], %s807
        // Predicated region
        $region93: #{tpu_custom_call.1} parent=87 // pred_check
          %p809 = pneg %p109
        $region94: #{tpu_custom_call.1} parent=87 // pred_check_branch
          %811 = sbr.rel (%p809) target = $region96
        $region95: #{tpu_custom_call.1} parent=87 // pred_region
          %812 = dma.done %s805, 512
        $region96: #{tpu_custom_call.1} parent=87 // pred_fallthru
          _
        // Predicated region
        $region97: #{tpu_custom_call.1} parent=87 // pred_check
          %p813 = pneg %p135
        $region98: #{tpu_custom_call.1} parent=87 // pred_check_branch
          %815 = sbr.rel (%p813) target = $region100
        $region99: #{tpu_custom_call.1} parent=87 // pred_region
          %816 = dma.done [#allocation7], 32
        $region100: #{tpu_custom_call.1} parent=87 // pred_fallthru
          _
        %s817 = sand.u32 %s46, 1
        %s818 = scalar_lea.sflag [#allocation10], %s817
        %s819 = sand.u32 %s148, 1
        %s820 = smul.addr %s819, 256
        %s821 = scalar_lea.vmem [#allocation9], %s820
        // Predicated region
        $region101: #{tpu_custom_call.1} parent=87 // pred_check
          %p822 = pneg %p161
        $region102: #{tpu_custom_call.1} parent=87 // pred_check_branch
          %824 = sbr.rel (%p822) target = $region104
        $region103: #{tpu_custom_call.1} parent=87 // pred_region
          %825 = dma.done %s818, 4096
        $region104: #{tpu_custom_call.1} parent=87 // pred_fallthru
          _
        %s826 = sand.u32 %s46, 1
        %s827 = scalar_lea.sflag [#allocation10], %s826
        %s828 = sand.u32 %s200, 1
        %s829 = smul.addr %s828, 512
        %s830 = scalar_lea.vmem [#allocation11], %s829
        // Predicated region
        $region105: #{tpu_custom_call.1} parent=87 // pred_check
          %p831 = pneg %p213
        $region106: #{tpu_custom_call.1} parent=87 // pred_check_branch
          %833 = sbr.rel (%p831) target = $region108
        $region107: #{tpu_custom_call.1} parent=87 // pred_region
          %834 = dma.done %s827, 8192
        $region108: #{tpu_custom_call.1} parent=87 // pred_fallthru
          _
        %s835 = sand.u32 %s46, 1
        %s836 = scalar_lea.sflag [#allocation13], %s835
        %s837 = sand.u32 %s252, 1
        %s838 = smul.addr %s837, 2
        %s839 = scalar_lea.vmem [#allocation12], %s838
        // Predicated region
        $region109: #{tpu_custom_call.1} parent=87 // pred_check
          %p840 = pneg %p265
        $region110: #{tpu_custom_call.1} parent=87 // pred_check_branch
          %842 = sbr.rel (%p840) target = $region112
        $region111: #{tpu_custom_call.1} parent=87 // pred_region
          %843 = dma.done %s836, 32
        $region112: #{tpu_custom_call.1} parent=87 // pred_fallthru
          _
        %s844 = sand.u32 %s46, 1
        %s845 = scalar_lea.sflag [#allocation13], %s844
        %s846 = sand.u32 %s278, 1
        %s847 = smul.addr %s846, 2
        %s848 = scalar_lea.vmem [#allocation14], %s847
        // Predicated region
        $region113: #{tpu_custom_call.1} parent=87 // pred_check
          %p849 = pneg %p291
        $region114: #{tpu_custom_call.1} parent=87 // pred_check_branch
          %851 = sbr.rel (%p849) target = $region116
        $region115: #{tpu_custom_call.1} parent=87 // pred_region
          %852 = dma.done %s845, 32
        $region116: #{tpu_custom_call.1} parent=87 // pred_fallthru
          _
        %s853 = sand.u32 %s46, 1
        %s854 = scalar_lea.sflag [#allocation16], %s853
        %s855 = sand.u32 %s304, 1
        %s856 = smul.addr %s855, 1024
        %s857 = scalar_lea.vmem [#allocation15], %s856
        // Predicated region
        $region117: #{tpu_custom_call.1} parent=87 // pred_check
          %p858 = pneg %p317
        $region118: #{tpu_custom_call.1} parent=87 // pred_check_branch
          %860 = sbr.rel (%p858) target = $region120
        $region119: #{tpu_custom_call.1} parent=87 // pred_region
          %861 = dma.done %s854, 16384
        $region120: #{tpu_custom_call.1} parent=87 // pred_fallthru
          _
        %s862 = sand.u32 %s46, 1
        %s863 = scalar_lea.sflag [#allocation16], %s862
        %s864 = sand.u32 %s356, 1
        %s865 = smul.addr %s864, 1024
        %s866 = scalar_lea.vmem [#allocation17], %s865
        // Predicated region
        $region121: #{tpu_custom_call.1} parent=87 // pred_check
          %p867 = pneg %p369
        $region122: #{tpu_custom_call.1} parent=87 // pred_check_branch
          %869 = sbr.rel (%p867) target = $region124
        $region123: #{tpu_custom_call.1} parent=87 // pred_region
          %870 = dma.done %s863, 16384
        $region124: #{tpu_custom_call.1} parent=87 // pred_fallthru
          _
        %s871 = sand.u32 %s68, 1
        %s872 = scalar_lea.sflag [#allocation4], %s871
        %s873 = sand.u32 %s68, 1
        %s874 = smul.addr %s873, 32
        %s875 = scalar_lea.vmem [#allocation3], %s874
        %p876 = pneg %p81
        %p877 = pneg %p78
        %s878 = sand.u32 %s46, 1
        %s879 = scalar_lea.sflag [#allocation7], %s878
        %s880 = sand.u32 %s96, 1
        %s881 = smul.addr %s880, 32
        %s882 = scalar_lea.vmem [#allocation6], %s881
        %p883 = pneg %p109
        %p884 = pneg %p106
        %p885 = pneg %p135
        %p886 = pneg %p132
        %s887 = sand.u32 %s46, 1
        %s888 = scalar_lea.sflag [#allocation10], %s887
        %s889 = sand.u32 %s148, 1
        %s890 = smul.addr %s889, 256
        %s891 = scalar_lea.vmem [#allocation9], %s890
        %p892 = pneg %p161
        %p893 = pneg %p158
        %p894 = scmp.lt.s32.totalorder %s50, 1
        %s895 = scalar_select %p894, %s50, 1
        %s896 = smul.addr %s895, 2
        %s897 = scalar_lea.vmem %s4, %s896
        %p898 = pneg %p187
        %p899 = pneg %p184
        %s900 = sand.u32 %s46, 1
        %s901 = scalar_lea.sflag [#allocation10], %s900
        %s902 = sand.u32 %s200, 1
        %s903 = smul.addr %s902, 512
        %s904 = scalar_lea.vmem [#allocation11], %s903
        %p905 = pneg %p213
        %p906 = pneg %p210
        %p907 = scmp.lt.s32.totalorder %s50, 1
        %s908 = scalar_select %p907, %s50, 1
        %s909 = smul.addr %s908, 4
        %s910 = scalar_lea.vmem %s6, %s909
        %p911 = pneg %p239
        %p912 = pneg %p236
        %s913 = sand.u32 %s46, 1
        %s914 = scalar_lea.sflag [#allocation13], %s913
        %s915 = sand.u32 %s252, 1
        %s916 = smul.addr %s915, 2
        %s917 = scalar_lea.vmem [#allocation12], %s916
        %p918 = pneg %p265
        %p919 = pneg %p262
        %s920 = sand.u32 %s46, 1
        %s921 = scalar_lea.sflag [#allocation13], %s920
        %s922 = sand.u32 %s278, 1
        %s923 = smul.addr %s922, 2
        %s924 = scalar_lea.vmem [#allocation14], %s923
        %p925 = pneg %p291
        %p926 = pneg %p288
        %s927 = sand.u32 %s46, 1
        %s928 = scalar_lea.sflag [#allocation16], %s927
        %s929 = sand.u32 %s304, 1
        %s930 = smul.addr %s929, 1024
        %s931 = scalar_lea.vmem [#allocation15], %s930
        %p932 = pneg %p317
        %p933 = pneg %p314
        %p934 = scmp.lt.s32.totalorder %s50, 1
        %s935 = scalar_select %p934, %s50, 1
        %s936 = smul.addr %s935, 8
        %s937 = scalar_lea.vmem %s10, %s936
        %p938 = pneg %p343
        %p939 = pneg %p340
        %s940 = sand.u32 %s46, 1
        %s941 = scalar_lea.sflag [#allocation16], %s940
        %s942 = sand.u32 %s356, 1
        %s943 = smul.addr %s942, 1024
        %s944 = scalar_lea.vmem [#allocation17], %s943
        %p945 = pneg %p369
        %p946 = pneg %p366
        %p947 = scmp.lt.s32.totalorder %s50, 1
        %s948 = scalar_select %p947, %s50, 1
        %s949 = smul.addr %s948, 2
        %s950 = scalar_lea.vmem %s12, %s949
        %p951 = pneg %p395
        %p952 = pneg %p392
        %p953 = scmp.lt.s32.totalorder %s50, 1
        %s954 = scalar_select %p953, %s50, 1
        %s955 = smul.addr %s954, 2
        %s956 = scalar_lea.vmem %s13, %s955
        %p957 = pneg %p421
        %p958 = pneg %p418
        %p959 = scmp.lt.s32.totalorder %s50, 1
        %s960 = scalar_select %p959, %s50, 1
        %s961 = smul.addr %s960, 2
        %s962 = scalar_lea.vmem %s14, %s961
        %p963 = pneg %p447
        %p964 = pneg %p444
        %p965 = scmp.lt.s32.totalorder %s50, 1
        %s966 = scalar_select %p965, %s50, 1
        %s967 = smul.addr %s966, 2
        %s968 = scalar_lea.vmem %s15, %s967
        %p969 = pneg %p473
        %p970 = pneg %p470
        %p971 = scmp.lt.s32.totalorder %s50, 1
        %s972 = scalar_select %p971, %s50, 1
        %s973 = smul.addr %s972, 2
        %s974 = scalar_lea.vmem %s16, %s973
        %p975 = pneg %p499
        %p976 = pneg %p496
        %p977 = pneg %p527
        %p978 = pneg %p524
        %s979 = sand.u32 %s514, 1
        %s980 = scalar_lea.sflag [#allocation5], %s979
        %s981 = sand.u32 %s514, 1
        %s982 = smul.addr %s981, 32
        %s983 = scalar_lea.vmem [#allocation18], %s982
        %s984 = smul.u32 2, %s51
        %s985 = smul.u32 2, %s51
        %s986 = smul.u32 2, %s51
        %p987 = scmp.lt.s32.totalorder %s50, 1
        %s988 = scalar_select %p987, %s50, 1
        %s989 = smul.addr %s988, 2
        %s990 = scalar_lea.vmem %s4, %s989
        %p991 = scmp.lt.s32.totalorder %s50, 1
        %s992 = scalar_select %p991, %s50, 1
        %s993 = smul.addr %s992, 4
        %s994 = scalar_lea.vmem %s6, %s993
        %p995 = scmp.lt.s32.totalorder %s50, 1
        %s996 = scalar_select %p995, %s50, 1
        %s997 = smul.addr %s996, 8
        %s998 = scalar_lea.vmem %s10, %s997
        %p999 = scmp.lt.s32.totalorder %s50, 1
        %s1000 = scalar_select %p999, %s50, 1
        %s1001 = smul.addr %s1000, 2
        %s1002 = scalar_lea.vmem %s12, %s1001
        %p1003 = scmp.lt.s32.totalorder %s50, 1
        %s1004 = scalar_select %p1003, %s50, 1
        %s1005 = smul.addr %s1004, 2
        %s1006 = scalar_lea.vmem %s13, %s1005
        %p1007 = scmp.lt.s32.totalorder %s50, 1
        %s1008 = scalar_select %p1007, %s50, 1
        %s1009 = smul.addr %s1008, 2
        %s1010 = scalar_lea.vmem %s14, %s1009
        %p1011 = scmp.lt.s32.totalorder %s50, 1
        %s1012 = scalar_select %p1011, %s50, 1
        %s1013 = smul.addr %s1012, 2
        %s1014 = scalar_lea.vmem %s15, %s1013
        %p1015 = scmp.lt.s32.totalorder %s50, 1
        %s1016 = scalar_select %p1015, %s50, 1
        %s1017 = smul.addr %s1016, 2
        %s1018 = scalar_lea.vmem %s16, %s1017
        %s1019 = smul.u32 2, %s51
        %v1020 = vld [vmem:[%s799] sm:$0xff]
        %v1021 = vld [vmem:[%s799 + $0x8] sm:$0xff]
        %v1022 = vld [vmem:[%s799 + $0x10] sm:$0xff]
        %v1023 = vld [vmem:[%s799 + $0x18] sm:$0xff]
        %v1024 = vld [vmem:[%s808] sm:$0xff]
        %v1025 = vld [vmem:[%s808 + $0x8] sm:$0xff]
        %v1026 = vld [vmem:[%s808 + $0x10] sm:$0xff]
        %v1027 = vld [vmem:[%s808 + $0x18] sm:$0xff]
        %v1028 = vpack.c.bf16 %v1022, %v1020
        %v1029 = vpack.c.bf16 %v1023, %v1021
        %v1030 = vld [vmem:[%s821] sm:$0xff]
        %v1031 = vld [vmem:[%s821 + $0x8] sm:$0xff]
        %v1032 = vld [vmem:[%s821 + $0x10] sm:$0xff]
        %v1033 = vld [vmem:[%s821 + $0x18] sm:$0xff]
        %v1034 = vld [vmem:[%s821 + $0x20] sm:$0xff]
        %v1035 = vld [vmem:[%s821 + $0x28] sm:$0xff]
        %v1036 = vld [vmem:[%s821 + $0x30] sm:$0xff]
        %v1037 = vld [vmem:[%s821 + $0x38] sm:$0xff]
        %v1038 = vld [vmem:[%s821 + $0x40] sm:$0xff]
        %v1039 = vld [vmem:[%s821 + $0x48] sm:$0xff]
        %v1040 = vld [vmem:[%s821 + $0x50] sm:$0xff]
        %v1041 = vld [vmem:[%s821 + $0x58] sm:$0xff]
        %v1042 = vld [vmem:[%s821 + $0x60] sm:$0xff]
        %v1043 = vld [vmem:[%s821 + $0x68] sm:$0xff]
        %v1044 = vld [vmem:[%s821 + $0x70] sm:$0xff]
        %v1045 = vld [vmem:[%s821 + $0x78] sm:$0xff]
        %v1046 = vld [vmem:[%s821 + $0x80] sm:$0xff]
        %v1047 = vld [vmem:[%s821 + $0x88] sm:$0xff]
        %v1048 = vld [vmem:[%s821 + $0x90] sm:$0xff]
        %v1049 = vld [vmem:[%s821 + $0x98] sm:$0xff]
        %v1050 = vld [vmem:[%s821 + $0xa0] sm:$0xff]
        %v1051 = vld [vmem:[%s821 + $0xa8] sm:$0xff]
        %v1052 = vld [vmem:[%s821 + $0xb0] sm:$0xff]
        %v1053 = vld [vmem:[%s821 + $0xb8] sm:$0xff]
        %v1054 = vld [vmem:[%s821 + $0xc0] sm:$0xff]
        %v1055 = vld [vmem:[%s821 + $0xc8] sm:$0xff]
        %v1056 = vld [vmem:[%s821 + $0xd0] sm:$0xff]
        %v1057 = vld [vmem:[%s821 + $0xd8] sm:$0xff]
        %v1058 = vld [vmem:[%s821 + $0xe0] sm:$0xff]
        %v1059 = vld [vmem:[%s821 + $0xe8] sm:$0xff]
        %v1060 = vld [vmem:[%s821 + $0xf0] sm:$0xff]
        %v1061 = vld [vmem:[%s821 + $0xf8] sm:$0xff]
        %v1062 = vld [vmem:[%s990] sm:$0x3]
        %v1064 = vlaneseq
        %v1065 = vshrl.u32 %v1064, 7
        %v1066 = vsub.s32 0, %v1065
        %v1067 = vrot.slane %v1062, %v1066
        %v1068 = vlaneseq
        %v1069 = vshrl.u32 %v1068, 7
        %v1070 = vsub.s32 1, %v1069
        %v1071 = vrot.slane %v1062, %v1070
        %v1106 = vunpack.c.l.b16 %v1030
        %v1107 = vunpack.c.h.b16 %v1030
        %v1108 = vunpack.c.l.b16 %v1031
        %v1109 = vunpack.c.h.b16 %v1031
        %v1110 = vunpack.c.l.b16 %v1032
        %v1111 = vunpack.c.h.b16 %v1032
        %v1112 = vunpack.c.l.b16 %v1033
        %v1113 = vunpack.c.h.b16 %v1033
        %v1114 = vunpack.c.l.b16 %v1034
        %v1115 = vunpack.c.h.b16 %v1034
        %v1116 = vunpack.c.l.b16 %v1035
        %v1117 = vunpack.c.h.b16 %v1035
        %v1118 = vunpack.c.l.b16 %v1036
        %v1119 = vunpack.c.h.b16 %v1036
        %v1120 = vunpack.c.l.b16 %v1037
        %v1121 = vunpack.c.h.b16 %v1037
        %v1122 = vunpack.c.l.b16 %v1038
        %v1123 = vunpack.c.h.b16 %v1038
        %v1124 = vunpack.c.l.b16 %v1039
        %v1125 = vunpack.c.h.b16 %v1039
        %v1126 = vunpack.c.l.b16 %v1040
        %v1127 = vunpack.c.h.b16 %v1040
        %v1128 = vunpack.c.l.b16 %v1041
        %v1129 = vunpack.c.h.b16 %v1041
        %v1130 = vunpack.c.l.b16 %v1042
        %v1131 = vunpack.c.h.b16 %v1042
        %v1132 = vunpack.c.l.b16 %v1043
        %v1133 = vunpack.c.h.b16 %v1043
        %v1134 = vunpack.c.l.b16 %v1044
        %v1135 = vunpack.c.h.b16 %v1044
        %v1136 = vunpack.c.l.b16 %v1045
        %v1137 = vunpack.c.h.b16 %v1045
        %v1138 = vunpack.c.l.b16 %v1046
        %v1139 = vunpack.c.h.b16 %v1046
        %v1140 = vunpack.c.l.b16 %v1047
        %v1141 = vunpack.c.h.b16 %v1047
        %v1142 = vunpack.c.l.b16 %v1048
        %v1143 = vunpack.c.h.b16 %v1048
        %v1144 = vunpack.c.l.b16 %v1049
        %v1145 = vunpack.c.h.b16 %v1049
        %v1146 = vunpack.c.l.b16 %v1050
        %v1147 = vunpack.c.h.b16 %v1050
        %v1148 = vunpack.c.l.b16 %v1051
        %v1149 = vunpack.c.h.b16 %v1051
        %v1150 = vunpack.c.l.b16 %v1052
        %v1151 = vunpack.c.h.b16 %v1052
        %v1152 = vunpack.c.l.b16 %v1053
        %v1153 = vunpack.c.h.b16 %v1053
        %v1154 = vunpack.c.l.b16 %v1054
        %v1155 = vunpack.c.h.b16 %v1054
        %v1156 = vunpack.c.l.b16 %v1055
        %v1157 = vunpack.c.h.b16 %v1055
        %v1158 = vunpack.c.l.b16 %v1056
        %v1159 = vunpack.c.h.b16 %v1056
        %v1160 = vunpack.c.l.b16 %v1057
        %v1161 = vunpack.c.h.b16 %v1057
        %v1162 = vunpack.c.l.b16 %v1058
        %v1163 = vunpack.c.h.b16 %v1058
        %v1164 = vunpack.c.l.b16 %v1059
        %v1165 = vunpack.c.h.b16 %v1059
        %v1166 = vunpack.c.l.b16 %v1060
        %v1167 = vunpack.c.h.b16 %v1060
        %v1168 = vunpack.c.l.b16 %v1061
        %v1169 = vunpack.c.h.b16 %v1061
        %v1170 = vpack.c.b16 %v1108, %v1106
        %v1171 = vpack.c.b16 %v1109, %v1107
        %v1172 = vpack.c.b16 %v1112, %v1110
        %v1173 = vpack.c.b16 %v1113, %v1111
        %v1174 = vpack.c.b16 %v1116, %v1114
        %v1175 = vpack.c.b16 %v1117, %v1115
        %v1176 = vpack.c.b16 %v1120, %v1118
        %v1177 = vpack.c.b16 %v1121, %v1119
        %v1178 = vpack.c.b16 %v1124, %v1122
        %v1179 = vpack.c.b16 %v1125, %v1123
        %v1180 = vpack.c.b16 %v1128, %v1126
        %v1181 = vpack.c.b16 %v1129, %v1127
        %v1182 = vpack.c.b16 %v1132, %v1130
        %v1183 = vpack.c.b16 %v1133, %v1131
        %v1184 = vpack.c.b16 %v1136, %v1134
        %v1185 = vpack.c.b16 %v1137, %v1135
        %v1186 = vpack.c.b16 %v1140, %v1138
        %v1187 = vpack.c.b16 %v1141, %v1139
        %v1188 = vpack.c.b16 %v1144, %v1142
        %v1189 = vpack.c.b16 %v1145, %v1143
        %v1190 = vpack.c.b16 %v1148, %v1146
        %v1191 = vpack.c.b16 %v1149, %v1147
        %v1192 = vpack.c.b16 %v1152, %v1150
        %v1193 = vpack.c.b16 %v1153, %v1151
        %v1194 = vpack.c.b16 %v1156, %v1154
        %v1195 = vpack.c.b16 %v1157, %v1155
        %v1196 = vpack.c.b16 %v1160, %v1158
        %v1197 = vpack.c.b16 %v1161, %v1159
        %v1198 = vpack.c.b16 %v1164, %v1162
        %v1199 = vpack.c.b16 %v1165, %v1163
        %v1200 = vpack.c.b16 %v1168, %v1166
        %v1201 = vpack.c.b16 %v1169, %v1167
        %1234 = vmatprep.subr.bf16.mxu0 %v1171
        %1235 = vmatpush1.bf16.msra.mxu0 %v1170
        %1236 = vmatprep.subr.bf16.mxu0 %v1173
        %1237 = vmatpush1.bf16.msra.mxu0 %v1172
        %1238 = vmatprep.subr.bf16.mxu0 %v1175
        %1239 = vmatpush1.bf16.msra.mxu0 %v1174
        %1240 = vmatprep.subr.bf16.mxu0 %v1177
        %1241 = vmatpush1.bf16.msra.mxu0 %v1176
        %1242 = vmatprep.subr.bf16.mxu0 %v1179
        %1243 = vmatpush1.bf16.msra.mxu0 %v1178
        %1244 = vmatprep.subr.bf16.mxu0 %v1181
        %1245 = vmatpush1.bf16.msra.mxu0 %v1180
        %1246 = vmatprep.subr.bf16.mxu0 %v1183
        %1247 = vmatpush1.bf16.msra.mxu0 %v1182
        %1248 = vmatprep.subr.bf16.mxu0 %v1185
        %1249 = vmatpush1.bf16.msra.mxu0 %v1184
        %1250 = vmatprep.subr.bf16.mxu0 %v1187
        %1251 = vmatpush1.bf16.msra.mxu0 %v1186
        %1252 = vmatprep.subr.bf16.mxu0 %v1189
        %1253 = vmatpush1.bf16.msra.mxu0 %v1188
        %1254 = vmatprep.subr.bf16.mxu0 %v1191
        %1255 = vmatpush1.bf16.msra.mxu0 %v1190
        %1256 = vmatprep.subr.bf16.mxu0 %v1193
        %1257 = vmatpush1.bf16.msra.mxu0 %v1192
        %1258 = vmatprep.subr.bf16.mxu0 %v1195
        %1259 = vmatpush1.bf16.msra.mxu0 %v1194
        %1260 = vmatprep.subr.bf16.mxu0 %v1197
        %1261 = vmatpush1.bf16.msra.mxu0 %v1196
        %1262 = vmatprep.subr.bf16.mxu0 %v1199
        %1263 = vmatpush1.bf16.msra.mxu0 %v1198
        %1264 = vmatprep.subr.bf16.mxu0 %v1201
        %1265 = vmatpush1.bf16.msra.mxu0 %v1200
        %1266 = vmatprep.mubr.bf16.mxu0 %v1029
        %1267 = vmatmul.mubr.bf16.gmra.mrb[0].mxu0 %v1028
        %v1268 = vpop.f32.mrb[0].mxu0
        %v1269 = vadd.f32 %v1067, %v1268
        %v1270 = vpop.f32.mrb[0].mxu0
        %v1271 = vadd.f32 %v1071, %v1270
        %v1272 = vpop.f32.mrb[0].mxu0
        %v1273 = vadd.f32 %v1067, %v1272
        %v1274 = vpop.f32.mrb[0].mxu0
        %v1275 = vadd.f32 %v1071, %v1274
        %1276 = vdwg.mxu0
        %v1277 = vpack.c.bf16 %v1026, %v1024
        %v1278 = vpack.c.bf16 %v1027, %v1025
        %v1279 = vld [vmem:[%s830] sm:$0xff]
        %v1280 = vld [vmem:[%s830 + $0x8] sm:$0xff]
        %v1281 = vld [vmem:[%s830 + $0x10] sm:$0xff]
        %v1282 = vld [vmem:[%s830 + $0x18] sm:$0xff]
        %v1283 = vld [vmem:[%s830 + $0x20] sm:$0xff]
        %v1284 = vld [vmem:[%s830 + $0x28] sm:$0xff]
        %v1285 = vld [vmem:[%s830 + $0x30] sm:$0xff]
        %v1286 = vld [vmem:[%s830 + $0x38] sm:$0xff]
        %v1287 = vld [vmem:[%s830 + $0x40] sm:$0xff]
        %v1288 = vld [vmem:[%s830 + $0x48] sm:$0xff]
        %v1289 = vld [vmem:[%s830 + $0x50] sm:$0xff]
        %v1290 = vld [vmem:[%s830 + $0x58] sm:$0xff]
        %v1291 = vld [vmem:[%s830 + $0x60] sm:$0xff]
        %v1292 = vld [vmem:[%s830 + $0x68] sm:$0xff]
        %v1293 = vld [vmem:[%s830 + $0x70] sm:$0xff]
        %v1294 = vld [vmem:[%s830 + $0x78] sm:$0xff]
        %v1295 = vld [vmem:[%s830 + $0x80] sm:$0xff]
        %v1296 = vld [vmem:[%s830 + $0x88] sm:$0xff]
        %v1297 = vld [vmem:[%s830 + $0x90] sm:$0xff]
        %v1298 = vld [vmem:[%s830 + $0x98] sm:$0xff]
        %v1299 = vld [vmem:[%s830 + $0xa0] sm:$0xff]
        %v1300 = vld [vmem:[%s830 + $0xa8] sm:$0xff]
        %v1301 = vld [vmem:[%s830 + $0xb0] sm:$0xff]
        %v1302 = vld [vmem:[%s830 + $0xb8] sm:$0xff]
        %v1303 = vld [vmem:[%s830 + $0xc0] sm:$0xff]
        %v1304 = vld [vmem:[%s830 + $0xc8] sm:$0xff]
        %v1305 = vld [vmem:[%s830 + $0xd0] sm:$0xff]
        %v1306 = vld [vmem:[%s830 + $0xd8] sm:$0xff]
        %v1307 = vld [vmem:[%s830 + $0xe0] sm:$0xff]
        %v1308 = vld [vmem:[%s830 + $0xe8] sm:$0xff]
        %v1309 = vld [vmem:[%s830 + $0xf0] sm:$0xff]
        %v1310 = vld [vmem:[%s830 + $0xf8] sm:$0xff]
        %v1311 = vld [vmem:[%s830 + $0x100] sm:$0xff]
        %v1312 = vld [vmem:[%s830 + $0x108] sm:$0xff]
        %v1313 = vld [vmem:[%s830 + $0x110] sm:$0xff]
        %v1314 = vld [vmem:[%s830 + $0x118] sm:$0xff]
        %v1315 = vld [vmem:[%s830 + $0x120] sm:$0xff]
        %v1316 = vld [vmem:[%s830 + $0x128] sm:$0xff]
        %v1317 = vld [vmem:[%s830 + $0x130] sm:$0xff]
        %v1318 = vld [vmem:[%s830 + $0x138] sm:$0xff]
        %v1319 = vld [vmem:[%s830 + $0x140] sm:$0xff]
        %v1320 = vld [vmem:[%s830 + $0x148] sm:$0xff]
        %v1321 = vld [vmem:[%s830 + $0x150] sm:$0xff]
        %v1322 = vld [vmem:[%s830 + $0x158] sm:$0xff]
        %v1323 = vld [vmem:[%s830 + $0x160] sm:$0xff]
        %v1324 = vld [vmem:[%s830 + $0x168] sm:$0xff]
        %v1325 = vld [vmem:[%s830 + $0x170] sm:$0xff]
        %v1326 = vld [vmem:[%s830 + $0x178] sm:$0xff]
        %v1327 = vld [vmem:[%s830 + $0x180] sm:$0xff]
        %v1328 = vld [vmem:[%s830 + $0x188] sm:$0xff]
        %v1329 = vld [vmem:[%s830 + $0x190] sm:$0xff]
        %v1330 = vld [vmem:[%s830 + $0x198] sm:$0xff]
        %v1331 = vld [vmem:[%s830 + $0x1a0] sm:$0xff]
        %v1332 = vld [vmem:[%s830 + $0x1a8] sm:$0xff]
        %v1333 = vld [vmem:[%s830 + $0x1b0] sm:$0xff]
        %v1334 = vld [vmem:[%s830 + $0x1b8] sm:$0xff]
        %v1335 = vld [vmem:[%s830 + $0x1c0] sm:$0xff]
        %v1336 = vld [vmem:[%s830 + $0x1c8] sm:$0xff]
        %v1337 = vld [vmem:[%s830 + $0x1d0] sm:$0xff]
        %v1338 = vld [vmem:[%s830 + $0x1d8] sm:$0xff]
        %v1339 = vld [vmem:[%s830 + $0x1e0] sm:$0xff]
        %v1340 = vld [vmem:[%s830 + $0x1e8] sm:$0xff]
        %v1341 = vld [vmem:[%s830 + $0x1f0] sm:$0xff]
        %v1342 = vld [vmem:[%s830 + $0x1f8] sm:$0xff]
        %v1343 = vld [vmem:[%s994] sm:$0xf]
        %v1345 = vlaneseq
        %v1346 = vshrl.u32 %v1345, 7
        %v1347 = vsub.s32 0, %v1346
        %v1348 = vrot.slane %v1343, %v1347
        %v1349 = vlaneseq
        %v1350 = vshrl.u32 %v1349, 7
        %v1351 = vsub.s32 1, %v1350
        %v1352 = vrot.slane %v1343, %v1351
        %v1353 = vlaneseq
        %v1354 = vshrl.u32 %v1353, 7
        %v1355 = vsub.s32 2, %v1354
        %v1356 = vrot.slane %v1343, %v1355
        %v1357 = vlaneseq
        %v1358 = vshrl.u32 %v1357, 7
        %v1359 = vsub.s32 3, %v1358
        %v1360 = vrot.slane %v1343, %v1359
        %v1429 = vunpack.c.l.b16 %v1279
        %v1430 = vunpack.c.h.b16 %v1279
        %v1431 = vunpack.c.l.b16 %v1280
        %v1432 = vunpack.c.h.b16 %v1280
        %v1433 = vunpack.c.l.b16 %v1281
        %v1434 = vunpack.c.h.b16 %v1281
        %v1435 = vunpack.c.l.b16 %v1282
        %v1436 = vunpack.c.h.b16 %v1282
        %v1437 = vunpack.c.l.b16 %v1283
        %v1438 = vunpack.c.h.b16 %v1283
        %v1439 = vunpack.c.l.b16 %v1284
        %v1440 = vunpack.c.h.b16 %v1284
        %v1441 = vunpack.c.l.b16 %v1285
        %v1442 = vunpack.c.h.b16 %v1285
        %v1443 = vunpack.c.l.b16 %v1286
        %v1444 = vunpack.c.h.b16 %v1286
        %v1445 = vunpack.c.l.b16 %v1287
        %v1446 = vunpack.c.h.b16 %v1287
        %v1447 = vunpack.c.l.b16 %v1288
        %v1448 = vunpack.c.h.b16 %v1288
        %v1449 = vunpack.c.l.b16 %v1289
        %v1450 = vunpack.c.h.b16 %v1289
        %v1451 = vunpack.c.l.b16 %v1290
        %v1452 = vunpack.c.h.b16 %v1290
        %v1453 = vunpack.c.l.b16 %v1291
        %v1454 = vunpack.c.h.b16 %v1291
        %v1455 = vunpack.c.l.b16 %v1292
        %v1456 = vunpack.c.h.b16 %v1292
        %v1457 = vunpack.c.l.b16 %v1293
        %v1458 = vunpack.c.h.b16 %v1293
        %v1459 = vunpack.c.l.b16 %v1294
        %v1460 = vunpack.c.h.b16 %v1294
        %v1461 = vunpack.c.l.b16 %v1295
        %v1462 = vunpack.c.h.b16 %v1295
        %v1463 = vunpack.c.l.b16 %v1296
        %v1464 = vunpack.c.h.b16 %v1296
        %v1465 = vunpack.c.l.b16 %v1297
        %v1466 = vunpack.c.h.b16 %v1297
        %v1467 = vunpack.c.l.b16 %v1298
        %v1468 = vunpack.c.h.b16 %v1298
        %v1469 = vunpack.c.l.b16 %v1299
        %v1470 = vunpack.c.h.b16 %v1299
        %v1471 = vunpack.c.l.b16 %v1300
        %v1472 = vunpack.c.h.b16 %v1300
        %v1473 = vunpack.c.l.b16 %v1301
        %v1474 = vunpack.c.h.b16 %v1301
        %v1475 = vunpack.c.l.b16 %v1302
        %v1476 = vunpack.c.h.b16 %v1302
        %v1477 = vunpack.c.l.b16 %v1303
        %v1478 = vunpack.c.h.b16 %v1303
        %v1479 = vunpack.c.l.b16 %v1304
        %v1480 = vunpack.c.h.b16 %v1304
        %v1481 = vunpack.c.l.b16 %v1305
        %v1482 = vunpack.c.h.b16 %v1305
        %v1483 = vunpack.c.l.b16 %v1306
        %v1484 = vunpack.c.h.b16 %v1306
        %v1485 = vunpack.c.l.b16 %v1307
        %v1486 = vunpack.c.h.b16 %v1307
        %v1487 = vunpack.c.l.b16 %v1308
        %v1488 = vunpack.c.h.b16 %v1308
        %v1489 = vunpack.c.l.b16 %v1309
        %v1490 = vunpack.c.h.b16 %v1309
        %v1491 = vunpack.c.l.b16 %v1310
        %v1492 = vunpack.c.h.b16 %v1310
        %v1493 = vunpack.c.l.b16 %v1311
        %v1494 = vunpack.c.h.b16 %v1311
        %v1495 = vunpack.c.l.b16 %v1312
        %v1496 = vunpack.c.h.b16 %v1312
        %v1497 = vunpack.c.l.b16 %v1313
        %v1498 = vunpack.c.h.b16 %v1313
        %v1499 = vunpack.c.l.b16 %v1314
        %v1500 = vunpack.c.h.b16 %v1314
        %v1501 = vunpack.c.l.b16 %v1315
        %v1502 = vunpack.c.h.b16 %v1315
        %v1503 = vunpack.c.l.b16 %v1316
        %v1504 = vunpack.c.h.b16 %v1316
        %v1505 = vunpack.c.l.b16 %v1317
        %v1506 = vunpack.c.h.b16 %v1317
        %v1507 = vunpack.c.l.b16 %v1318
        %v1508 = vunpack.c.h.b16 %v1318
        %v1509 = vunpack.c.l.b16 %v1319
        %v1510 = vunpack.c.h.b16 %v1319
        %v1511 = vunpack.c.l.b16 %v1320
        %v1512 = vunpack.c.h.b16 %v1320
        %v1513 = vunpack.c.l.b16 %v1321
        %v1514 = vunpack.c.h.b16 %v1321
        %v1515 = vunpack.c.l.b16 %v1322
        %v1516 = vunpack.c.h.b16 %v1322
        %v1517 = vunpack.c.l.b16 %v1323
        %v1518 = vunpack.c.h.b16 %v1323
        %v1519 = vunpack.c.l.b16 %v1324
        %v1520 = vunpack.c.h.b16 %v1324
        %v1521 = vunpack.c.l.b16 %v1325
        %v1522 = vunpack.c.h.b16 %v1325
        %v1523 = vunpack.c.l.b16 %v1326
        %v1524 = vunpack.c.h.b16 %v1326
        %v1525 = vunpack.c.l.b16 %v1327
        %v1526 = vunpack.c.h.b16 %v1327
        %v1527 = vunpack.c.l.b16 %v1328
        %v1528 = vunpack.c.h.b16 %v1328
        %v1529 = vunpack.c.l.b16 %v1329
        %v1530 = vunpack.c.h.b16 %v1329
        %v1531 = vunpack.c.l.b16 %v1330
        %v1532 = vunpack.c.h.b16 %v1330
        %v1533 = vunpack.c.l.b16 %v1331
        %v1534 = vunpack.c.h.b16 %v1331
        %v1535 = vunpack.c.l.b16 %v1332
        %v1536 = vunpack.c.h.b16 %v1332
        %v1537 = vunpack.c.l.b16 %v1333
        %v1538 = vunpack.c.h.b16 %v1333
        %v1539 = vunpack.c.l.b16 %v1334
        %v1540 = vunpack.c.h.b16 %v1334
        %v1541 = vunpack.c.l.b16 %v1335
        %v1542 = vunpack.c.h.b16 %v1335
        %v1543 = vunpack.c.l.b16 %v1336
        %v1544 = vunpack.c.h.b16 %v1336
        %v1545 = vunpack.c.l.b16 %v1337
        %v1546 = vunpack.c.h.b16 %v1337
        %v1547 = vunpack.c.l.b16 %v1338
        %v1548 = vunpack.c.h.b16 %v1338
        %v1549 = vunpack.c.l.b16 %v1339
        %v1550 = vunpack.c.h.b16 %v1339
        %v1551 = vunpack.c.l.b16 %v1340
        %v1552 = vunpack.c.h.b16 %v1340
        %v1553 = vunpack.c.l.b16 %v1341
        %v1554 = vunpack.c.h.b16 %v1341
        %v1555 = vunpack.c.l.b16 %v1342
        %v1556 = vunpack.c.h.b16 %v1342
        %v1557 = vpack.c.b16 %v1433, %v1429
        %v1558 = vpack.c.b16 %v1434, %v1430
        %v1559 = vpack.c.b16 %v1435, %v1431
        %v1560 = vpack.c.b16 %v1436, %v1432
        %v1561 = vpack.c.b16 %v1441, %v1437
        %v1562 = vpack.c.b16 %v1442, %v1438
        %v1563 = vpack.c.b16 %v1443, %v1439
        %v1564 = vpack.c.b16 %v1444, %v1440
        %v1565 = vpack.c.b16 %v1449, %v1445
        %v1566 = vpack.c.b16 %v1450, %v1446
        %v1567 = vpack.c.b16 %v1451, %v1447
        %v1568 = vpack.c.b16 %v1452, %v1448
        %v1569 = vpack.c.b16 %v1457, %v1453
        %v1570 = vpack.c.b16 %v1458, %v1454
        %v1571 = vpack.c.b16 %v1459, %v1455
        %v1572 = vpack.c.b16 %v1460, %v1456
        %v1573 = vpack.c.b16 %v1465, %v1461
        %v1574 = vpack.c.b16 %v1466, %v1462
        %v1575 = vpack.c.b16 %v1467, %v1463
        %v1576 = vpack.c.b16 %v1468, %v1464
        %v1577 = vpack.c.b16 %v1473, %v1469
        %v1578 = vpack.c.b16 %v1474, %v1470
        %v1579 = vpack.c.b16 %v1475, %v1471
        %v1580 = vpack.c.b16 %v1476, %v1472
        %v1581 = vpack.c.b16 %v1481, %v1477
        %v1582 = vpack.c.b16 %v1482, %v1478
        %v1583 = vpack.c.b16 %v1483, %v1479
        %v1584 = vpack.c.b16 %v1484, %v1480
        %v1585 = vpack.c.b16 %v1489, %v1485
        %v1586 = vpack.c.b16 %v1490, %v1486
        %v1587 = vpack.c.b16 %v1491, %v1487
        %v1588 = vpack.c.b16 %v1492, %v1488
        %v1589 = vpack.c.b16 %v1497, %v1493
        %v1590 = vpack.c.b16 %v1498, %v1494
        %v1591 = vpack.c.b16 %v1499, %v1495
        %v1592 = vpack.c.b16 %v1500, %v1496
        %v1593 = vpack.c.b16 %v1505, %v1501
        %v1594 = vpack.c.b16 %v1506, %v1502
        %v1595 = vpack.c.b16 %v1507, %v1503
        %v1596 = vpack.c.b16 %v1508, %v1504
        %v1597 = vpack.c.b16 %v1513, %v1509
        %v1598 = vpack.c.b16 %v1514, %v1510
        %v1599 = vpack.c.b16 %v1515, %v1511
        %v1600 = vpack.c.b16 %v1516, %v1512
        %v1601 = vpack.c.b16 %v1521, %v1517
        %v1602 = vpack.c.b16 %v1522, %v1518
        %v1603 = vpack.c.b16 %v1523, %v1519
        %v1604 = vpack.c.b16 %v1524, %v1520
        %v1605 = vpack.c.b16 %v1529, %v1525
        %v1606 = vpack.c.b16 %v1530, %v1526
        %v1607 = vpack.c.b16 %v1531, %v1527
        %v1608 = vpack.c.b16 %v1532, %v1528
        %v1609 = vpack.c.b16 %v1537, %v1533
        %v1610 = vpack.c.b16 %v1538, %v1534
        %v1611 = vpack.c.b16 %v1539, %v1535
        %v1612 = vpack.c.b16 %v1540, %v1536
        %v1613 = vpack.c.b16 %v1545, %v1541
        %v1614 = vpack.c.b16 %v1546, %v1542
        %v1615 = vpack.c.b16 %v1547, %v1543
        %v1616 = vpack.c.b16 %v1548, %v1544
        %v1617 = vpack.c.b16 %v1553, %v1549
        %v1618 = vpack.c.b16 %v1554, %v1550
        %v1619 = vpack.c.b16 %v1555, %v1551
        %v1620 = vpack.c.b16 %v1556, %v1552
        %1685 = vmatprep.subr.bf16.mxu0 %v1558
        %1686 = vmatpush1.bf16.msra.mxu0 %v1557
        %1687 = vmatprep.subr.bf16.mxu0 %v1562
        %1688 = vmatpush1.bf16.msra.mxu0 %v1561
        %1689 = vmatprep.subr.bf16.mxu0 %v1566
        %1690 = vmatpush1.bf16.msra.mxu0 %v1565
        %1691 = vmatprep.subr.bf16.mxu0 %v1570
        %1692 = vmatpush1.bf16.msra.mxu0 %v1569
        %1693 = vmatprep.subr.bf16.mxu0 %v1574
        %1694 = vmatpush1.bf16.msra.mxu0 %v1573
        %1695 = vmatprep.subr.bf16.mxu0 %v1578
        %1696 = vmatpush1.bf16.msra.mxu0 %v1577
        %1697 = vmatprep.subr.bf16.mxu0 %v1582
        %1698 = vmatpush1.bf16.msra.mxu0 %v1581
        %1699 = vmatprep.subr.bf16.mxu0 %v1586
        %1700 = vmatpush1.bf16.msra.mxu0 %v1585
        %1701 = vmatprep.subr.bf16.mxu0 %v1590
        %1702 = vmatpush1.bf16.msra.mxu0 %v1589
        %1703 = vmatprep.subr.bf16.mxu0 %v1594
        %1704 = vmatpush1.bf16.msra.mxu0 %v1593
        %1705 = vmatprep.subr.bf16.mxu0 %v1598
        %1706 = vmatpush1.bf16.msra.mxu0 %v1597
        %1707 = vmatprep.subr.bf16.mxu0 %v1602
        %1708 = vmatpush1.bf16.msra.mxu0 %v1601
        %1709 = vmatprep.subr.bf16.mxu0 %v1606
        %1710 = vmatpush1.bf16.msra.mxu0 %v1605
        %1711 = vmatprep.subr.bf16.mxu0 %v1610
        %1712 = vmatpush1.bf16.msra.mxu0 %v1609
        %1713 = vmatprep.subr.bf16.mxu0 %v1614
        %1714 = vmatpush1.bf16.msra.mxu0 %v1613
        %1715 = vmatprep.subr.bf16.mxu0 %v1618
        %1716 = vmatpush1.bf16.msra.mxu0 %v1617
        %1717 = vmatprep.mubr.bf16.mxu0 %v1278
        %1718 = vmatmul.mubr.bf16.gmra.mrb[0].mxu0 %v1277
        %v1719 = vpop.f32.mrb[0].mxu0
        %v1720 = vadd.f32 %v1348, %v1719
        %v1721 = vpop.f32.mrb[0].mxu0
        %v1722 = vadd.f32 %v1352, %v1721
        %v1723 = vpop.f32.mrb[0].mxu0
        %v1724 = vadd.f32 %v1348, %v1723
        %v1725 = vpop.f32.mrb[0].mxu0
        %v1726 = vadd.f32 %v1352, %v1725
        %1727 = vdwg.mxu0
        %1728 = vmatprep.subr.bf16.mxu0 %v1560
        %1729 = vmatpush1.bf16.msra.mxu0 %v1559
        %1730 = vmatprep.subr.bf16.mxu0 %v1564
        %1731 = vmatpush1.bf16.msra.mxu0 %v1563
        %1732 = vmatprep.subr.bf16.mxu0 %v1568
        %1733 = vmatpush1.bf16.msra.mxu0 %v1567
        %1734 = vmatprep.subr.bf16.mxu0 %v1572
        %1735 = vmatpush1.bf16.msra.mxu0 %v1571
        %1736 = vmatprep.subr.bf16.mxu0 %v1576
        %1737 = vmatpush1.bf16.msra.mxu0 %v1575
        %1738 = vmatprep.subr.bf16.mxu0 %v1580
        %1739 = vmatpush1.bf16.msra.mxu0 %v1579
        %1740 = vmatprep.subr.bf16.mxu0 %v1584
        %1741 = vmatpush1.bf16.msra.mxu0 %v1583
        %1742 = vmatprep.subr.bf16.mxu0 %v1588
        %1743 = vmatpush1.bf16.msra.mxu0 %v1587
        %1744 = vmatprep.subr.bf16.mxu0 %v1592
        %1745 = vmatpush1.bf16.msra.mxu0 %v1591
        %1746 = vmatprep.subr.bf16.mxu0 %v1596
        %1747 = vmatpush1.bf16.msra.mxu0 %v1595
        %1748 = vmatprep.subr.bf16.mxu0 %v1600
        %1749 = vmatpush1.bf16.msra.mxu0 %v1599
        %1750 = vmatprep.subr.bf16.mxu0 %v1604
        %1751 = vmatpush1.bf16.msra.mxu0 %v1603
        %1752 = vmatprep.subr.bf16.mxu0 %v1608
        %1753 = vmatpush1.bf16.msra.mxu0 %v1607
        %1754 = vmatprep.subr.bf16.mxu0 %v1612
        %1755 = vmatpush1.bf16.msra.mxu0 %v1611
        %1756 = vmatprep.subr.bf16.mxu0 %v1616
        %1757 = vmatpush1.bf16.msra.mxu0 %v1615
        %1758 = vmatprep.subr.bf16.mxu0 %v1620
        %1759 = vmatpush1.bf16.msra.mxu0 %v1619
        %1760 = vmatprep.mubr.bf16.mxu0 %v1278
        %1761 = vmatmul.mubr.bf16.gmra.mrb[0].mxu0 %v1277
        %v1762 = vpop.f32.mrb[0].mxu0
        %v1763 = vadd.f32 %v1356, %v1762
        %v1764 = vpop.f32.mrb[0].mxu0
        %v1765 = vadd.f32 %v1360, %v1764
        %v1766 = vpop.f32.mrb[0].mxu0
        %v1767 = vadd.f32 %v1356, %v1766
        %v1768 = vpop.f32.mrb[0].mxu0
        %v1769 = vadd.f32 %v1360, %v1768
        %1770 = vdwg.mxu0
        %p1771 = scmp.eq.s32.totalorder %s50, 1
        %s1772 = scalar_select %p1771, 1, 0
        %s1773 = scvt.s32.f32 %s1772
        %v1774 = vld [vmem:[#allocation8] sm:$0x1]
        %v1775 = vld [vmem:[#allocation8 + $0x1] sm:$0x1]
        %v1776 = vstv %s1773
        %v1777 = vmul.f32 %v1776, %v1774
        %v1778 = vmul.f32 %v1776, %v1775
        %s1779 = ssub.f32 1.0, %s1773
        %v1780 = vstv %s1779
        %v1781 = vadd.f32 %v1777, %v1780
        %v1782 = vadd.f32 %v1778, %v1780
        %1783 = vmatprep.subr.mxu0 0.0
        %1784 = vmatpush1.xpose.msra.mxu0 %v1720
        %1785 = vmatprep.subr.mxu0 0.0
        %1786 = vmatpush1.xpose.msra.mxu0 0.0
        %1787 = vmatprep.subr.mxu0 0.0
        %1788 = vmatpush1.xpose.msra.mxu0 0.0
        %1789 = vmatprep.subr.mxu0 0.0
        %1790 = vmatpush1.xpose.msra.mxu0 0.0
        %1791 = vmatprep.subr.mxu0 0.0
        %1792 = vmatpush1.xpose.msra.mxu0 0.0
        %1793 = vmatprep.subr.mxu0 0.0
        %1794 = vmatpush1.xpose.msra.mxu0 0.0
        %1795 = vmatprep.subr.mxu0 0.0
        %1796 = vmatpush1.xpose.msra.mxu0 0.0
        %1797 = vmatprep.subr.mxu0 0.0
        %1798 = vmatpush1.xpose.msra.mxu0 0.0
        %1799 = vmatprep.subr.mxu0 0.0
        %1800 = vmatpush1.xpose.msra.mxu0 0.0
        %1801 = vmatprep.subr.mxu0 0.0
        %1802 = vmatpush1.xpose.msra.mxu0 0.0
        %1803 = vmatprep.subr.mxu0 0.0
        %1804 = vmatpush1.xpose.msra.mxu0 0.0
        %1805 = vmatprep.subr.mxu0 0.0
        %1806 = vmatpush1.xpose.msra.mxu0 0.0
        %1807 = vmatprep.subr.mxu0 0.0
        %1808 = vmatpush1.xpose.msra.mxu0 0.0
        %1809 = vmatprep.subr.mxu0 0.0
        %1810 = vmatpush1.xpose.msra.mxu0 0.0
        %1811 = vmatprep.subr.mxu0 0.0
        %1812 = vmatpush1.xpose.msra.mxu0 0.0
        %1813 = vmatprep.subr.mxu0 0.0
        %1814 = vmatpush1.xpose.msra.mxu0 0.0
        %1815 = vmatprep.subr.mxu0 0.0
        %1816 = vmatpush1.xpose.msra.mxu0 0.0
        %1817 = vmatprep.subr.mxu0 0.0
        %1818 = vmatpush1.xpose.msra.mxu0 0.0
        %1819 = vmatprep.subr.mxu0 0.0
        %1820 = vmatpush1.xpose.msra.mxu0 0.0
        %1821 = vmatprep.subr.mxu0 0.0
        %1822 = vmatpush1.xpose.msra.mxu0 0.0
        %1823 = vmatprep.subr.mxu0 0.0
        %1824 = vmatpush1.xpose.msra.mxu0 0.0
        %1825 = vmatprep.subr.mxu0 0.0
        %1826 = vmatpush1.xpose.msra.mxu0 0.0
        %1827 = vmatprep.subr.mxu0 0.0
        %1828 = vmatpush1.xpose.msra.mxu0 0.0
        %1829 = vmatprep.subr.mxu0 0.0
        %1830 = vmatpush1.xpose.msra.mxu0 0.0
        %1831 = vmatprep.subr.mxu0 0.0
        %1832 = vmatpush1.xpose.msra.mxu0 0.0
        %1833 = vmatprep.subr.mxu0 0.0
        %1834 = vmatpush1.xpose.msra.mxu0 0.0
        %1835 = vmatprep.subr.mxu0 0.0
        %1836 = vmatpush1.xpose.msra.mxu0 0.0
        %1837 = vmatprep.subr.mxu0 0.0
        %1838 = vmatpush1.xpose.msra.mxu0 0.0
        %1839 = vmatprep.subr.mxu0 0.0
        %1840 = vmatpush1.xpose.msra.mxu0 0.0
        %1841 = vmatprep.subr.mxu0 0.0
        %1842 = vmatpush1.xpose.msra.mxu0 0.0
        %1843 = vmatprep.subr.mxu0 0.0
        %1844 = vmatpush1.xpose.msra.mxu0 0.0
        %1845 = vmatprep.subr.mxu0 0.0
        %1846 = vmatpush1.xpose.msra.mxu0 0.0
        %1847 = vmatprep.mubr.f32.mxu0 0.0
        %1848 = vmatmul.mubr.f32.gmra.mrb[0].mxu0 %v1269
        %v1849 = vpop.f32.mrb[0].mxu0
        %v1850 = vadd.f32 0.0, %v1849
        %v1851 = vpop.f32.mrb[0].mxu0
        %1852 = vdwg.mxu0
        %1853 = vmatprep.subr.mxu0 0.0
        %1854 = vmatpush1.xpose.msra.mxu0 %v1724
        %1855 = vmatprep.subr.mxu0 0.0
        %1856 = vmatpush1.xpose.msra.mxu0 0.0
        %1857 = vmatprep.subr.mxu0 0.0
        %1858 = vmatpush1.xpose.msra.mxu0 0.0
        %1859 = vmatprep.subr.mxu0 0.0
        %1860 = vmatpush1.xpose.msra.mxu0 0.0
        %1861 = vmatprep.subr.mxu0 0.0
        %1862 = vmatpush1.xpose.msra.mxu0 0.0
        %1863 = vmatprep.subr.mxu0 0.0
        %1864 = vmatpush1.xpose.msra.mxu0 0.0
        %1865 = vmatprep.subr.mxu0 0.0
        %1866 = vmatpush1.xpose.msra.mxu0 0.0
        %1867 = vmatprep.subr.mxu0 0.0
        %1868 = vmatpush1.xpose.msra.mxu0 0.0
        %1869 = vmatprep.subr.mxu0 0.0
        %1870 = vmatpush1.xpose.msra.mxu0 0.0
        %1871 = vmatprep.subr.mxu0 0.0
        %1872 = vmatpush1.xpose.msra.mxu0 0.0
        %1873 = vmatprep.subr.mxu0 0.0
        %1874 = vmatpush1.xpose.msra.mxu0 0.0
        %1875 = vmatprep.subr.mxu0 0.0
        %1876 = vmatpush1.xpose.msra.mxu0 0.0
        %1877 = vmatprep.subr.mxu0 0.0
        %1878 = vmatpush1.xpose.msra.mxu0 0.0
        %1879 = vmatprep.subr.mxu0 0.0
        %1880 = vmatpush1.xpose.msra.mxu0 0.0
        %1881 = vmatprep.subr.mxu0 0.0
        %1882 = vmatpush1.xpose.msra.mxu0 0.0
        %1883 = vmatprep.subr.mxu0 0.0
        %1884 = vmatpush1.xpose.msra.mxu0 0.0
        %1885 = vmatprep.subr.mxu0 0.0
        %1886 = vmatpush1.xpose.msra.mxu0 0.0
        %1887 = vmatprep.subr.mxu0 0.0
        %1888 = vmatpush1.xpose.msra.mxu0 0.0
        %1889 = vmatprep.subr.mxu0 0.0
        %1890 = vmatpush1.xpose.msra.mxu0 0.0
        %1891 = vmatprep.subr.mxu0 0.0
        %1892 = vmatpush1.xpose.msra.mxu0 0.0
        %1893 = vmatprep.subr.mxu0 0.0
        %1894 = vmatpush1.xpose.msra.mxu0 0.0
        %1895 = vmatprep.subr.mxu0 0.0
        %1896 = vmatpush1.xpose.msra.mxu0 0.0
        %1897 = vmatprep.subr.mxu0 0.0
        %1898 = vmatpush1.xpose.msra.mxu0 0.0
        %1899 = vmatprep.subr.mxu0 0.0
        %1900 = vmatpush1.xpose.msra.mxu0 0.0
        %1901 = vmatprep.subr.mxu0 0.0
        %1902 = vmatpush1.xpose.msra.mxu0 0.0
        %1903 = vmatprep.subr.mxu0 0.0
        %1904 = vmatpush1.xpose.msra.mxu0 0.0
        %1905 = vmatprep.subr.mxu0 0.0
        %1906 = vmatpush1.xpose.msra.mxu0 0.0
        %1907 = vmatprep.subr.mxu0 0.0
        %1908 = vmatpush1.xpose.msra.mxu0 0.0
        %1909 = vmatprep.subr.mxu0 0.0
        %1910 = vmatpush1.xpose.msra.mxu0 0.0
        %1911 = vmatprep.subr.mxu0 0.0
        %1912 = vmatpush1.xpose.msra.mxu0 0.0
        %1913 = vmatprep.subr.mxu0 0.0
        %1914 = vmatpush1.xpose.msra.mxu0 0.0
        %1915 = vmatprep.subr.mxu0 0.0
        %1916 = vmatpush1.xpose.msra.mxu0 0.0
        %1917 = vmatprep.mubr.f32.mxu0 0.0
        %1918 = vmatmul.mubr.f32.gmra.mrb[0].mxu0 %v1273
        %v1919 = vpop.f32.mrb[0].mxu0
        %v1920 = vadd.f32 0.0, %v1919
        %v1921 = vpop.f32.mrb[0].mxu0
        %1922 = vdwg.mxu0
        %v1923 = vmul.f32 %v1850, 0.088388346
        %v1924 = vmul.f32 %v1920, 0.088388346
        %v1927 = vlaneseq
        %v1928 = vshrl.u32 %v1927, 7
        %v1929 = vsub.s32 0, %v1928
        %v1930 = vrot.slane %v1781, %v1929
        %v1931 = vlaneseq
        %v1932 = vshrl.u32 %v1931, 7
        %v1933 = vsub.s32 0, %v1932
        %v1934 = vrot.slane %v1782, %v1933
        %v1937 = vmul.f32 %v1923, %v1930
        %v1938 = vmul.f32 %v1924, %v1934
        %vm1939 = vcmask 64512
        %v1940 = vsel %vm1939, %v1937, -inf
        %1941 = vmax.xlane.f32.xlu0 %v1940
        %v1942 = vpop.xlane.xlu0 %1941
        %v1943 = vsel %vm1939, %v1938, -inf
        %1944 = vmax.xlane.f32.xlu0 %v1943
        %v1945 = vpop.xlane.xlu0 %1944
        %v1946 = vsub.f32 %v1937, %v1942
        %v1947 = vsub.f32 %v1938, %v1945
        %v1948 = vmul.f32 %v1946, 1.442695
        %v1949 = vpow.pop %v1948
        %v1950 = vmul.f32 %v1947, 1.442695
        %v1951 = vpow.pop %v1950
        %v1952 = vsel %vm1939, %v1949, 0.0
        %1953 = vadd.xlane.f32.xlu0 %v1952
        %v1954 = vpop.xlane.xlu0 %1953
        %v1955 = vsel %vm1939, %v1951, 0.0
        %1956 = vadd.xlane.f32.xlu0 %v1955
        %v1957 = vpop.xlane.xlu0 %1956
        %v1958 = vrcp.pop %v1954
        %v1959 = vmul.f32 %v1949, %v1958
        %v1960 = vrcp.pop %v1957
        %v1961 = vmul.f32 %v1951, %v1960
        %v1963 = vsel %vm1939, %v1959, 0
        %1965 = vmatprep.subr.mxu0 0.0
        %1966 = vmatpush1.msra.mxu0 %v1763
        %1967 = vmatprep.subr.mxu0 0.0
        %1968 = vmatpush1.msra.mxu0 0.0
        %1969 = vmatprep.subr.mxu0 0.0
        %1970 = vmatpush1.msra.mxu0 0.0
        %1971 = vmatprep.subr.mxu0 0.0
        %1972 = vmatpush1.msra.mxu0 0.0
        %1973 = vmatprep.subr.mxu0 0.0
        %1974 = vmatpush1.msra.mxu0 0.0
        %1975 = vmatprep.subr.mxu0 0.0
        %1976 = vmatpush1.msra.mxu0 0.0
        %1977 = vmatprep.subr.mxu0 0.0
        %1978 = vmatpush1.msra.mxu0 0.0
        %1979 = vmatprep.subr.mxu0 0.0
        %1980 = vmatpush1.msra.mxu0 0.0
        %1981 = vmatprep.subr.mxu0 0.0
        %1982 = vmatpush1.msra.mxu0 0.0
        %1983 = vmatprep.subr.mxu0 0.0
        %1984 = vmatpush1.msra.mxu0 0.0
        %1985 = vmatprep.subr.mxu0 0.0
        %1986 = vmatpush1.msra.mxu0 0.0
        %1987 = vmatprep.subr.mxu0 0.0
        %1988 = vmatpush1.msra.mxu0 0.0
        %1989 = vmatprep.subr.mxu0 0.0
        %1990 = vmatpush1.msra.mxu0 0.0
        %1991 = vmatprep.subr.mxu0 0.0
        %1992 = vmatpush1.msra.mxu0 0.0
        %1993 = vmatprep.subr.mxu0 0.0
        %1994 = vmatpush1.msra.mxu0 0.0
        %1995 = vmatprep.subr.mxu0 0.0
        %1996 = vmatpush1.msra.mxu0 0.0
        %1997 = vmatprep.subr.mxu0 0.0
        %1998 = vmatpush1.msra.mxu0 0.0
        %1999 = vmatprep.subr.mxu0 0.0
        %2000 = vmatpush1.msra.mxu0 0.0
        %2001 = vmatprep.subr.mxu0 0.0
        %2002 = vmatpush1.msra.mxu0 0.0
        %2003 = vmatprep.subr.mxu0 0.0
        %2004 = vmatpush1.msra.mxu0 0.0
        %2005 = vmatprep.subr.mxu0 0.0
        %2006 = vmatpush1.msra.mxu0 0.0
        %2007 = vmatprep.subr.mxu0 0.0
        %2008 = vmatpush1.msra.mxu0 0.0
        %2009 = vmatprep.subr.mxu0 0.0
        %2010 = vmatpush1.msra.mxu0 0.0
        %2011 = vmatprep.subr.mxu0 0.0
        %2012 = vmatpush1.msra.mxu0 0.0
        %2013 = vmatprep.subr.mxu0 0.0
        %2014 = vmatpush1.msra.mxu0 0.0
        %2015 = vmatprep.subr.mxu0 0.0
        %2016 = vmatpush1.msra.mxu0 0.0
        %2017 = vmatprep.subr.mxu0 0.0
        %2018 = vmatpush1.msra.mxu0 0.0
        %2019 = vmatprep.subr.mxu0 0.0
        %2020 = vmatpush1.msra.mxu0 0.0
        %2021 = vmatprep.subr.mxu0 0.0
        %2022 = vmatpush1.msra.mxu0 0.0
        %2023 = vmatprep.subr.mxu0 0.0
        %2024 = vmatpush1.msra.mxu0 0.0
        %2025 = vmatprep.subr.mxu0 0.0
        %2026 = vmatpush1.msra.mxu0 0.0
        %2027 = vmatprep.subr.mxu0 0.0
        %2028 = vmatpush1.msra.mxu0 0.0
        %2029 = vmatprep.mubr.f32.mxu0 0.0
        %2030 = vmatmul.mubr.f32.gmra.mrb[0].mxu0 %v1963
        %v2031 = vpop.f32.mrb[0].mxu0
        %v2032 = vadd.f32 0.0, %v2031
        %v2033 = vpop.f32.mrb[0].mxu0
        %2034 = vdwg.mxu0
        %v2036 = vsel %vm1939, %v1961, 0
        %2038 = vmatprep.subr.mxu0 0.0
        %2039 = vmatpush1.msra.mxu0 %v1767
        %2040 = vmatprep.subr.mxu0 0.0
        %2041 = vmatpush1.msra.mxu0 0.0
        %2042 = vmatprep.subr.mxu0 0.0
        %2043 = vmatpush1.msra.mxu0 0.0
        %2044 = vmatprep.subr.mxu0 0.0
        %2045 = vmatpush1.msra.mxu0 0.0
        %2046 = vmatprep.subr.mxu0 0.0
        %2047 = vmatpush1.msra.mxu0 0.0
        %2048 = vmatprep.subr.mxu0 0.0
        %2049 = vmatpush1.msra.mxu0 0.0
        %2050 = vmatprep.subr.mxu0 0.0
        %2051 = vmatpush1.msra.mxu0 0.0
        %2052 = vmatprep.subr.mxu0 0.0
        %2053 = vmatpush1.msra.mxu0 0.0
        %2054 = vmatprep.subr.mxu0 0.0
        %2055 = vmatpush1.msra.mxu0 0.0
        %2056 = vmatprep.subr.mxu0 0.0
        %2057 = vmatpush1.msra.mxu0 0.0
        %2058 = vmatprep.subr.mxu0 0.0
        %2059 = vmatpush1.msra.mxu0 0.0
        %2060 = vmatprep.subr.mxu0 0.0
        %2061 = vmatpush1.msra.mxu0 0.0
        %2062 = vmatprep.subr.mxu0 0.0
        %2063 = vmatpush1.msra.mxu0 0.0
        %2064 = vmatprep.subr.mxu0 0.0
        %2065 = vmatpush1.msra.mxu0 0.0
        %2066 = vmatprep.subr.mxu0 0.0
        %2067 = vmatpush1.msra.mxu0 0.0
        %2068 = vmatprep.subr.mxu0 0.0
        %2069 = vmatpush1.msra.mxu0 0.0
        %2070 = vmatprep.subr.mxu0 0.0
        %2071 = vmatpush1.msra.mxu0 0.0
        %2072 = vmatprep.subr.mxu0 0.0
        %2073 = vmatpush1.msra.mxu0 0.0
        %2074 = vmatprep.subr.mxu0 0.0
        %2075 = vmatpush1.msra.mxu0 0.0
        %2076 = vmatprep.subr.mxu0 0.0
        %2077 = vmatpush1.msra.mxu0 0.0
        %2078 = vmatprep.subr.mxu0 0.0
        %2079 = vmatpush1.msra.mxu0 0.0
        %2080 = vmatprep.subr.mxu0 0.0
        %2081 = vmatpush1.msra.mxu0 0.0
        %2082 = vmatprep.subr.mxu0 0.0
        %2083 = vmatpush1.msra.mxu0 0.0
        %2084 = vmatprep.subr.mxu0 0.0
        %2085 = vmatpush1.msra.mxu0 0.0
        %2086 = vmatprep.subr.mxu0 0.0
        %2087 = vmatpush1.msra.mxu0 0.0
        %2088 = vmatprep.subr.mxu0 0.0
        %2089 = vmatpush1.msra.mxu0 0.0
        %2090 = vmatprep.subr.mxu0 0.0
        %2091 = vmatpush1.msra.mxu0 0.0
        %2092 = vmatprep.subr.mxu0 0.0
        %2093 = vmatpush1.msra.mxu0 0.0
        %2094 = vmatprep.subr.mxu0 0.0
        %2095 = vmatpush1.msra.mxu0 0.0
        %2096 = vmatprep.subr.mxu0 0.0
        %2097 = vmatpush1.msra.mxu0 0.0
        %2098 = vmatprep.subr.mxu0 0.0
        %2099 = vmatpush1.msra.mxu0 0.0
        %2100 = vmatprep.subr.mxu0 0.0
        %2101 = vmatpush1.msra.mxu0 0.0
        %2102 = vmatprep.mubr.f32.mxu0 0.0
        %2103 = vmatmul.mubr.f32.gmra.mrb[0].mxu0 %v2036
        %v2104 = vpop.f32.mrb[0].mxu0
        %v2105 = vadd.f32 0.0, %v2104
        %v2106 = vpop.f32.mrb[0].mxu0
        %2107 = vdwg.mxu0
        %2108 = vst [vmem:[#allocation2] sm:$0xff] %v2032
        %2109 = vst [vmem:[#allocation2 + $0x10] sm:$0xff] %v2105
        %2110 = vmatprep.subr.mxu0 0.0
        %2111 = vmatpush1.xpose.msra.mxu0 %v1722
        %2112 = vmatprep.subr.mxu0 0.0
        %2113 = vmatpush1.xpose.msra.mxu0 0.0
        %2114 = vmatprep.subr.mxu0 0.0
        %2115 = vmatpush1.xpose.msra.mxu0 0.0
        %2116 = vmatprep.subr.mxu0 0.0
        %2117 = vmatpush1.xpose.msra.mxu0 0.0
        %2118 = vmatprep.subr.mxu0 0.0
        %2119 = vmatpush1.xpose.msra.mxu0 0.0
        %2120 = vmatprep.subr.mxu0 0.0
        %2121 = vmatpush1.xpose.msra.mxu0 0.0
        %2122 = vmatprep.subr.mxu0 0.0
        %2123 = vmatpush1.xpose.msra.mxu0 0.0
        %2124 = vmatprep.subr.mxu0 0.0
        %2125 = vmatpush1.xpose.msra.mxu0 0.0
        %2126 = vmatprep.subr.mxu0 0.0
        %2127 = vmatpush1.xpose.msra.mxu0 0.0
        %2128 = vmatprep.subr.mxu0 0.0
        %2129 = vmatpush1.xpose.msra.mxu0 0.0
        %2130 = vmatprep.subr.mxu0 0.0
        %2131 = vmatpush1.xpose.msra.mxu0 0.0
        %2132 = vmatprep.subr.mxu0 0.0
        %2133 = vmatpush1.xpose.msra.mxu0 0.0
        %2134 = vmatprep.subr.mxu0 0.0
        %2135 = vmatpush1.xpose.msra.mxu0 0.0
        %2136 = vmatprep.subr.mxu0 0.0
        %2137 = vmatpush1.xpose.msra.mxu0 0.0
        %2138 = vmatprep.subr.mxu0 0.0
        %2139 = vmatpush1.xpose.msra.mxu0 0.0
        %2140 = vmatprep.subr.mxu0 0.0
        %2141 = vmatpush1.xpose.msra.mxu0 0.0
        %2142 = vmatprep.subr.mxu0 0.0
        %2143 = vmatpush1.xpose.msra.mxu0 0.0
        %2144 = vmatprep.subr.mxu0 0.0
        %2145 = vmatpush1.xpose.msra.mxu0 0.0
        %2146 = vmatprep.subr.mxu0 0.0
        %2147 = vmatpush1.xpose.msra.mxu0 0.0
        %2148 = vmatprep.subr.mxu0 0.0
        %2149 = vmatpush1.xpose.msra.mxu0 0.0
        %2150 = vmatprep.subr.mxu0 0.0
        %2151 = vmatpush1.xpose.msra.mxu0 0.0
        %2152 = vmatprep.subr.mxu0 0.0
        %2153 = vmatpush1.xpose.msra.mxu0 0.0
        %2154 = vmatprep.subr.mxu0 0.0
        %2155 = vmatpush1.xpose.msra.mxu0 0.0
        %2156 = vmatprep.subr.mxu0 0.0
        %2157 = vmatpush1.xpose.msra.mxu0 0.0
        %2158 = vmatprep.subr.mxu0 0.0
        %2159 = vmatpush1.xpose.msra.mxu0 0.0
        %2160 = vmatprep.subr.mxu0 0.0
        %2161 = vmatpush1.xpose.msra.mxu0 0.0
        %2162 = vmatprep.subr.mxu0 0.0
        %2163 = vmatpush1.xpose.msra.mxu0 0.0
        %2164 = vmatprep.subr.mxu0 0.0
        %2165 = vmatpush1.xpose.msra.mxu0 0.0
        %2166 = vmatprep.subr.mxu0 0.0
        %2167 = vmatpush1.xpose.msra.mxu0 0.0
        %2168 = vmatprep.subr.mxu0 0.0
        %2169 = vmatpush1.xpose.msra.mxu0 0.0
        %2170 = vmatprep.subr.mxu0 0.0
        %2171 = vmatpush1.xpose.msra.mxu0 0.0
        %2172 = vmatprep.subr.mxu0 0.0
        %2173 = vmatpush1.xpose.msra.mxu0 0.0
        %2174 = vmatprep.mubr.f32.mxu0 0.0
        %2175 = vmatmul.mubr.f32.gmra.mrb[0].mxu0 %v1271
        %v2176 = vpop.f32.mrb[0].mxu0
        %v2177 = vadd.f32 0.0, %v2176
        %v2178 = vpop.f32.mrb[0].mxu0
        %2179 = vdwg.mxu0
        %2180 = vmatprep.subr.mxu0 0.0
        %2181 = vmatpush1.xpose.msra.mxu0 %v1726
        %2182 = vmatprep.subr.mxu0 0.0
        %2183 = vmatpush1.xpose.msra.mxu0 0.0
        %2184 = vmatprep.subr.mxu0 0.0
        %2185 = vmatpush1.xpose.msra.mxu0 0.0
        %2186 = vmatprep.subr.mxu0 0.0
        %2187 = vmatpush1.xpose.msra.mxu0 0.0
        %2188 = vmatprep.subr.mxu0 0.0
        %2189 = vmatpush1.xpose.msra.mxu0 0.0
        %2190 = vmatprep.subr.mxu0 0.0
        %2191 = vmatpush1.xpose.msra.mxu0 0.0
        %2192 = vmatprep.subr.mxu0 0.0
        %2193 = vmatpush1.xpose.msra.mxu0 0.0
        %2194 = vmatprep.subr.mxu0 0.0
        %2195 = vmatpush1.xpose.msra.mxu0 0.0
        %2196 = vmatprep.subr.mxu0 0.0
        %2197 = vmatpush1.xpose.msra.mxu0 0.0
        %2198 = vmatprep.subr.mxu0 0.0
        %2199 = vmatpush1.xpose.msra.mxu0 0.0
        %2200 = vmatprep.subr.mxu0 0.0
        %2201 = vmatpush1.xpose.msra.mxu0 0.0
        %2202 = vmatprep.subr.mxu0 0.0
        %2203 = vmatpush1.xpose.msra.mxu0 0.0
        %2204 = vmatprep.subr.mxu0 0.0
        %2205 = vmatpush1.xpose.msra.mxu0 0.0
        %2206 = vmatprep.subr.mxu0 0.0
        %2207 = vmatpush1.xpose.msra.mxu0 0.0
        %2208 = vmatprep.subr.mxu0 0.0
        %2209 = vmatpush1.xpose.msra.mxu0 0.0
        %2210 = vmatprep.subr.mxu0 0.0
        %2211 = vmatpush1.xpose.msra.mxu0 0.0
        %2212 = vmatprep.subr.mxu0 0.0
        %2213 = vmatpush1.xpose.msra.mxu0 0.0
        %2214 = vmatprep.subr.mxu0 0.0
        %2215 = vmatpush1.xpose.msra.mxu0 0.0
        %2216 = vmatprep.subr.mxu0 0.0
        %2217 = vmatpush1.xpose.msra.mxu0 0.0
        %2218 = vmatprep.subr.mxu0 0.0
        %2219 = vmatpush1.xpose.msra.mxu0 0.0
        %2220 = vmatprep.subr.mxu0 0.0
        %2221 = vmatpush1.xpose.msra.mxu0 0.0
        %2222 = vmatprep.subr.mxu0 0.0
        %2223 = vmatpush1.xpose.msra.mxu0 0.0
        %2224 = vmatprep.subr.mxu0 0.0
        %2225 = vmatpush1.xpose.msra.mxu0 0.0
        %2226 = vmatprep.subr.mxu0 0.0
        %2227 = vmatpush1.xpose.msra.mxu0 0.0
        %2228 = vmatprep.subr.mxu0 0.0
        %2229 = vmatpush1.xpose.msra.mxu0 0.0
        %2230 = vmatprep.subr.mxu0 0.0
        %2231 = vmatpush1.xpose.msra.mxu0 0.0
        %2232 = vmatprep.subr.mxu0 0.0
        %2233 = vmatpush1.xpose.msra.mxu0 0.0
        %2234 = vmatprep.subr.mxu0 0.0
        %2235 = vmatpush1.xpose.msra.mxu0 0.0
        %2236 = vmatprep.subr.mxu0 0.0
        %2237 = vmatpush1.xpose.msra.mxu0 0.0
        %2238 = vmatprep.subr.mxu0 0.0
        %2239 = vmatpush1.xpose.msra.mxu0 0.0
        %2240 = vmatprep.subr.mxu0 0.0
        %2241 = vmatpush1.xpose.msra.mxu0 0.0
        %2242 = vmatprep.subr.mxu0 0.0
        %2243 = vmatpush1.xpose.msra.mxu0 0.0
        %2244 = vmatprep.mubr.f32.mxu0 0.0
        %2245 = vmatmul.mubr.f32.gmra.mrb[0].mxu0 %v1275
        %v2246 = vpop.f32.mrb[0].mxu0
        %v2247 = vadd.f32 0.0, %v2246
        %v2248 = vpop.f32.mrb[0].mxu0
        %2249 = vdwg.mxu0
        %v2250 = vmul.f32 %v2177, 0.088388346
        %v2251 = vmul.f32 %v2247, 0.088388346
        %v2252 = vmul.f32 %v2250, %v1930
        %v2253 = vmul.f32 %v2251, %v1934
        %v2254 = vsel %vm1939, %v2252, -inf
        %2255 = vmax.xlane.f32.xlu0 %v2254
        %v2256 = vpop.xlane.xlu0 %2255
        %v2257 = vsel %vm1939, %v2253, -inf
        %2258 = vmax.xlane.f32.xlu0 %v2257
        %v2259 = vpop.xlane.xlu0 %2258
        %v2260 = vsub.f32 %v2252, %v2256
        %v2261 = vsub.f32 %v2253, %v2259
        %v2262 = vmul.f32 %v2260, 1.442695
        %v2263 = vpow.pop %v2262
        %v2264 = vmul.f32 %v2261, 1.442695
        %v2265 = vpow.pop %v2264
        %v2266 = vsel %vm1939, %v2263, 0.0
        %2267 = vadd.xlane.f32.xlu0 %v2266
        %v2268 = vpop.xlane.xlu0 %2267
        %v2269 = vsel %vm1939, %v2265, 0.0
        %2270 = vadd.xlane.f32.xlu0 %v2269
        %v2271 = vpop.xlane.xlu0 %2270
        %v2272 = vrcp.pop %v2268
        %v2273 = vmul.f32 %v2263, %v2272
        %v2274 = vrcp.pop %v2271
        %v2275 = vmul.f32 %v2265, %v2274
        %v2277 = vsel %vm1939, %v2273, 0
        %2279 = vmatprep.subr.mxu0 0.0
        %2280 = vmatpush1.msra.mxu0 %v1765
        %2281 = vmatprep.subr.mxu0 0.0
        %2282 = vmatpush1.msra.mxu0 0.0
        %2283 = vmatprep.subr.mxu0 0.0
        %2284 = vmatpush1.msra.mxu0 0.0
        %2285 = vmatprep.subr.mxu0 0.0
        %2286 = vmatpush1.msra.mxu0 0.0
        %2287 = vmatprep.subr.mxu0 0.0
        %2288 = vmatpush1.msra.mxu0 0.0
        %2289 = vmatprep.subr.mxu0 0.0
        %2290 = vmatpush1.msra.mxu0 0.0
        %2291 = vmatprep.subr.mxu0 0.0
        %2292 = vmatpush1.msra.mxu0 0.0
        %2293 = vmatprep.subr.mxu0 0.0
        %2294 = vmatpush1.msra.mxu0 0.0
        %2295 = vmatprep.subr.mxu0 0.0
        %2296 = vmatpush1.msra.mxu0 0.0
        %2297 = vmatprep.subr.mxu0 0.0
        %2298 = vmatpush1.msra.mxu0 0.0
        %2299 = vmatprep.subr.mxu0 0.0
        %2300 = vmatpush1.msra.mxu0 0.0
        %2301 = vmatprep.subr.mxu0 0.0
        %2302 = vmatpush1.msra.mxu0 0.0
        %2303 = vmatprep.subr.mxu0 0.0
        %2304 = vmatpush1.msra.mxu0 0.0
        %2305 = vmatprep.subr.mxu0 0.0
        %2306 = vmatpush1.msra.mxu0 0.0
        %2307 = vmatprep.subr.mxu0 0.0
        %2308 = vmatpush1.msra.mxu0 0.0
        %2309 = vmatprep.subr.mxu0 0.0
        %2310 = vmatpush1.msra.mxu0 0.0
        %2311 = vmatprep.subr.mxu0 0.0
        %2312 = vmatpush1.msra.mxu0 0.0
        %2313 = vmatprep.subr.mxu0 0.0
        %2314 = vmatpush1.msra.mxu0 0.0
        %2315 = vmatprep.subr.mxu0 0.0
        %2316 = vmatpush1.msra.mxu0 0.0
        %2317 = vmatprep.subr.mxu0 0.0
        %2318 = vmatpush1.msra.mxu0 0.0
        %2319 = vmatprep.subr.mxu0 0.0
        %2320 = vmatpush1.msra.mxu0 0.0
        %2321 = vmatprep.subr.mxu0 0.0
        %2322 = vmatpush1.msra.mxu0 0.0
        %2323 = vmatprep.subr.mxu0 0.0
        %2324 = vmatpush1.msra.mxu0 0.0
        %2325 = vmatprep.subr.mxu0 0.0
        %2326 = vmatpush1.msra.mxu0 0.0
        %2327 = vmatprep.subr.mxu0 0.0
        %2328 = vmatpush1.msra.mxu0 0.0
        %2329 = vmatprep.subr.mxu0 0.0
        %2330 = vmatpush1.msra.mxu0 0.0
        %2331 = vmatprep.subr.mxu0 0.0
        %2332 = vmatpush1.msra.mxu0 0.0
        %2333 = vmatprep.subr.mxu0 0.0
        %2334 = vmatpush1.msra.mxu0 0.0
        %2335 = vmatprep.subr.mxu0 0.0
        %2336 = vmatpush1.msra.mxu0 0.0
        %2337 = vmatprep.subr.mxu0 0.0
        %2338 = vmatpush1.msra.mxu0 0.0
        %2339 = vmatprep.subr.mxu0 0.0
        %2340 = vmatpush1.msra.mxu0 0.0
        %2341 = vmatprep.subr.mxu0 0.0
        %2342 = vmatpush1.msra.mxu0 0.0
        %2343 = vmatprep.mubr.f32.mxu0 0.0
        %2344 = vmatmul.mubr.f32.gmra.mrb[0].mxu0 %v2277
        %v2345 = vpop.f32.mrb[0].mxu0
        %v2346 = vadd.f32 0.0, %v2345
        %v2347 = vpop.f32.mrb[0].mxu0
        %2348 = vdwg.mxu0
        %v2350 = vsel %vm1939, %v2275, 0
        %2352 = vmatprep.subr.mxu0 0.0
        %2353 = vmatpush1.msra.mxu0 %v1769
        %2354 = vmatprep.subr.mxu0 0.0
        %2355 = vmatpush1.msra.mxu0 0.0
        %2356 = vmatprep.subr.mxu0 0.0
        %2357 = vmatpush1.msra.mxu0 0.0
        %2358 = vmatprep.subr.mxu0 0.0
        %2359 = vmatpush1.msra.mxu0 0.0
        %2360 = vmatprep.subr.mxu0 0.0
        %2361 = vmatpush1.msra.mxu0 0.0
        %2362 = vmatprep.subr.mxu0 0.0
        %2363 = vmatpush1.msra.mxu0 0.0
        %2364 = vmatprep.subr.mxu0 0.0
        %2365 = vmatpush1.msra.mxu0 0.0
        %2366 = vmatprep.subr.mxu0 0.0
        %2367 = vmatpush1.msra.mxu0 0.0
        %2368 = vmatprep.subr.mxu0 0.0
        %2369 = vmatpush1.msra.mxu0 0.0
        %2370 = vmatprep.subr.mxu0 0.0
        %2371 = vmatpush1.msra.mxu0 0.0
        %2372 = vmatprep.subr.mxu0 0.0
        %2373 = vmatpush1.msra.mxu0 0.0
        %2374 = vmatprep.subr.mxu0 0.0
        %2375 = vmatpush1.msra.mxu0 0.0
        %2376 = vmatprep.subr.mxu0 0.0
        %2377 = vmatpush1.msra.mxu0 0.0
        %2378 = vmatprep.subr.mxu0 0.0
        %2379 = vmatpush1.msra.mxu0 0.0
        %2380 = vmatprep.subr.mxu0 0.0
        %2381 = vmatpush1.msra.mxu0 0.0
        %2382 = vmatprep.subr.mxu0 0.0
        %2383 = vmatpush1.msra.mxu0 0.0
        %2384 = vmatprep.subr.mxu0 0.0
        %2385 = vmatpush1.msra.mxu0 0.0
        %2386 = vmatprep.subr.mxu0 0.0
        %2387 = vmatpush1.msra.mxu0 0.0
        %2388 = vmatprep.subr.mxu0 0.0
        %2389 = vmatpush1.msra.mxu0 0.0
        %2390 = vmatprep.subr.mxu0 0.0
        %2391 = vmatpush1.msra.mxu0 0.0
        %2392 = vmatprep.subr.mxu0 0.0
        %2393 = vmatpush1.msra.mxu0 0.0
        %2394 = vmatprep.subr.mxu0 0.0
        %2395 = vmatpush1.msra.mxu0 0.0
        %2396 = vmatprep.subr.mxu0 0.0
        %2397 = vmatpush1.msra.mxu0 0.0
        %2398 = vmatprep.subr.mxu0 0.0
        %2399 = vmatpush1.msra.mxu0 0.0
        %2400 = vmatprep.subr.mxu0 0.0
        %2401 = vmatpush1.msra.mxu0 0.0
        %2402 = vmatprep.subr.mxu0 0.0
        %2403 = vmatpush1.msra.mxu0 0.0
        %2404 = vmatprep.subr.mxu0 0.0
        %2405 = vmatpush1.msra.mxu0 0.0
        %2406 = vmatprep.subr.mxu0 0.0
        %2407 = vmatpush1.msra.mxu0 0.0
        %2408 = vmatprep.subr.mxu0 0.0
        %2409 = vmatpush1.msra.mxu0 0.0
        %2410 = vmatprep.subr.mxu0 0.0
        %2411 = vmatpush1.msra.mxu0 0.0
        %2412 = vmatprep.subr.mxu0 0.0
        %2413 = vmatpush1.msra.mxu0 0.0
        %2414 = vmatprep.subr.mxu0 0.0
        %2415 = vmatpush1.msra.mxu0 0.0
        %2416 = vmatprep.mubr.f32.mxu0 0.0
        %2417 = vmatmul.mubr.f32.gmra.mrb[0].mxu0 %v2350
        %v2418 = vpop.f32.mrb[0].mxu0
        %v2419 = vadd.f32 0.0, %v2418
        %v2420 = vpop.f32.mrb[0].mxu0
        %2421 = vdwg.mxu0
        %2422 = vst [vmem:[#allocation2 + $0x8] sm:$0xff] %v2346
        %2423 = vst [vmem:[#allocation2 + $0x18] sm:$0xff] %v2419
        %v2424 = vld [vmem:[#allocation2] sm:$0xff]
        %v2425 = vld [vmem:[#allocation2 + $0x8] sm:$0xff]
        %v2426 = vld [vmem:[#allocation2 + $0x10] sm:$0xff]
        %v2427 = vld [vmem:[#allocation2 + $0x18] sm:$0xff]
        %v2428 = vadd.f32 %v2424, %v1024
        %v2429 = vadd.f32 %v2425, %v1025
        %v2430 = vadd.f32 %v2426, %v1026
        %v2431 = vadd.f32 %v2427, %v1027
        %v2432 = vld [vmem:[%s839] sm:$0x3]
        %v2433 = vld [vmem:[%s848] sm:$0x3]
        %v2434 = vadd.f32 %v2428, %v2429
        %2435 = vadd.xlane.f32.xlu0 %v2434
        %v2436 = vpop.xlane.xlu0 %2435
        %v2437 = vadd.f32 %v2430, %v2431
        %2438 = vadd.xlane.f32.xlu0 %v2437
        %v2439 = vpop.xlane.xlu0 %2438
        %v2440 = vrcp.pop 256.0
        %v2441 = vmul.f32 %v2436, %v2440
        %v2442 = vmul.f32 %v2439, %v2440
        %v2443 = vsub.f32 %v2428, %v2441
        %v2444 = vsub.f32 %v2429, %v2441
        %v2445 = vsub.f32 %v2430, %v2442
        %v2446 = vsub.f32 %v2431, %v2442
        %v2447 = vmul.f32 %v2443, %v2443
        %v2448 = vmul.f32 %v2444, %v2444
        %v2449 = vmul.f32 %v2445, %v2445
        %v2450 = vmul.f32 %v2446, %v2446
        %v2451 = vadd.f32 %v2447, %v2448
        %2452 = vadd.xlane.f32.xlu0 %v2451
        %v2453 = vpop.xlane.xlu0 %2452
        %v2454 = vadd.f32 %v2449, %v2450
        %2455 = vadd.xlane.f32.xlu0 %v2454
        %v2456 = vpop.xlane.xlu0 %2455
        %v2457 = vmul.f32 %v2453, %v2440
        %v2458 = vmul.f32 %v2456, %v2440
        %v2459 = vadd.f32 %v2457, 1e-12
        %v2460 = vadd.f32 %v2458, 1e-12
        %v2461 = vrsqrt.pop %v2459
        %v2462 = vrsqrt.pop %v2460
        %v2463 = vmul.f32 %v2443, %v2461
        %v2464 = vmul.f32 %v2444, %v2461
        %v2465 = vmul.f32 %v2445, %v2462
        %v2466 = vmul.f32 %v2446, %v2462
        %v2468 = vlaneseq
        %v2469 = vshrl.u32 %v2468, 7
        %v2470 = vsub.s32 0, %v2469
        %v2471 = vrot.slane %v2432, %v2470
        %v2472 = vlaneseq
        %v2473 = vshrl.u32 %v2472, 7
        %v2474 = vsub.s32 1, %v2473
        %v2475 = vrot.slane %v2432, %v2474
        %v2478 = vmul.f32 %v2471, %v2463
        %v2479 = vmul.f32 %v2475, %v2464
        %v2480 = vmul.f32 %v2471, %v2465
        %v2481 = vmul.f32 %v2475, %v2466
        %v2483 = vlaneseq
        %v2484 = vshrl.u32 %v2483, 7
        %v2485 = vsub.s32 0, %v2484
        %v2486 = vrot.slane %v2433, %v2485
        %v2487 = vlaneseq
        %v2488 = vshrl.u32 %v2487, 7
        %v2489 = vsub.s32 1, %v2488
        %v2490 = vrot.slane %v2433, %v2489
        %v2493 = vadd.f32 %v2478, %v2486
        %v2494 = vadd.f32 %v2479, %v2490
        %v2495 = vadd.f32 %v2480, %v2486
        %v2496 = vadd.f32 %v2481, %v2490
        %v2497 = vpack.c.bf16 %v2495, %v2493
        %v2498 = vpack.c.bf16 %v2496, %v2494
        %v2499 = vld [vmem:[%s857] sm:$0xff]
        %v2500 = vld [vmem:[%s857 + $0x8] sm:$0xff]
        %v2501 = vld [vmem:[%s857 + $0x10] sm:$0xff]
        %v2502 = vld [vmem:[%s857 + $0x18] sm:$0xff]
        %v2503 = vld [vmem:[%s857 + $0x20] sm:$0xff]
        %v2504 = vld [vmem:[%s857 + $0x28] sm:$0xff]
        %v2505 = vld [vmem:[%s857 + $0x30] sm:$0xff]
        %v2506 = vld [vmem:[%s857 + $0x38] sm:$0xff]
        %v2507 = vld [vmem:[%s857 + $0x40] sm:$0xff]
        %v2508 = vld [vmem:[%s857 + $0x48] sm:$0xff]
        %v2509 = vld [vmem:[%s857 + $0x50] sm:$0xff]
        %v2510 = vld [vmem:[%s857 + $0x58] sm:$0xff]
        %v2511 = vld [vmem:[%s857 + $0x60] sm:$0xff]
        %v2512 = vld [vmem:[%s857 + $0x68] sm:$0xff]
        %v2513 = vld [vmem:[%s857 + $0x70] sm:$0xff]
        %v2514 = vld [vmem:[%s857 + $0x78] sm:$0xff]
        %v2515 = vld [vmem:[%s857 + $0x80] sm:$0xff]
        %v2516 = vld [vmem:[%s857 + $0x88] sm:$0xff]
        %v2517 = vld [vmem:[%s857 + $0x90] sm:$0xff]
        %v2518 = vld [vmem:[%s857 + $0x98] sm:$0xff]
        %v2519 = vld [vmem:[%s857 + $0xa0] sm:$0xff]
        %v2520 = vld [vmem:[%s857 + $0xa8] sm:$0xff]
        %v2521 = vld [vmem:[%s857 + $0xb0] sm:$0xff]
        %v2522 = vld [vmem:[%s857 + $0xb8] sm:$0xff]
        %v2523 = vld [vmem:[%s857 + $0xc0] sm:$0xff]
        %v2524 = vld [vmem:[%s857 + $0xc8] sm:$0xff]
        %v2525 = vld [vmem:[%s857 + $0xd0] sm:$0xff]
        %v2526 = vld [vmem:[%s857 + $0xd8] sm:$0xff]
        %v2527 = vld [vmem:[%s857 + $0xe0] sm:$0xff]
        %v2528 = vld [vmem:[%s857 + $0xe8] sm:$0xff]
        %v2529 = vld [vmem:[%s857 + $0xf0] sm:$0xff]
        %v2530 = vld [vmem:[%s857 + $0xf8] sm:$0xff]
        %v2531 = vld [vmem:[%s857 + $0x100] sm:$0xff]
        %v2532 = vld [vmem:[%s857 + $0x108] sm:$0xff]
        %v2533 = vld [vmem:[%s857 + $0x110] sm:$0xff]
        %v2534 = vld [vmem:[%s857 + $0x118] sm:$0xff]
        %v2535 = vld [vmem:[%s857 + $0x120] sm:$0xff]
        %v2536 = vld [vmem:[%s857 + $0x128] sm:$0xff]
        %v2537 = vld [vmem:[%s857 + $0x130] sm:$0xff]
        %v2538 = vld [vmem:[%s857 + $0x138] sm:$0xff]
        %v2539 = vld [vmem:[%s857 + $0x140] sm:$0xff]
        %v2540 = vld [vmem:[%s857 + $0x148] sm:$0xff]
        %v2541 = vld [vmem:[%s857 + $0x150] sm:$0xff]
        %v2542 = vld [vmem:[%s857 + $0x158] sm:$0xff]
        %v2543 = vld [vmem:[%s857 + $0x160] sm:$0xff]
        %v2544 = vld [vmem:[%s857 + $0x168] sm:$0xff]
        %v2545 = vld [vmem:[%s857 + $0x170] sm:$0xff]
        %v2546 = vld [vmem:[%s857 + $0x178] sm:$0xff]
        %v2547 = vld [vmem:[%s857 + $0x180] sm:$0xff]
        %v2548 = vld [vmem:[%s857 + $0x188] sm:$0xff]
        %v2549 = vld [vmem:[%s857 + $0x190] sm:$0xff]
        %v2550 = vld [vmem:[%s857 + $0x198] sm:$0xff]
        %v2551 = vld [vmem:[%s857 + $0x1a0] sm:$0xff]
        %v2552 = vld [vmem:[%s857 + $0x1a8] sm:$0xff]
        %v2553 = vld [vmem:[%s857 + $0x1b0] sm:$0xff]
        %v2554 = vld [vmem:[%s857 + $0x1b8] sm:$0xff]
        %v2555 = vld [vmem:[%s857 + $0x1c0] sm:$0xff]
        %v2556 = vld [vmem:[%s857 + $0x1c8] sm:$0xff]
        %v2557 = vld [vmem:[%s857 + $0x1d0] sm:$0xff]
        %v2558 = vld [vmem:[%s857 + $0x1d8] sm:$0xff]
        %v2559 = vld [vmem:[%s857 + $0x1e0] sm:$0xff]
        %v2560 = vld [vmem:[%s857 + $0x1e8] sm:$0xff]
        %v2561 = vld [vmem:[%s857 + $0x1f0] sm:$0xff]
        %v2562 = vld [vmem:[%s857 + $0x1f8] sm:$0xff]
        %v2563 = vld [vmem:[%s857 + $0x200] sm:$0xff]
        %v2564 = vld [vmem:[%s857 + $0x208] sm:$0xff]
        %v2565 = vld [vmem:[%s857 + $0x210] sm:$0xff]
        %v2566 = vld [vmem:[%s857 + $0x218] sm:$0xff]
        %v2567 = vld [vmem:[%s857 + $0x220] sm:$0xff]
        %v2568 = vld [vmem:[%s857 + $0x228] sm:$0xff]
        %v2569 = vld [vmem:[%s857 + $0x230] sm:$0xff]
        %v2570 = vld [vmem:[%s857 + $0x238] sm:$0xff]
        %v2571 = vld [vmem:[%s857 + $0x240] sm:$0xff]
        %v2572 = vld [vmem:[%s857 + $0x248] sm:$0xff]
        %v2573 = vld [vmem:[%s857 + $0x250] sm:$0xff]
        %v2574 = vld [vmem:[%s857 + $0x258] sm:$0xff]
        %v2575 = vld [vmem:[%s857 + $0x260] sm:$0xff]
        %v2576 = vld [vmem:[%s857 + $0x268] sm:$0xff]
        %v2577 = vld [vmem:[%s857 + $0x270] sm:$0xff]
        %v2578 = vld [vmem:[%s857 + $0x278] sm:$0xff]
        %v2579 = vld [vmem:[%s857 + $0x280] sm:$0xff]
        %v2580 = vld [vmem:[%s857 + $0x288] sm:$0xff]
        %v2581 = vld [vmem:[%s857 + $0x290] sm:$0xff]
        %v2582 = vld [vmem:[%s857 + $0x298] sm:$0xff]
        %v2583 = vld [vmem:[%s857 + $0x2a0] sm:$0xff]
        %v2584 = vld [vmem:[%s857 + $0x2a8] sm:$0xff]
        %v2585 = vld [vmem:[%s857 + $0x2b0] sm:$0xff]
        %v2586 = vld [vmem:[%s857 + $0x2b8] sm:$0xff]
        %v2587 = vld [vmem:[%s857 + $0x2c0] sm:$0xff]
        %v2588 = vld [vmem:[%s857 + $0x2c8] sm:$0xff]
        %v2589 = vld [vmem:[%s857 + $0x2d0] sm:$0xff]
        %v2590 = vld [vmem:[%s857 + $0x2d8] sm:$0xff]
        %v2591 = vld [vmem:[%s857 + $0x2e0] sm:$0xff]
        %v2592 = vld [vmem:[%s857 + $0x2e8] sm:$0xff]
        %v2593 = vld [vmem:[%s857 + $0x2f0] sm:$0xff]
        %v2594 = vld [vmem:[%s857 + $0x2f8] sm:$0xff]
        %v2595 = vld [vmem:[%s857 + $0x300] sm:$0xff]
        %v2596 = vld [vmem:[%s857 + $0x308] sm:$0xff]
        %v2597 = vld [vmem:[%s857 + $0x310] sm:$0xff]
        %v2598 = vld [vmem:[%s857 + $0x318] sm:$0xff]
        %v2599 = vld [vmem:[%s857 + $0x320] sm:$0xff]
        %v2600 = vld [vmem:[%s857 + $0x328] sm:$0xff]
        %v2601 = vld [vmem:[%s857 + $0x330] sm:$0xff]
        %v2602 = vld [vmem:[%s857 + $0x338] sm:$0xff]
        %v2603 = vld [vmem:[%s857 + $0x340] sm:$0xff]
        %v2604 = vld [vmem:[%s857 + $0x348] sm:$0xff]
        %v2605 = vld [vmem:[%s857 + $0x350] sm:$0xff]
        %v2606 = vld [vmem:[%s857 + $0x358] sm:$0xff]
        %v2607 = vld [vmem:[%s857 + $0x360] sm:$0xff]
        %v2608 = vld [vmem:[%s857 + $0x368] sm:$0xff]
        %v2609 = vld [vmem:[%s857 + $0x370] sm:$0xff]
        %v2610 = vld [vmem:[%s857 + $0x378] sm:$0xff]
        %v2611 = vld [vmem:[%s857 + $0x380] sm:$0xff]
        %v2612 = vld [vmem:[%s857 + $0x388] sm:$0xff]
        %v2613 = vld [vmem:[%s857 + $0x390] sm:$0xff]
        %v2614 = vld [vmem:[%s857 + $0x398] sm:$0xff]
        %v2615 = vld [vmem:[%s857 + $0x3a0] sm:$0xff]
        %v2616 = vld [vmem:[%s857 + $0x3a8] sm:$0xff]
        %v2617 = vld [vmem:[%s857 + $0x3b0] sm:$0xff]
        %v2618 = vld [vmem:[%s857 + $0x3b8] sm:$0xff]
        %v2619 = vld [vmem:[%s857 + $0x3c0] sm:$0xff]
        %v2620 = vld [vmem:[%s857 + $0x3c8] sm:$0xff]
        %v2621 = vld [vmem:[%s857 + $0x3d0] sm:$0xff]
        %v2622 = vld [vmem:[%s857 + $0x3d8] sm:$0xff]
        %v2623 = vld [vmem:[%s857 + $0x3e0] sm:$0xff]
        %v2624 = vld [vmem:[%s857 + $0x3e8] sm:$0xff]
        %v2625 = vld [vmem:[%s857 + $0x3f0] sm:$0xff]
        %v2626 = vld [vmem:[%s857 + $0x3f8] sm:$0xff]
        %v2627 = vld [vmem:[%s998] sm:$0xff]
        %v2629 = vlaneseq
        %v2630 = vshrl.u32 %v2629, 7
        %v2631 = vsub.s32 0, %v2630
        %v2632 = vrot.slane %v2627, %v2631
        %v2633 = vlaneseq
        %v2634 = vshrl.u32 %v2633, 7
        %v2635 = vsub.s32 1, %v2634
        %v2636 = vrot.slane %v2627, %v2635
        %v2637 = vlaneseq
        %v2638 = vshrl.u32 %v2637, 7
        %v2639 = vsub.s32 2, %v2638
        %v2640 = vrot.slane %v2627, %v2639
        %v2641 = vlaneseq
        %v2642 = vshrl.u32 %v2641, 7
        %v2643 = vsub.s32 3, %v2642
        %v2644 = vrot.slane %v2627, %v2643
        %v2645 = vlaneseq
        %v2646 = vshrl.u32 %v2645, 7
        %v2647 = vsub.s32 4, %v2646
        %v2648 = vrot.slane %v2627, %v2647
        %v2649 = vlaneseq
        %v2650 = vshrl.u32 %v2649, 7
        %v2651 = vsub.s32 5, %v2650
        %v2652 = vrot.slane %v2627, %v2651
        %v2653 = vlaneseq
        %v2654 = vshrl.u32 %v2653, 7
        %v2655 = vsub.s32 6, %v2654
        %v2656 = vrot.slane %v2627, %v2655
        %v2657 = vlaneseq
        %v2658 = vshrl.u32 %v2657, 7
        %v2659 = vsub.s32 7, %v2658
        %v2660 = vrot.slane %v2627, %v2659
        %v2797 = vunpack.c.l.b16 %v2499
        %v2798 = vunpack.c.h.b16 %v2499
        %v2799 = vunpack.c.l.b16 %v2500
        %v2800 = vunpack.c.h.b16 %v2500
        %v2801 = vunpack.c.l.b16 %v2501
        %v2802 = vunpack.c.h.b16 %v2501
        %v2803 = vunpack.c.l.b16 %v2502
        %v2804 = vunpack.c.h.b16 %v2502
        %v2805 = vunpack.c.l.b16 %v2503
        %v2806 = vunpack.c.h.b16 %v2503
        %v2807 = vunpack.c.l.b16 %v2504
        %v2808 = vunpack.c.h.b16 %v2504
        %v2809 = vunpack.c.l.b16 %v2505
        %v2810 = vunpack.c.h.b16 %v2505
        %v2811 = vunpack.c.l.b16 %v2506
        %v2812 = vunpack.c.h.b16 %v2506
        %v2813 = vunpack.c.l.b16 %v2507
        %v2814 = vunpack.c.h.b16 %v2507
        %v2815 = vunpack.c.l.b16 %v2508
        %v2816 = vunpack.c.h.b16 %v2508
        %v2817 = vunpack.c.l.b16 %v2509
        %v2818 = vunpack.c.h.b16 %v2509
        %v2819 = vunpack.c.l.b16 %v2510
        %v2820 = vunpack.c.h.b16 %v2510
        %v2821 = vunpack.c.l.b16 %v2511
        %v2822 = vunpack.c.h.b16 %v2511
        %v2823 = vunpack.c.l.b16 %v2512
        %v2824 = vunpack.c.h.b16 %v2512
        %v2825 = vunpack.c.l.b16 %v2513
        %v2826 = vunpack.c.h.b16 %v2513
        %v2827 = vunpack.c.l.b16 %v2514
        %v2828 = vunpack.c.h.b16 %v2514
        %v2829 = vunpack.c.l.b16 %v2515
        %v2830 = vunpack.c.h.b16 %v2515
        %v2831 = vunpack.c.l.b16 %v2516
        %v2832 = vunpack.c.h.b16 %v2516
        %v2833 = vunpack.c.l.b16 %v2517
        %v2834 = vunpack.c.h.b16 %v2517
        %v2835 = vunpack.c.l.b16 %v2518
        %v2836 = vunpack.c.h.b16 %v2518
        %v2837 = vunpack.c.l.b16 %v2519
        %v2838 = vunpack.c.h.b16 %v2519
        %v2839 = vunpack.c.l.b16 %v2520
        %v2840 = vunpack.c.h.b16 %v2520
        %v2841 = vunpack.c.l.b16 %v2521
        %v2842 = vunpack.c.h.b16 %v2521
        %v2843 = vunpack.c.l.b16 %v2522
        %v2844 = vunpack.c.h.b16 %v2522
        %v2845 = vunpack.c.l.b16 %v2523
        %v2846 = vunpack.c.h.b16 %v2523
        %v2847 = vunpack.c.l.b16 %v2524
        %v2848 = vunpack.c.h.b16 %v2524
        %v2849 = vunpack.c.l.b16 %v2525
        %v2850 = vunpack.c.h.b16 %v2525
        %v2851 = vunpack.c.l.b16 %v2526
        %v2852 = vunpack.c.h.b16 %v2526
        %v2853 = vunpack.c.l.b16 %v2527
        %v2854 = vunpack.c.h.b16 %v2527
        %v2855 = vunpack.c.l.b16 %v2528
        %v2856 = vunpack.c.h.b16 %v2528
        %v2857 = vunpack.c.l.b16 %v2529
        %v2858 = vunpack.c.h.b16 %v2529
        %v2859 = vunpack.c.l.b16 %v2530
        %v2860 = vunpack.c.h.b16 %v2530
        %v2861 = vunpack.c.l.b16 %v2531
        %v2862 = vunpack.c.h.b16 %v2531
        %v2863 = vunpack.c.l.b16 %v2532
        %v2864 = vunpack.c.h.b16 %v2532
        %v2865 = vunpack.c.l.b16 %v2533
        %v2866 = vunpack.c.h.b16 %v2533
        %v2867 = vunpack.c.l.b16 %v2534
        %v2868 = vunpack.c.h.b16 %v2534
        %v2869 = vunpack.c.l.b16 %v2535
        %v2870 = vunpack.c.h.b16 %v2535
        %v2871 = vunpack.c.l.b16 %v2536
        %v2872 = vunpack.c.h.b16 %v2536
        %v2873 = vunpack.c.l.b16 %v2537
        %v2874 = vunpack.c.h.b16 %v2537
        %v2875 = vunpack.c.l.b16 %v2538
        %v2876 = vunpack.c.h.b16 %v2538
        %v2877 = vunpack.c.l.b16 %v2539
        %v2878 = vunpack.c.h.b16 %v2539
        %v2879 = vunpack.c.l.b16 %v2540
        %v2880 = vunpack.c.h.b16 %v2540
        %v2881 = vunpack.c.l.b16 %v2541
        %v2882 = vunpack.c.h.b16 %v2541
        %v2883 = vunpack.c.l.b16 %v2542
        %v2884 = vunpack.c.h.b16 %v2542
        %v2885 = vunpack.c.l.b16 %v2543
        %v2886 = vunpack.c.h.b16 %v2543
        %v2887 = vunpack.c.l.b16 %v2544
        %v2888 = vunpack.c.h.b16 %v2544
        %v2889 = vunpack.c.l.b16 %v2545
        %v2890 = vunpack.c.h.b16 %v2545
        %v2891 = vunpack.c.l.b16 %v2546
        %v2892 = vunpack.c.h.b16 %v2546
        %v2893 = vunpack.c.l.b16 %v2547
        %v2894 = vunpack.c.h.b16 %v2547
        %v2895 = vunpack.c.l.b16 %v2548
        %v2896 = vunpack.c.h.b16 %v2548
        %v2897 = vunpack.c.l.b16 %v2549
        %v2898 = vunpack.c.h.b16 %v2549
        %v2899 = vunpack.c.l.b16 %v2550
        %v2900 = vunpack.c.h.b16 %v2550
        %v2901 = vunpack.c.l.b16 %v2551
        %v2902 = vunpack.c.h.b16 %v2551
        %v2903 = vunpack.c.l.b16 %v2552
        %v2904 = vunpack.c.h.b16 %v2552
        %v2905 = vunpack.c.l.b16 %v2553
        %v2906 = vunpack.c.h.b16 %v2553
        %v2907 = vunpack.c.l.b16 %v2554
        %v2908 = vunpack.c.h.b16 %v2554
        %v2909 = vunpack.c.l.b16 %v2555
        %v2910 = vunpack.c.h.b16 %v2555
        %v2911 = vunpack.c.l.b16 %v2556
        %v2912 = vunpack.c.h.b16 %v2556
        %v2913 = vunpack.c.l.b16 %v2557
        %v2914 = vunpack.c.h.b16 %v2557
        %v2915 = vunpack.c.l.b16 %v2558
        %v2916 = vunpack.c.h.b16 %v2558
        %v2917 = vunpack.c.l.b16 %v2559
        %v2918 = vunpack.c.h.b16 %v2559
        %v2919 = vunpack.c.l.b16 %v2560
        %v2920 = vunpack.c.h.b16 %v2560
        %v2921 = vunpack.c.l.b16 %v2561
        %v2922 = vunpack.c.h.b16 %v2561
        %v2923 = vunpack.c.l.b16 %v2562
        %v2924 = vunpack.c.h.b16 %v2562
        %v2925 = vunpack.c.l.b16 %v2563
        %v2926 = vunpack.c.h.b16 %v2563
        %v2927 = vunpack.c.l.b16 %v2564
        %v2928 = vunpack.c.h.b16 %v2564
        %v2929 = vunpack.c.l.b16 %v2565
        %v2930 = vunpack.c.h.b16 %v2565
        %v2931 = vunpack.c.l.b16 %v2566
        %v2932 = vunpack.c.h.b16 %v2566
        %v2933 = vunpack.c.l.b16 %v2567
        %v2934 = vunpack.c.h.b16 %v2567
        %v2935 = vunpack.c.l.b16 %v2568
        %v2936 = vunpack.c.h.b16 %v2568
        %v2937 = vunpack.c.l.b16 %v2569
        %v2938 = vunpack.c.h.b16 %v2569
        %v2939 = vunpack.c.l.b16 %v2570
        %v2940 = vunpack.c.h.b16 %v2570
        %v2941 = vunpack.c.l.b16 %v2571
        %v2942 = vunpack.c.h.b16 %v2571
        %v2943 = vunpack.c.l.b16 %v2572
        %v2944 = vunpack.c.h.b16 %v2572
        %v2945 = vunpack.c.l.b16 %v2573
        %v2946 = vunpack.c.h.b16 %v2573
        %v2947 = vunpack.c.l.b16 %v2574
        %v2948 = vunpack.c.h.b16 %v2574
        %v2949 = vunpack.c.l.b16 %v2575
        %v2950 = vunpack.c.h.b16 %v2575
        %v2951 = vunpack.c.l.b16 %v2576
        %v2952 = vunpack.c.h.b16 %v2576
        %v2953 = vunpack.c.l.b16 %v2577
        %v2954 = vunpack.c.h.b16 %v2577
        %v2955 = vunpack.c.l.b16 %v2578
        %v2956 = vunpack.c.h.b16 %v2578
        %v2957 = vunpack.c.l.b16 %v2579
        %v2958 = vunpack.c.h.b16 %v2579
        %v2959 = vunpack.c.l.b16 %v2580
        %v2960 = vunpack.c.h.b16 %v2580
        %v2961 = vunpack.c.l.b16 %v2581
        %v2962 = vunpack.c.h.b16 %v2581
        %v2963 = vunpack.c.l.b16 %v2582
        %v2964 = vunpack.c.h.b16 %v2582
        %v2965 = vunpack.c.l.b16 %v2583
        %v2966 = vunpack.c.h.b16 %v2583
        %v2967 = vunpack.c.l.b16 %v2584
        %v2968 = vunpack.c.h.b16 %v2584
        %v2969 = vunpack.c.l.b16 %v2585
        %v2970 = vunpack.c.h.b16 %v2585
        %v2971 = vunpack.c.l.b16 %v2586
        %v2972 = vunpack.c.h.b16 %v2586
        %v2973 = vunpack.c.l.b16 %v2587
        %v2974 = vunpack.c.h.b16 %v2587
        %v2975 = vunpack.c.l.b16 %v2588
        %v2976 = vunpack.c.h.b16 %v2588
        %v2977 = vunpack.c.l.b16 %v2589
        %v2978 = vunpack.c.h.b16 %v2589
        %v2979 = vunpack.c.l.b16 %v2590
        %v2980 = vunpack.c.h.b16 %v2590
        %v2981 = vunpack.c.l.b16 %v2591
        %v2982 = vunpack.c.h.b16 %v2591
        %v2983 = vunpack.c.l.b16 %v2592
        %v2984 = vunpack.c.h.b16 %v2592
        %v2985 = vunpack.c.l.b16 %v2593
        %v2986 = vunpack.c.h.b16 %v2593
        %v2987 = vunpack.c.l.b16 %v2594
        %v2988 = vunpack.c.h.b16 %v2594
        %v2989 = vunpack.c.l.b16 %v2595
        %v2990 = vunpack.c.h.b16 %v2595
        %v2991 = vunpack.c.l.b16 %v2596
        %v2992 = vunpack.c.h.b16 %v2596
        %v2993 = vunpack.c.l.b16 %v2597
        %v2994 = vunpack.c.h.b16 %v2597
        %v2995 = vunpack.c.l.b16 %v2598
        %v2996 = vunpack.c.h.b16 %v2598
        %v2997 = vunpack.c.l.b16 %v2599
        %v2998 = vunpack.c.h.b16 %v2599
        %v2999 = vunpack.c.l.b16 %v2600
        %v3000 = vunpack.c.h.b16 %v2600
        %v3001 = vunpack.c.l.b16 %v2601
        %v3002 = vunpack.c.h.b16 %v2601
        %v3003 = vunpack.c.l.b16 %v2602
        %v3004 = vunpack.c.h.b16 %v2602
        %v3005 = vunpack.c.l.b16 %v2603
        %v3006 = vunpack.c.h.b16 %v2603
        %v3007 = vunpack.c.l.b16 %v2604
        %v3008 = vunpack.c.h.b16 %v2604
        %v3009 = vunpack.c.l.b16 %v2605
        %v3010 = vunpack.c.h.b16 %v2605
        %v3011 = vunpack.c.l.b16 %v2606
        %v3012 = vunpack.c.h.b16 %v2606
        %v3013 = vunpack.c.l.b16 %v2607
        %v3014 = vunpack.c.h.b16 %v2607
        %v3015 = vunpack.c.l.b16 %v2608
        %v3016 = vunpack.c.h.b16 %v2608
        %v3017 = vunpack.c.l.b16 %v2609
        %v3018 = vunpack.c.h.b16 %v2609
        %v3019 = vunpack.c.l.b16 %v2610
        %v3020 = vunpack.c.h.b16 %v2610
        %v3021 = vunpack.c.l.b16 %v2611
        %v3022 = vunpack.c.h.b16 %v2611
        %v3023 = vunpack.c.l.b16 %v2612
        %v3024 = vunpack.c.h.b16 %v2612
        %v3025 = vunpack.c.l.b16 %v2613
        %v3026 = vunpack.c.h.b16 %v2613
        %v3027 = vunpack.c.l.b16 %v2614
        %v3028 = vunpack.c.h.b16 %v2614
        %v3029 = vunpack.c.l.b16 %v2615
        %v3030 = vunpack.c.h.b16 %v2615
        %v3031 = vunpack.c.l.b16 %v2616
        %v3032 = vunpack.c.h.b16 %v2616
        %v3033 = vunpack.c.l.b16 %v2617
        %v3034 = vunpack.c.h.b16 %v2617
        %v3035 = vunpack.c.l.b16 %v2618
        %v3036 = vunpack.c.h.b16 %v2618
        %v3037 = vunpack.c.l.b16 %v2619
        %v3038 = vunpack.c.h.b16 %v2619
        %v3039 = vunpack.c.l.b16 %v2620
        %v3040 = vunpack.c.h.b16 %v2620
        %v3041 = vunpack.c.l.b16 %v2621
        %v3042 = vunpack.c.h.b16 %v2621
        %v3043 = vunpack.c.l.b16 %v2622
        %v3044 = vunpack.c.h.b16 %v2622
        %v3045 = vunpack.c.l.b16 %v2623
        %v3046 = vunpack.c.h.b16 %v2623
        %v3047 = vunpack.c.l.b16 %v2624
        %v3048 = vunpack.c.h.b16 %v2624
        %v3049 = vunpack.c.l.b16 %v2625
        %v3050 = vunpack.c.h.b16 %v2625
        %v3051 = vunpack.c.l.b16 %v2626
        %v3052 = vunpack.c.h.b16 %v2626
        %v3053 = vpack.c.b16 %v2805, %v2797
        %v3054 = vpack.c.b16 %v2806, %v2798
        %v3055 = vpack.c.b16 %v2807, %v2799
        %v3056 = vpack.c.b16 %v2808, %v2800
        %v3057 = vpack.c.b16 %v2809, %v2801
        %v3058 = vpack.c.b16 %v2810, %v2802
        %v3059 = vpack.c.b16 %v2811, %v2803
        %v3060 = vpack.c.b16 %v2812, %v2804
        %v3061 = vpack.c.b16 %v2821, %v2813
        %v3062 = vpack.c.b16 %v2822, %v2814
        %v3063 = vpack.c.b16 %v2823, %v2815
        %v3064 = vpack.c.b16 %v2824, %v2816
        %v3065 = vpack.c.b16 %v2825, %v2817
        %v3066 = vpack.c.b16 %v2826, %v2818
        %v3067 = vpack.c.b16 %v2827, %v2819
        %v3068 = vpack.c.b16 %v2828, %v2820
        %v3069 = vpack.c.b16 %v2837, %v2829
        %v3070 = vpack.c.b16 %v2838, %v2830
        %v3071 = vpack.c.b16 %v2839, %v2831
        %v3072 = vpack.c.b16 %v2840, %v2832
        %v3073 = vpack.c.b16 %v2841, %v2833
        %v3074 = vpack.c.b16 %v2842, %v2834
        %v3075 = vpack.c.b16 %v2843, %v2835
        %v3076 = vpack.c.b16 %v2844, %v2836
        %v3077 = vpack.c.b16 %v2853, %v2845
        %v3078 = vpack.c.b16 %v2854, %v2846
        %v3079 = vpack.c.b16 %v2855, %v2847
        %v3080 = vpack.c.b16 %v2856, %v2848
        %v3081 = vpack.c.b16 %v2857, %v2849
        %v3082 = vpack.c.b16 %v2858, %v2850
        %v3083 = vpack.c.b16 %v2859, %v2851
        %v3084 = vpack.c.b16 %v2860, %v2852
        %v3085 = vpack.c.b16 %v2869, %v2861
        %v3086 = vpack.c.b16 %v2870, %v2862
        %v3087 = vpack.c.b16 %v2871, %v2863
        %v3088 = vpack.c.b16 %v2872, %v2864
        %v3089 = vpack.c.b16 %v2873, %v2865
        %v3090 = vpack.c.b16 %v2874, %v2866
        %v3091 = vpack.c.b16 %v2875, %v2867
        %v3092 = vpack.c.b16 %v2876, %v2868
        %v3093 = vpack.c.b16 %v2885, %v2877
        %v3094 = vpack.c.b16 %v2886, %v2878
        %v3095 = vpack.c.b16 %v2887, %v2879
        %v3096 = vpack.c.b16 %v2888, %v2880
        %v3097 = vpack.c.b16 %v2889, %v2881
        %v3098 = vpack.c.b16 %v2890, %v2882
        %v3099 = vpack.c.b16 %v2891, %v2883
        %v3100 = vpack.c.b16 %v2892, %v2884
        %v3101 = vpack.c.b16 %v2901, %v2893
        %v3102 = vpack.c.b16 %v2902, %v2894
        %v3103 = vpack.c.b16 %v2903, %v2895
        %v3104 = vpack.c.b16 %v2904, %v2896
        %v3105 = vpack.c.b16 %v2905, %v2897
        %v3106 = vpack.c.b16 %v2906, %v2898
        %v3107 = vpack.c.b16 %v2907, %v2899
        %v3108 = vpack.c.b16 %v2908, %v2900
        %v3109 = vpack.c.b16 %v2917, %v2909
        %v3110 = vpack.c.b16 %v2918, %v2910
        %v3111 = vpack.c.b16 %v2919, %v2911
        %v3112 = vpack.c.b16 %v2920, %v2912
        %v3113 = vpack.c.b16 %v2921, %v2913
        %v3114 = vpack.c.b16 %v2922, %v2914
        %v3115 = vpack.c.b16 %v2923, %v2915
        %v3116 = vpack.c.b16 %v2924, %v2916
        %v3117 = vpack.c.b16 %v2933, %v2925
        %v3118 = vpack.c.b16 %v2934, %v2926
        %v3119 = vpack.c.b16 %v2935, %v2927
        %v3120 = vpack.c.b16 %v2936, %v2928
        %v3121 = vpack.c.b16 %v2937, %v2929
        %v3122 = vpack.c.b16 %v2938, %v2930
        %v3123 = vpack.c.b16 %v2939, %v2931
        %v3124 = vpack.c.b16 %v2940, %v2932
        %v3125 = vpack.c.b16 %v2949, %v2941
        %v3126 = vpack.c.b16 %v2950, %v2942
        %v3127 = vpack.c.b16 %v2951, %v2943
        %v3128 = vpack.c.b16 %v2952, %v2944
        %v3129 = vpack.c.b16 %v2953, %v2945
        %v3130 = vpack.c.b16 %v2954, %v2946
        %v3131 = vpack.c.b16 %v2955, %v2947
        %v3132 = vpack.c.b16 %v2956, %v2948
        %v3133 = vpack.c.b16 %v2965, %v2957
        %v3134 = vpack.c.b16 %v2966, %v2958
        %v3135 = vpack.c.b16 %v2967, %v2959
        %v3136 = vpack.c.b16 %v2968, %v2960
        %v3137 = vpack.c.b16 %v2969, %v2961
        %v3138 = vpack.c.b16 %v2970, %v2962
        %v3139 = vpack.c.b16 %v2971, %v2963
        %v3140 = vpack.c.b16 %v2972, %v2964
        %v3141 = vpack.c.b16 %v2981, %v2973
        %v3142 = vpack.c.b16 %v2982, %v2974
        %v3143 = vpack.c.b16 %v2983, %v2975
        %v3144 = vpack.c.b16 %v2984, %v2976
        %v3145 = vpack.c.b16 %v2985, %v2977
        %v3146 = vpack.c.b16 %v2986, %v2978
        %v3147 = vpack.c.b16 %v2987, %v2979
        %v3148 = vpack.c.b16 %v2988, %v2980
        %v3149 = vpack.c.b16 %v2997, %v2989
        %v3150 = vpack.c.b16 %v2998, %v2990
        %v3151 = vpack.c.b16 %v2999, %v2991
        %v3152 = vpack.c.b16 %v3000, %v2992
        %v3153 = vpack.c.b16 %v3001, %v2993
        %v3154 = vpack.c.b16 %v3002, %v2994
        %v3155 = vpack.c.b16 %v3003, %v2995
        %v3156 = vpack.c.b16 %v3004, %v2996
        %v3157 = vpack.c.b16 %v3013, %v3005
        %v3158 = vpack.c.b16 %v3014, %v3006
        %v3159 = vpack.c.b16 %v3015, %v3007
        %v3160 = vpack.c.b16 %v3016, %v3008
        %v3161 = vpack.c.b16 %v3017, %v3009
        %v3162 = vpack.c.b16 %v3018, %v3010
        %v3163 = vpack.c.b16 %v3019, %v3011
        %v3164 = vpack.c.b16 %v3020, %v3012
        %v3165 = vpack.c.b16 %v3029, %v3021
        %v3166 = vpack.c.b16 %v3030, %v3022
        %v3167 = vpack.c.b16 %v3031, %v3023
        %v3168 = vpack.c.b16 %v3032, %v3024
        %v3169 = vpack.c.b16 %v3033, %v3025
        %v3170 = vpack.c.b16 %v3034, %v3026
        %v3171 = vpack.c.b16 %v3035, %v3027
        %v3172 = vpack.c.b16 %v3036, %v3028
        %v3173 = vpack.c.b16 %v3045, %v3037
        %v3174 = vpack.c.b16 %v3046, %v3038
        %v3175 = vpack.c.b16 %v3047, %v3039
        %v3176 = vpack.c.b16 %v3048, %v3040
        %v3177 = vpack.c.b16 %v3049, %v3041
        %v3178 = vpack.c.b16 %v3050, %v3042
        %v3179 = vpack.c.b16 %v3051, %v3043
        %v3180 = vpack.c.b16 %v3052, %v3044
        %3309 = vmatprep.subr.bf16.mxu0 %v3054
        %3310 = vmatpush1.bf16.msra.mxu0 %v3053
        %3311 = vmatprep.subr.bf16.mxu0 %v3062
        %3312 = vmatpush1.bf16.msra.mxu0 %v3061
        %3313 = vmatprep.subr.bf16.mxu0 %v3070
        %3314 = vmatpush1.bf16.msra.mxu0 %v3069
        %3315 = vmatprep.subr.bf16.mxu0 %v3078
        %3316 = vmatpush1.bf16.msra.mxu0 %v3077
        %3317 = vmatprep.subr.bf16.mxu0 %v3086
        %3318 = vmatpush1.bf16.msra.mxu0 %v3085
        %3319 = vmatprep.subr.bf16.mxu0 %v3094
        %3320 = vmatpush1.bf16.msra.mxu0 %v3093
        %3321 = vmatprep.subr.bf16.mxu0 %v3102
        %3322 = vmatpush1.bf16.msra.mxu0 %v3101
        %3323 = vmatprep.subr.bf16.mxu0 %v3110
        %3324 = vmatpush1.bf16.msra.mxu0 %v3109
        %3325 = vmatprep.subr.bf16.mxu0 %v3118
        %3326 = vmatpush1.bf16.msra.mxu0 %v3117
        %3327 = vmatprep.subr.bf16.mxu0 %v3126
        %3328 = vmatpush1.bf16.msra.mxu0 %v3125
        %3329 = vmatprep.subr.bf16.mxu0 %v3134
        %3330 = vmatpush1.bf16.msra.mxu0 %v3133
        %3331 = vmatprep.subr.bf16.mxu0 %v3142
        %3332 = vmatpush1.bf16.msra.mxu0 %v3141
        %3333 = vmatprep.subr.bf16.mxu0 %v3150
        %3334 = vmatpush1.bf16.msra.mxu0 %v3149
        %3335 = vmatprep.subr.bf16.mxu0 %v3158
        %3336 = vmatpush1.bf16.msra.mxu0 %v3157
        %3337 = vmatprep.subr.bf16.mxu0 %v3166
        %3338 = vmatpush1.bf16.msra.mxu0 %v3165
        %3339 = vmatprep.subr.bf16.mxu0 %v3174
        %3340 = vmatpush1.bf16.msra.mxu0 %v3173
        %3341 = vmatprep.mubr.bf16.mxu0 %v2498
        %3342 = vmatmul.mubr.bf16.gmra.mrb[0].mxu0 %v2497
        %v3343 = vpop.f32.mrb[0].mxu0
        %v3344 = vadd.f32 %v2632, %v3343
        %v3345 = vpop.f32.mrb[0].mxu0
        %v3346 = vadd.f32 %v2636, %v3345
        %v3347 = vpop.f32.mrb[0].mxu0
        %v3348 = vadd.f32 %v2632, %v3347
        %v3349 = vpop.f32.mrb[0].mxu0
        %v3350 = vadd.f32 %v2636, %v3349
        %3351 = vdwg.mxu0
        %3352 = vmatprep.subr.bf16.mxu0 %v3056
        %3353 = vmatpush1.bf16.msra.mxu0 %v3055
        %3354 = vmatprep.subr.bf16.mxu0 %v3064
        %3355 = vmatpush1.bf16.msra.mxu0 %v3063
        %3356 = vmatprep.subr.bf16.mxu0 %v3072
        %3357 = vmatpush1.bf16.msra.mxu0 %v3071
        %3358 = vmatprep.subr.bf16.mxu0 %v3080
        %3359 = vmatpush1.bf16.msra.mxu0 %v3079
        %3360 = vmatprep.subr.bf16.mxu0 %v3088
        %3361 = vmatpush1.bf16.msra.mxu0 %v3087
        %3362 = vmatprep.subr.bf16.mxu0 %v3096
        %3363 = vmatpush1.bf16.msra.mxu0 %v3095
        %3364 = vmatprep.subr.bf16.mxu0 %v3104
        %3365 = vmatpush1.bf16.msra.mxu0 %v3103
        %3366 = vmatprep.subr.bf16.mxu0 %v3112
        %3367 = vmatpush1.bf16.msra.mxu0 %v3111
        %3368 = vmatprep.subr.bf16.mxu0 %v3120
        %3369 = vmatpush1.bf16.msra.mxu0 %v3119
        %3370 = vmatprep.subr.bf16.mxu0 %v3128
        %3371 = vmatpush1.bf16.msra.mxu0 %v3127
        %3372 = vmatprep.subr.bf16.mxu0 %v3136
        %3373 = vmatpush1.bf16.msra.mxu0 %v3135
        %3374 = vmatprep.subr.bf16.mxu0 %v3144
        %3375 = vmatpush1.bf16.msra.mxu0 %v3143
        %3376 = vmatprep.subr.bf16.mxu0 %v3152
        %3377 = vmatpush1.bf16.msra.mxu0 %v3151
        %3378 = vmatprep.subr.bf16.mxu0 %v3160
        %3379 = vmatpush1.bf16.msra.mxu0 %v3159
        %3380 = vmatprep.subr.bf16.mxu0 %v3168
        %3381 = vmatpush1.bf16.msra.mxu0 %v3167
        %3382 = vmatprep.subr.bf16.mxu0 %v3176
        %3383 = vmatpush1.bf16.msra.mxu0 %v3175
        %3384 = vmatprep.mubr.bf16.mxu0 %v2498
        %3385 = vmatmul.mubr.bf16.gmra.mrb[0].mxu0 %v2497
        %v3386 = vpop.f32.mrb[0].mxu0
        %v3387 = vadd.f32 %v2640, %v3386
        %v3388 = vpop.f32.mrb[0].mxu0
        %v3389 = vadd.f32 %v2644, %v3388
        %v3390 = vpop.f32.mrb[0].mxu0
        %v3391 = vadd.f32 %v2640, %v3390
        %v3392 = vpop.f32.mrb[0].mxu0
        %v3393 = vadd.f32 %v2644, %v3392
        %3394 = vdwg.mxu0
        %3395 = vmatprep.subr.bf16.mxu0 %v3058
        %3396 = vmatpush1.bf16.msra.mxu0 %v3057
        %3397 = vmatprep.subr.bf16.mxu0 %v3066
        %3398 = vmatpush1.bf16.msra.mxu0 %v3065
        %3399 = vmatprep.subr.bf16.mxu0 %v3074
        %3400 = vmatpush1.bf16.msra.mxu0 %v3073
        %3401 = vmatprep.subr.bf16.mxu0 %v3082
        %3402 = vmatpush1.bf16.msra.mxu0 %v3081
        %3403 = vmatprep.subr.bf16.mxu0 %v3090
        %3404 = vmatpush1.bf16.msra.mxu0 %v3089
        %3405 = vmatprep.subr.bf16.mxu0 %v3098
        %3406 = vmatpush1.bf16.msra.mxu0 %v3097
        %3407 = vmatprep.subr.bf16.mxu0 %v3106
        %3408 = vmatpush1.bf16.msra.mxu0 %v3105
        %3409 = vmatprep.subr.bf16.mxu0 %v3114
        %3410 = vmatpush1.bf16.msra.mxu0 %v3113
        %3411 = vmatprep.subr.bf16.mxu0 %v3122
        %3412 = vmatpush1.bf16.msra.mxu0 %v3121
        %3413 = vmatprep.subr.bf16.mxu0 %v3130
        %3414 = vmatpush1.bf16.msra.mxu0 %v3129
        %3415 = vmatprep.subr.bf16.mxu0 %v3138
        %3416 = vmatpush1.bf16.msra.mxu0 %v3137
        %3417 = vmatprep.subr.bf16.mxu0 %v3146
        %3418 = vmatpush1.bf16.msra.mxu0 %v3145
        %3419 = vmatprep.subr.bf16.mxu0 %v3154
        %3420 = vmatpush1.bf16.msra.mxu0 %v3153
        %3421 = vmatprep.subr.bf16.mxu0 %v3162
        %3422 = vmatpush1.bf16.msra.mxu0 %v3161
        %3423 = vmatprep.subr.bf16.mxu0 %v3170
        %3424 = vmatpush1.bf16.msra.mxu0 %v3169
        %3425 = vmatprep.subr.bf16.mxu0 %v3178
        %3426 = vmatpush1.bf16.msra.mxu0 %v3177
        %3427 = vmatprep.mubr.bf16.mxu0 %v2498
        %3428 = vmatmul.mubr.bf16.gmra.mrb[0].mxu0 %v2497
        %v3429 = vpop.f32.mrb[0].mxu0
        %v3430 = vadd.f32 %v2648, %v3429
        %v3431 = vpop.f32.mrb[0].mxu0
        %v3432 = vadd.f32 %v2652, %v3431
        %v3433 = vpop.f32.mrb[0].mxu0
        %v3434 = vadd.f32 %v2648, %v3433
        %v3435 = vpop.f32.mrb[0].mxu0
        %v3436 = vadd.f32 %v2652, %v3435
        %3437 = vdwg.mxu0
        %3438 = vmatprep.subr.bf16.mxu0 %v3060
        %3439 = vmatpush1.bf16.msra.mxu0 %v3059
        %3440 = vmatprep.subr.bf16.mxu0 %v3068
        %3441 = vmatpush1.bf16.msra.mxu0 %v3067
        %3442 = vmatprep.subr.bf16.mxu0 %v3076
        %3443 = vmatpush1.bf16.msra.mxu0 %v3075
        %3444 = vmatprep.subr.bf16.mxu0 %v3084
        %3445 = vmatpush1.bf16.msra.mxu0 %v3083
        %3446 = vmatprep.subr.bf16.mxu0 %v3092
        %3447 = vmatpush1.bf16.msra.mxu0 %v3091
        %3448 = vmatprep.subr.bf16.mxu0 %v3100
        %3449 = vmatpush1.bf16.msra.mxu0 %v3099
        %3450 = vmatprep.subr.bf16.mxu0 %v3108
        %3451 = vmatpush1.bf16.msra.mxu0 %v3107
        %3452 = vmatprep.subr.bf16.mxu0 %v3116
        %3453 = vmatpush1.bf16.msra.mxu0 %v3115
        %3454 = vmatprep.subr.bf16.mxu0 %v3124
        %3455 = vmatpush1.bf16.msra.mxu0 %v3123
        %3456 = vmatprep.subr.bf16.mxu0 %v3132
        %3457 = vmatpush1.bf16.msra.mxu0 %v3131
        %3458 = vmatprep.subr.bf16.mxu0 %v3140
        %3459 = vmatpush1.bf16.msra.mxu0 %v3139
        %3460 = vmatprep.subr.bf16.mxu0 %v3148
        %3461 = vmatpush1.bf16.msra.mxu0 %v3147
        %3462 = vmatprep.subr.bf16.mxu0 %v3156
        %3463 = vmatpush1.bf16.msra.mxu0 %v3155
        %3464 = vmatprep.subr.bf16.mxu0 %v3164
        %3465 = vmatpush1.bf16.msra.mxu0 %v3163
        %3466 = vmatprep.subr.bf16.mxu0 %v3172
        %3467 = vmatpush1.bf16.msra.mxu0 %v3171
        %3468 = vmatprep.subr.bf16.mxu0 %v3180
        %3469 = vmatpush1.bf16.msra.mxu0 %v3179
        %3470 = vmatprep.mubr.bf16.mxu0 %v2498
        %3471 = vmatmul.mubr.bf16.gmra.mrb[0].mxu0 %v2497
        %v3472 = vpop.f32.mrb[0].mxu0
        %v3473 = vadd.f32 %v2656, %v3472
        %v3474 = vpop.f32.mrb[0].mxu0
        %v3475 = vadd.f32 %v2660, %v3474
        %v3476 = vpop.f32.mrb[0].mxu0
        %v3477 = vadd.f32 %v2656, %v3476
        %v3478 = vpop.f32.mrb[0].mxu0
        %v3479 = vadd.f32 %v2660, %v3478
        %3480 = vdwg.mxu0
        %v3481 = vmul.f32 %v3344, 0.5
        %v3482 = vmul.f32 %v3346, 0.5
        %v3483 = vmul.f32 %v3387, 0.5
        %v3484 = vmul.f32 %v3389, 0.5
        %v3485 = vmul.f32 %v3430, 0.5
        %v3486 = vmul.f32 %v3432, 0.5
        %v3487 = vmul.f32 %v3473, 0.5
        %v3488 = vmul.f32 %v3475, 0.5
        %v3489 = vmul.f32 %v3348, 0.5
        %v3490 = vmul.f32 %v3350, 0.5
        %v3491 = vmul.f32 %v3391, 0.5
        %v3492 = vmul.f32 %v3393, 0.5
        %v3493 = vmul.f32 %v3434, 0.5
        %v3494 = vmul.f32 %v3436, 0.5
        %v3495 = vmul.f32 %v3477, 0.5
        %v3496 = vmul.f32 %v3479, 0.5
        %v3497 = vmul.f32 %v3344, 0.044715
        %v3498 = vmul.f32 %v3346, 0.044715
        %v3499 = vmul.f32 %v3387, 0.044715
        %v3500 = vmul.f32 %v3389, 0.044715
        %v3501 = vmul.f32 %v3430, 0.044715
        %v3502 = vmul.f32 %v3432, 0.044715
        %v3503 = vmul.f32 %v3473, 0.044715
        %v3504 = vmul.f32 %v3475, 0.044715
        %v3505 = vmul.f32 %v3348, 0.044715
        %v3506 = vmul.f32 %v3350, 0.044715
        %v3507 = vmul.f32 %v3391, 0.044715
        %v3508 = vmul.f32 %v3393, 0.044715
        %v3509 = vmul.f32 %v3434, 0.044715
        %v3510 = vmul.f32 %v3436, 0.044715
        %v3511 = vmul.f32 %v3477, 0.044715
        %v3512 = vmul.f32 %v3479, 0.044715
        %v3513 = vmul.f32 %v3497, %v3344
        %v3514 = vmul.f32 %v3498, %v3346
        %v3515 = vmul.f32 %v3499, %v3387
        %v3516 = vmul.f32 %v3500, %v3389
        %v3517 = vmul.f32 %v3501, %v3430
        %v3518 = vmul.f32 %v3502, %v3432
        %v3519 = vmul.f32 %v3503, %v3473
        %v3520 = vmul.f32 %v3504, %v3475
        %v3521 = vmul.f32 %v3505, %v3348
        %v3522 = vmul.f32 %v3506, %v3350
        %v3523 = vmul.f32 %v3507, %v3391
        %v3524 = vmul.f32 %v3508, %v3393
        %v3525 = vmul.f32 %v3509, %v3434
        %v3526 = vmul.f32 %v3510, %v3436
        %v3527 = vmul.f32 %v3511, %v3477
        %v3528 = vmul.f32 %v3512, %v3479
        %v3529 = vmul.f32 %v3513, %v3344
        %v3530 = vmul.f32 %v3514, %v3346
        %v3531 = vmul.f32 %v3515, %v3387
        %v3532 = vmul.f32 %v3516, %v3389
        %v3533 = vmul.f32 %v3517, %v3430
        %v3534 = vmul.f32 %v3518, %v3432
        %v3535 = vmul.f32 %v3519, %v3473
        %v3536 = vmul.f32 %v3520, %v3475
        %v3537 = vmul.f32 %v3521, %v3348
        %v3538 = vmul.f32 %v3522, %v3350
        %v3539 = vmul.f32 %v3523, %v3391
        %v3540 = vmul.f32 %v3524, %v3393
        %v3541 = vmul.f32 %v3525, %v3434
        %v3542 = vmul.f32 %v3526, %v3436
        %v3543 = vmul.f32 %v3527, %v3477
        %v3544 = vmul.f32 %v3528, %v3479
        %v3545 = vadd.f32 %v3344, %v3529
        %v3546 = vadd.f32 %v3346, %v3530
        %v3547 = vadd.f32 %v3387, %v3531
        %v3548 = vadd.f32 %v3389, %v3532
        %v3549 = vadd.f32 %v3430, %v3533
        %v3550 = vadd.f32 %v3432, %v3534
        %v3551 = vadd.f32 %v3473, %v3535
        %v3552 = vadd.f32 %v3475, %v3536
        %v3553 = vadd.f32 %v3348, %v3537
        %v3554 = vadd.f32 %v3350, %v3538
        %v3555 = vadd.f32 %v3391, %v3539
        %v3556 = vadd.f32 %v3393, %v3540
        %v3557 = vadd.f32 %v3434, %v3541
        %v3558 = vadd.f32 %v3436, %v3542
        %v3559 = vadd.f32 %v3477, %v3543
        %v3560 = vadd.f32 %v3479, %v3544
        %v3561 = vmul.f32 %v3545, 0.7978846
        %v3562 = vmul.f32 %v3546, 0.7978846
        %v3563 = vmul.f32 %v3547, 0.7978846
        %v3564 = vmul.f32 %v3548, 0.7978846
        %v3565 = vmul.f32 %v3549, 0.7978846
        %v3566 = vmul.f32 %v3550, 0.7978846
        %v3567 = vmul.f32 %v3551, 0.7978846
        %v3568 = vmul.f32 %v3552, 0.7978846
        %v3569 = vmul.f32 %v3553, 0.7978846
        %v3570 = vmul.f32 %v3554, 0.7978846
        %v3571 = vmul.f32 %v3555, 0.7978846
        %v3572 = vmul.f32 %v3556, 0.7978846
        %v3573 = vmul.f32 %v3557, 0.7978846
        %v3574 = vmul.f32 %v3558, 0.7978846
        %v3575 = vmul.f32 %v3559, 0.7978846
        %v3576 = vmul.f32 %v3560, 0.7978846
        %v3577 = vtanh.pop %v3561
        %v3578 = vtanh.pop %v3562
        %v3579 = vtanh.pop %v3563
        %v3580 = vtanh.pop %v3564
        %v3581 = vtanh.pop %v3565
        %v3582 = vtanh.pop %v3566
        %v3583 = vtanh.pop %v3567
        %v3584 = vtanh.pop %v3568
        %v3585 = vtanh.pop %v3569
        %v3586 = vtanh.pop %v3570
        %v3587 = vtanh.pop %v3571
        %v3588 = vtanh.pop %v3572
        %v3589 = vtanh.pop %v3573
        %v3590 = vtanh.pop %v3574
        %v3591 = vtanh.pop %v3575
        %v3592 = vtanh.pop %v3576
        %v3593 = vadd.f32 %v3577, 1.0
        %v3594 = vadd.f32 %v3578, 1.0
        %v3595 = vadd.f32 %v3579, 1.0
        %v3596 = vadd.f32 %v3580, 1.0
        %v3597 = vadd.f32 %v3581, 1.0
        %v3598 = vadd.f32 %v3582, 1.0
        %v3599 = vadd.f32 %v3583, 1.0
        %v3600 = vadd.f32 %v3584, 1.0
        %v3601 = vadd.f32 %v3585, 1.0
        %v3602 = vadd.f32 %v3586, 1.0
        %v3603 = vadd.f32 %v3587, 1.0
        %v3604 = vadd.f32 %v3588, 1.0
        %v3605 = vadd.f32 %v3589, 1.0
        %v3606 = vadd.f32 %v3590, 1.0
        %v3607 = vadd.f32 %v3591, 1.0
        %v3608 = vadd.f32 %v3592, 1.0
        %v3609 = vmul.f32 %v3481, %v3593
        %v3610 = vmul.f32 %v3482, %v3594
        %v3611 = vmul.f32 %v3483, %v3595
        %v3612 = vmul.f32 %v3484, %v3596
        %v3613 = vmul.f32 %v3485, %v3597
        %v3614 = vmul.f32 %v3486, %v3598
        %v3615 = vmul.f32 %v3487, %v3599
        %v3616 = vmul.f32 %v3488, %v3600
        %v3617 = vmul.f32 %v3489, %v3601
        %v3618 = vmul.f32 %v3490, %v3602
        %v3619 = vmul.f32 %v3491, %v3603
        %v3620 = vmul.f32 %v3492, %v3604
        %v3621 = vmul.f32 %v3493, %v3605
        %v3622 = vmul.f32 %v3494, %v3606
        %v3623 = vmul.f32 %v3495, %v3607
        %v3624 = vmul.f32 %v3496, %v3608
        %v3625 = vpack.c.bf16 %v3617, %v3609
        %v3626 = vpack.c.bf16 %v3618, %v3610
        %v3627 = vpack.c.bf16 %v3619, %v3611
        %v3628 = vpack.c.bf16 %v3620, %v3612
        %v3629 = vpack.c.bf16 %v3621, %v3613
        %v3630 = vpack.c.bf16 %v3622, %v3614
        %v3631 = vpack.c.bf16 %v3623, %v3615
        %v3632 = vpack.c.bf16 %v3624, %v3616
        %v3633 = vld [vmem:[%s866] sm:$0xff]
        %v3634 = vld [vmem:[%s866 + $0x8] sm:$0xff]
        %v3635 = vld [vmem:[%s866 + $0x10] sm:$0xff]
        %v3636 = vld [vmem:[%s866 + $0x18] sm:$0xff]
        %v3637 = vld [vmem:[%s866 + $0x20] sm:$0xff]
        %v3638 = vld [vmem:[%s866 + $0x28] sm:$0xff]
        %v3639 = vld [vmem:[%s866 + $0x30] sm:$0xff]
        %v3640 = vld [vmem:[%s866 + $0x38] sm:$0xff]
        %v3641 = vld [vmem:[%s866 + $0x40] sm:$0xff]
        %v3642 = vld [vmem:[%s866 + $0x48] sm:$0xff]
        %v3643 = vld [vmem:[%s866 + $0x50] sm:$0xff]
        %v3644 = vld [vmem:[%s866 + $0x58] sm:$0xff]
        %v3645 = vld [vmem:[%s866 + $0x60] sm:$0xff]
        %v3646 = vld [vmem:[%s866 + $0x68] sm:$0xff]
        %v3647 = vld [vmem:[%s866 + $0x70] sm:$0xff]
        %v3648 = vld [vmem:[%s866 + $0x78] sm:$0xff]
        %v3649 = vld [vmem:[%s866 + $0x80] sm:$0xff]
        %v3650 = vld [vmem:[%s866 + $0x88] sm:$0xff]
        %v3651 = vld [vmem:[%s866 + $0x90] sm:$0xff]
        %v3652 = vld [vmem:[%s866 + $0x98] sm:$0xff]
        %v3653 = vld [vmem:[%s866 + $0xa0] sm:$0xff]
        %v3654 = vld [vmem:[%s866 + $0xa8] sm:$0xff]
        %v3655 = vld [vmem:[%s866 + $0xb0] sm:$0xff]
        %v3656 = vld [vmem:[%s866 + $0xb8] sm:$0xff]
        %v3657 = vld [vmem:[%s866 + $0xc0] sm:$0xff]
        %v3658 = vld [vmem:[%s866 + $0xc8] sm:$0xff]
        %v3659 = vld [vmem:[%s866 + $0xd0] sm:$0xff]
        %v3660 = vld [vmem:[%s866 + $0xd8] sm:$0xff]
        %v3661 = vld [vmem:[%s866 + $0xe0] sm:$0xff]
        %v3662 = vld [vmem:[%s866 + $0xe8] sm:$0xff]
        %v3663 = vld [vmem:[%s866 + $0xf0] sm:$0xff]
        %v3664 = vld [vmem:[%s866 + $0xf8] sm:$0xff]
        %v3665 = vld [vmem:[%s866 + $0x100] sm:$0xff]
        %v3666 = vld [vmem:[%s866 + $0x108] sm:$0xff]
        %v3667 = vld [vmem:[%s866 + $0x110] sm:$0xff]
        %v3668 = vld [vmem:[%s866 + $0x118] sm:$0xff]
        %v3669 = vld [vmem:[%s866 + $0x120] sm:$0xff]
        %v3670 = vld [vmem:[%s866 + $0x128] sm:$0xff]
        %v3671 = vld [vmem:[%s866 + $0x130] sm:$0xff]
        %v3672 = vld [vmem:[%s866 + $0x138] sm:$0xff]
        %v3673 = vld [vmem:[%s866 + $0x140] sm:$0xff]
        %v3674 = vld [vmem:[%s866 + $0x148] sm:$0xff]
        %v3675 = vld [vmem:[%s866 + $0x150] sm:$0xff]
        %v3676 = vld [vmem:[%s866 + $0x158] sm:$0xff]
        %v3677 = vld [vmem:[%s866 + $0x160] sm:$0xff]
        %v3678 = vld [vmem:[%s866 + $0x168] sm:$0xff]
        %v3679 = vld [vmem:[%s866 + $0x170] sm:$0xff]
        %v3680 = vld [vmem:[%s866 + $0x178] sm:$0xff]
        %v3681 = vld [vmem:[%s866 + $0x180] sm:$0xff]
        %v3682 = vld [vmem:[%s866 + $0x188] sm:$0xff]
        %v3683 = vld [vmem:[%s866 + $0x190] sm:$0xff]
        %v3684 = vld [vmem:[%s866 + $0x198] sm:$0xff]
        %v3685 = vld [vmem:[%s866 + $0x1a0] sm:$0xff]
        %v3686 = vld [vmem:[%s866 + $0x1a8] sm:$0xff]
        %v3687 = vld [vmem:[%s866 + $0x1b0] sm:$0xff]
        %v3688 = vld [vmem:[%s866 + $0x1b8] sm:$0xff]
        %v3689 = vld [vmem:[%s866 + $0x1c0] sm:$0xff]
        %v3690 = vld [vmem:[%s866 + $0x1c8] sm:$0xff]
        %v3691 = vld [vmem:[%s866 + $0x1d0] sm:$0xff]
        %v3692 = vld [vmem:[%s866 + $0x1d8] sm:$0xff]
        %v3693 = vld [vmem:[%s866 + $0x1e0] sm:$0xff]
        %v3694 = vld [vmem:[%s866 + $0x1e8] sm:$0xff]
        %v3695 = vld [vmem:[%s866 + $0x1f0] sm:$0xff]
        %v3696 = vld [vmem:[%s866 + $0x1f8] sm:$0xff]
        %v3697 = vld [vmem:[%s866 + $0x200] sm:$0xff]
        %v3698 = vld [vmem:[%s866 + $0x208] sm:$0xff]
        %v3699 = vld [vmem:[%s866 + $0x210] sm:$0xff]
        %v3700 = vld [vmem:[%s866 + $0x218] sm:$0xff]
        %v3701 = vld [vmem:[%s866 + $0x220] sm:$0xff]
        %v3702 = vld [vmem:[%s866 + $0x228] sm:$0xff]
        %v3703 = vld [vmem:[%s866 + $0x230] sm:$0xff]
        %v3704 = vld [vmem:[%s866 + $0x238] sm:$0xff]
        %v3705 = vld [vmem:[%s866 + $0x240] sm:$0xff]
        %v3706 = vld [vmem:[%s866 + $0x248] sm:$0xff]
        %v3707 = vld [vmem:[%s866 + $0x250] sm:$0xff]
        %v3708 = vld [vmem:[%s866 + $0x258] sm:$0xff]
        %v3709 = vld [vmem:[%s866 + $0x260] sm:$0xff]
        %v3710 = vld [vmem:[%s866 + $0x268] sm:$0xff]
        %v3711 = vld [vmem:[%s866 + $0x270] sm:$0xff]
        %v3712 = vld [vmem:[%s866 + $0x278] sm:$0xff]
        %v3713 = vld [vmem:[%s866 + $0x280] sm:$0xff]
        %v3714 = vld [vmem:[%s866 + $0x288] sm:$0xff]
        %v3715 = vld [vmem:[%s866 + $0x290] sm:$0xff]
        %v3716 = vld [vmem:[%s866 + $0x298] sm:$0xff]
        %v3717 = vld [vmem:[%s866 + $0x2a0] sm:$0xff]
        %v3718 = vld [vmem:[%s866 + $0x2a8] sm:$0xff]
        %v3719 = vld [vmem:[%s866 + $0x2b0] sm:$0xff]
        %v3720 = vld [vmem:[%s866 + $0x2b8] sm:$0xff]
        %v3721 = vld [vmem:[%s866 + $0x2c0] sm:$0xff]
        %v3722 = vld [vmem:[%s866 + $0x2c8] sm:$0xff]
        %v3723 = vld [vmem:[%s866 + $0x2d0] sm:$0xff]
        %v3724 = vld [vmem:[%s866 + $0x2d8] sm:$0xff]
        %v3725 = vld [vmem:[%s866 + $0x2e0] sm:$0xff]
        %v3726 = vld [vmem:[%s866 + $0x2e8] sm:$0xff]
        %v3727 = vld [vmem:[%s866 + $0x2f0] sm:$0xff]
        %v3728 = vld [vmem:[%s866 + $0x2f8] sm:$0xff]
        %v3729 = vld [vmem:[%s866 + $0x300] sm:$0xff]
        %v3730 = vld [vmem:[%s866 + $0x308] sm:$0xff]
        %v3731 = vld [vmem:[%s866 + $0x310] sm:$0xff]
        %v3732 = vld [vmem:[%s866 + $0x318] sm:$0xff]
        %v3733 = vld [vmem:[%s866 + $0x320] sm:$0xff]
        %v3734 = vld [vmem:[%s866 + $0x328] sm:$0xff]
        %v3735 = vld [vmem:[%s866 + $0x330] sm:$0xff]
        %v3736 = vld [vmem:[%s866 + $0x338] sm:$0xff]
        %v3737 = vld [vmem:[%s866 + $0x340] sm:$0xff]
        %v3738 = vld [vmem:[%s866 + $0x348] sm:$0xff]
        %v3739 = vld [vmem:[%s866 + $0x350] sm:$0xff]
        %v3740 = vld [vmem:[%s866 + $0x358] sm:$0xff]
        %v3741 = vld [vmem:[%s866 + $0x360] sm:$0xff]
        %v3742 = vld [vmem:[%s866 + $0x368] sm:$0xff]
        %v3743 = vld [vmem:[%s866 + $0x370] sm:$0xff]
        %v3744 = vld [vmem:[%s866 + $0x378] sm:$0xff]
        %v3745 = vld [vmem:[%s866 + $0x380] sm:$0xff]
        %v3746 = vld [vmem:[%s866 + $0x388] sm:$0xff]
        %v3747 = vld [vmem:[%s866 + $0x390] sm:$0xff]
        %v3748 = vld [vmem:[%s866 + $0x398] sm:$0xff]
        %v3749 = vld [vmem:[%s866 + $0x3a0] sm:$0xff]
        %v3750 = vld [vmem:[%s866 + $0x3a8] sm:$0xff]
        %v3751 = vld [vmem:[%s866 + $0x3b0] sm:$0xff]
        %v3752 = vld [vmem:[%s866 + $0x3b8] sm:$0xff]
        %v3753 = vld [vmem:[%s866 + $0x3c0] sm:$0xff]
        %v3754 = vld [vmem:[%s866 + $0x3c8] sm:$0xff]
        %v3755 = vld [vmem:[%s866 + $0x3d0] sm:$0xff]
        %v3756 = vld [vmem:[%s866 + $0x3d8] sm:$0xff]
        %v3757 = vld [vmem:[%s866 + $0x3e0] sm:$0xff]
        %v3758 = vld [vmem:[%s866 + $0x3e8] sm:$0xff]
        %v3759 = vld [vmem:[%s866 + $0x3f0] sm:$0xff]
        %v3760 = vld [vmem:[%s866 + $0x3f8] sm:$0xff]
        %v3761 = vld [vmem:[%s1002] sm:$0x3]
        %v3763 = vlaneseq
        %v3764 = vshrl.u32 %v3763, 7
        %v3765 = vsub.s32 0, %v3764
        %v3766 = vrot.slane %v3761, %v3765
        %v3767 = vlaneseq
        %v3768 = vshrl.u32 %v3767, 7
        %v3769 = vsub.s32 1, %v3768
        %v3770 = vrot.slane %v3761, %v3769
        %v3901 = vunpack.c.l.b16 %v3633
        %v3902 = vunpack.c.h.b16 %v3633
        %v3903 = vunpack.c.l.b16 %v3634
        %v3904 = vunpack.c.h.b16 %v3634
        %v3905 = vunpack.c.l.b16 %v3635
        %v3906 = vunpack.c.h.b16 %v3635
        %v3907 = vunpack.c.l.b16 %v3636
        %v3908 = vunpack.c.h.b16 %v3636
        %v3909 = vunpack.c.l.b16 %v3637
        %v3910 = vunpack.c.h.b16 %v3637
        %v3911 = vunpack.c.l.b16 %v3638
        %v3912 = vunpack.c.h.b16 %v3638
        %v3913 = vunpack.c.l.b16 %v3639
        %v3914 = vunpack.c.h.b16 %v3639
        %v3915 = vunpack.c.l.b16 %v3640
        %v3916 = vunpack.c.h.b16 %v3640
        %v3917 = vunpack.c.l.b16 %v3641
        %v3918 = vunpack.c.h.b16 %v3641
        %v3919 = vunpack.c.l.b16 %v3642
        %v3920 = vunpack.c.h.b16 %v3642
        %v3921 = vunpack.c.l.b16 %v3643
        %v3922 = vunpack.c.h.b16 %v3643
        %v3923 = vunpack.c.l.b16 %v3644
        %v3924 = vunpack.c.h.b16 %v3644
        %v3925 = vunpack.c.l.b16 %v3645
        %v3926 = vunpack.c.h.b16 %v3645
        %v3927 = vunpack.c.l.b16 %v3646
        %v3928 = vunpack.c.h.b16 %v3646
        %v3929 = vunpack.c.l.b16 %v3647
        %v3930 = vunpack.c.h.b16 %v3647
        %v3931 = vunpack.c.l.b16 %v3648
        %v3932 = vunpack.c.h.b16 %v3648
        %v3933 = vunpack.c.l.b16 %v3649
        %v3934 = vunpack.c.h.b16 %v3649
        %v3935 = vunpack.c.l.b16 %v3650
        %v3936 = vunpack.c.h.b16 %v3650
        %v3937 = vunpack.c.l.b16 %v3651
        %v3938 = vunpack.c.h.b16 %v3651
        %v3939 = vunpack.c.l.b16 %v3652
        %v3940 = vunpack.c.h.b16 %v3652
        %v3941 = vunpack.c.l.b16 %v3653
        %v3942 = vunpack.c.h.b16 %v3653
        %v3943 = vunpack.c.l.b16 %v3654
        %v3944 = vunpack.c.h.b16 %v3654
        %v3945 = vunpack.c.l.b16 %v3655
        %v3946 = vunpack.c.h.b16 %v3655
        %v3947 = vunpack.c.l.b16 %v3656
        %v3948 = vunpack.c.h.b16 %v3656
        %v3949 = vunpack.c.l.b16 %v3657
        %v3950 = vunpack.c.h.b16 %v3657
        %v3951 = vunpack.c.l.b16 %v3658
        %v3952 = vunpack.c.h.b16 %v3658
        %v3953 = vunpack.c.l.b16 %v3659
        %v3954 = vunpack.c.h.b16 %v3659
        %v3955 = vunpack.c.l.b16 %v3660
        %v3956 = vunpack.c.h.b16 %v3660
        %v3957 = vunpack.c.l.b16 %v3661
        %v3958 = vunpack.c.h.b16 %v3661
        %v3959 = vunpack.c.l.b16 %v3662
        %v3960 = vunpack.c.h.b16 %v3662
        %v3961 = vunpack.c.l.b16 %v3663
        %v3962 = vunpack.c.h.b16 %v3663
        %v3963 = vunpack.c.l.b16 %v3664
        %v3964 = vunpack.c.h.b16 %v3664
        %v3965 = vunpack.c.l.b16 %v3665
        %v3966 = vunpack.c.h.b16 %v3665
        %v3967 = vunpack.c.l.b16 %v3666
        %v3968 = vunpack.c.h.b16 %v3666
        %v3969 = vunpack.c.l.b16 %v3667
        %v3970 = vunpack.c.h.b16 %v3667
        %v3971 = vunpack.c.l.b16 %v3668
        %v3972 = vunpack.c.h.b16 %v3668
        %v3973 = vunpack.c.l.b16 %v3669
        %v3974 = vunpack.c.h.b16 %v3669
        %v3975 = vunpack.c.l.b16 %v3670
        %v3976 = vunpack.c.h.b16 %v3670
        %v3977 = vunpack.c.l.b16 %v3671
        %v3978 = vunpack.c.h.b16 %v3671
        %v3979 = vunpack.c.l.b16 %v3672
        %v3980 = vunpack.c.h.b16 %v3672
        %v3981 = vunpack.c.l.b16 %v3673
        %v3982 = vunpack.c.h.b16 %v3673
        %v3983 = vunpack.c.l.b16 %v3674
        %v3984 = vunpack.c.h.b16 %v3674
        %v3985 = vunpack.c.l.b16 %v3675
        %v3986 = vunpack.c.h.b16 %v3675
        %v3987 = vunpack.c.l.b16 %v3676
        %v3988 = vunpack.c.h.b16 %v3676
        %v3989 = vunpack.c.l.b16 %v3677
        %v3990 = vunpack.c.h.b16 %v3677
        %v3991 = vunpack.c.l.b16 %v3678
        %v3992 = vunpack.c.h.b16 %v3678
        %v3993 = vunpack.c.l.b16 %v3679
        %v3994 = vunpack.c.h.b16 %v3679
        %v3995 = vunpack.c.l.b16 %v3680
        %v3996 = vunpack.c.h.b16 %v3680
        %v3997 = vunpack.c.l.b16 %v3681
        %v3998 = vunpack.c.h.b16 %v3681
        %v3999 = vunpack.c.l.b16 %v3682
        %v4000 = vunpack.c.h.b16 %v3682
        %v4001 = vunpack.c.l.b16 %v3683
        %v4002 = vunpack.c.h.b16 %v3683
        %v4003 = vunpack.c.l.b16 %v3684
        %v4004 = vunpack.c.h.b16 %v3684
        %v4005 = vunpack.c.l.b16 %v3685
        %v4006 = vunpack.c.h.b16 %v3685
        %v4007 = vunpack.c.l.b16 %v3686
        %v4008 = vunpack.c.h.b16 %v3686
        %v4009 = vunpack.c.l.b16 %v3687
        %v4010 = vunpack.c.h.b16 %v3687
        %v4011 = vunpack.c.l.b16 %v3688
        %v4012 = vunpack.c.h.b16 %v3688
        %v4013 = vunpack.c.l.b16 %v3689
        %v4014 = vunpack.c.h.b16 %v3689
        %v4015 = vunpack.c.l.b16 %v3690
        %v4016 = vunpack.c.h.b16 %v3690
        %v4017 = vunpack.c.l.b16 %v3691
        %v4018 = vunpack.c.h.b16 %v3691
        %v4019 = vunpack.c.l.b16 %v3692
        %v4020 = vunpack.c.h.b16 %v3692
        %v4021 = vunpack.c.l.b16 %v3693
        %v4022 = vunpack.c.h.b16 %v3693
        %v4023 = vunpack.c.l.b16 %v3694
        %v4024 = vunpack.c.h.b16 %v3694
        %v4025 = vunpack.c.l.b16 %v3695
        %v4026 = vunpack.c.h.b16 %v3695
        %v4027 = vunpack.c.l.b16 %v3696
        %v4028 = vunpack.c.h.b16 %v3696
        %v4029 = vunpack.c.l.b16 %v3697
        %v4030 = vunpack.c.h.b16 %v3697
        %v4031 = vunpack.c.l.b16 %v3698
        %v4032 = vunpack.c.h.b16 %v3698
        %v4033 = vunpack.c.l.b16 %v3699
        %v4034 = vunpack.c.h.b16 %v3699
        %v4035 = vunpack.c.l.b16 %v3700
        %v4036 = vunpack.c.h.b16 %v3700
        %v4037 = vunpack.c.l.b16 %v3701
        %v4038 = vunpack.c.h.b16 %v3701
        %v4039 = vunpack.c.l.b16 %v3702
        %v4040 = vunpack.c.h.b16 %v3702
        %v4041 = vunpack.c.l.b16 %v3703
        %v4042 = vunpack.c.h.b16 %v3703
        %v4043 = vunpack.c.l.b16 %v3704
        %v4044 = vunpack.c.h.b16 %v3704
        %v4045 = vunpack.c.l.b16 %v3705
        %v4046 = vunpack.c.h.b16 %v3705
        %v4047 = vunpack.c.l.b16 %v3706
        %v4048 = vunpack.c.h.b16 %v3706
        %v4049 = vunpack.c.l.b16 %v3707
        %v4050 = vunpack.c.h.b16 %v3707
        %v4051 = vunpack.c.l.b16 %v3708
        %v4052 = vunpack.c.h.b16 %v3708
        %v4053 = vunpack.c.l.b16 %v3709
        %v4054 = vunpack.c.h.b16 %v3709
        %v4055 = vunpack.c.l.b16 %v3710
        %v4056 = vunpack.c.h.b16 %v3710
        %v4057 = vunpack.c.l.b16 %v3711
        %v4058 = vunpack.c.h.b16 %v3711
        %v4059 = vunpack.c.l.b16 %v3712
        %v4060 = vunpack.c.h.b16 %v3712
        %v4061 = vunpack.c.l.b16 %v3713
        %v4062 = vunpack.c.h.b16 %v3713
        %v4063 = vunpack.c.l.b16 %v3714
        %v4064 = vunpack.c.h.b16 %v3714
        %v4065 = vunpack.c.l.b16 %v3715
        %v4066 = vunpack.c.h.b16 %v3715
        %v4067 = vunpack.c.l.b16 %v3716
        %v4068 = vunpack.c.h.b16 %v3716
        %v4069 = vunpack.c.l.b16 %v3717
        %v4070 = vunpack.c.h.b16 %v3717
        %v4071 = vunpack.c.l.b16 %v3718
        %v4072 = vunpack.c.h.b16 %v3718
        %v4073 = vunpack.c.l.b16 %v3719
        %v4074 = vunpack.c.h.b16 %v3719
        %v4075 = vunpack.c.l.b16 %v3720
        %v4076 = vunpack.c.h.b16 %v3720
        %v4077 = vunpack.c.l.b16 %v3721
        %v4078 = vunpack.c.h.b16 %v3721
        %v4079 = vunpack.c.l.b16 %v3722
        %v4080 = vunpack.c.h.b16 %v3722
        %v4081 = vunpack.c.l.b16 %v3723
        %v4082 = vunpack.c.h.b16 %v3723
        %v4083 = vunpack.c.l.b16 %v3724
        %v4084 = vunpack.c.h.b16 %v3724
        %v4085 = vunpack.c.l.b16 %v3725
        %v4086 = vunpack.c.h.b16 %v3725
        %v4087 = vunpack.c.l.b16 %v3726
        %v4088 = vunpack.c.h.b16 %v3726
        %v4089 = vunpack.c.l.b16 %v3727
        %v4090 = vunpack.c.h.b16 %v3727
        %v4091 = vunpack.c.l.b16 %v3728
        %v4092 = vunpack.c.h.b16 %v3728
        %v4093 = vunpack.c.l.b16 %v3729
        %v4094 = vunpack.c.h.b16 %v3729
        %v4095 = vunpack.c.l.b16 %v3730
        %v4096 = vunpack.c.h.b16 %v3730
        %v4097 = vunpack.c.l.b16 %v3731
        %v4098 = vunpack.c.h.b16 %v3731
        %v4099 = vunpack.c.l.b16 %v3732
        %v4100 = vunpack.c.h.b16 %v3732
        %v4101 = vunpack.c.l.b16 %v3733
        %v4102 = vunpack.c.h.b16 %v3733
        %v4103 = vunpack.c.l.b16 %v3734
        %v4104 = vunpack.c.h.b16 %v3734
        %v4105 = vunpack.c.l.b16 %v3735
        %v4106 = vunpack.c.h.b16 %v3735
        %v4107 = vunpack.c.l.b16 %v3736
        %v4108 = vunpack.c.h.b16 %v3736
        %v4109 = vunpack.c.l.b16 %v3737
        %v4110 = vunpack.c.h.b16 %v3737
        %v4111 = vunpack.c.l.b16 %v3738
        %v4112 = vunpack.c.h.b16 %v3738
        %v4113 = vunpack.c.l.b16 %v3739
        %v4114 = vunpack.c.h.b16 %v3739
        %v4115 = vunpack.c.l.b16 %v3740
        %v4116 = vunpack.c.h.b16 %v3740
        %v4117 = vunpack.c.l.b16 %v3741
        %v4118 = vunpack.c.h.b16 %v3741
        %v4119 = vunpack.c.l.b16 %v3742
        %v4120 = vunpack.c.h.b16 %v3742
        %v4121 = vunpack.c.l.b16 %v3743
        %v4122 = vunpack.c.h.b16 %v3743
        %v4123 = vunpack.c.l.b16 %v3744
        %v4124 = vunpack.c.h.b16 %v3744
        %v4125 = vunpack.c.l.b16 %v3745
        %v4126 = vunpack.c.h.b16 %v3745
        %v4127 = vunpack.c.l.b16 %v3746
        %v4128 = vunpack.c.h.b16 %v3746
        %v4129 = vunpack.c.l.b16 %v3747
        %v4130 = vunpack.c.h.b16 %v3747
        %v4131 = vunpack.c.l.b16 %v3748
        %v4132 = vunpack.c.h.b16 %v3748
        %v4133 = vunpack.c.l.b16 %v3749
        %v4134 = vunpack.c.h.b16 %v3749
        %v4135 = vunpack.c.l.b16 %v3750
        %v4136 = vunpack.c.h.b16 %v3750
        %v4137 = vunpack.c.l.b16 %v3751
        %v4138 = vunpack.c.h.b16 %v3751
        %v4139 = vunpack.c.l.b16 %v3752
        %v4140 = vunpack.c.h.b16 %v3752
        %v4141 = vunpack.c.l.b16 %v3753
        %v4142 = vunpack.c.h.b16 %v3753
        %v4143 = vunpack.c.l.b16 %v3754
        %v4144 = vunpack.c.h.b16 %v3754
        %v4145 = vunpack.c.l.b16 %v3755
        %v4146 = vunpack.c.h.b16 %v3755
        %v4147 = vunpack.c.l.b16 %v3756
        %v4148 = vunpack.c.h.b16 %v3756
        %v4149 = vunpack.c.l.b16 %v3757
        %v4150 = vunpack.c.h.b16 %v3757
        %v4151 = vunpack.c.l.b16 %v3758
        %v4152 = vunpack.c.h.b16 %v3758
        %v4153 = vunpack.c.l.b16 %v3759
        %v4154 = vunpack.c.h.b16 %v3759
        %v4155 = vunpack.c.l.b16 %v3760
        %v4156 = vunpack.c.h.b16 %v3760
        %v4157 = vpack.c.b16 %v3903, %v3901
        %v4158 = vpack.c.b16 %v3904, %v3902
        %v4159 = vpack.c.b16 %v3907, %v3905
        %v4160 = vpack.c.b16 %v3908, %v3906
        %v4161 = vpack.c.b16 %v3911, %v3909
        %v4162 = vpack.c.b16 %v3912, %v3910
        %v4163 = vpack.c.b16 %v3915, %v3913
        %v4164 = vpack.c.b16 %v3916, %v3914
        %v4165 = vpack.c.b16 %v3919, %v3917
        %v4166 = vpack.c.b16 %v3920, %v3918
        %v4167 = vpack.c.b16 %v3923, %v3921
        %v4168 = vpack.c.b16 %v3924, %v3922
        %v4169 = vpack.c.b16 %v3927, %v3925
        %v4170 = vpack.c.b16 %v3928, %v3926
        %v4171 = vpack.c.b16 %v3931, %v3929
        %v4172 = vpack.c.b16 %v3932, %v3930
        %v4173 = vpack.c.b16 %v3935, %v3933
        %v4174 = vpack.c.b16 %v3936, %v3934
        %v4175 = vpack.c.b16 %v3939, %v3937
        %v4176 = vpack.c.b16 %v3940, %v3938
        %v4177 = vpack.c.b16 %v3943, %v3941
        %v4178 = vpack.c.b16 %v3944, %v3942
        %v4179 = vpack.c.b16 %v3947, %v3945
        %v4180 = vpack.c.b16 %v3948, %v3946
        %v4181 = vpack.c.b16 %v3951, %v3949
        %v4182 = vpack.c.b16 %v3952, %v3950
        %v4183 = vpack.c.b16 %v3955, %v3953
        %v4184 = vpack.c.b16 %v3956, %v3954
        %v4185 = vpack.c.b16 %v3959, %v3957
        %v4186 = vpack.c.b16 %v3960, %v3958
        %v4187 = vpack.c.b16 %v3963, %v3961
        %v4188 = vpack.c.b16 %v3964, %v3962
        %v4189 = vpack.c.b16 %v3967, %v3965
        %v4190 = vpack.c.b16 %v3968, %v3966
        %v4191 = vpack.c.b16 %v3971, %v3969
        %v4192 = vpack.c.b16 %v3972, %v3970
        %v4193 = vpack.c.b16 %v3975, %v3973
        %v4194 = vpack.c.b16 %v3976, %v3974
        %v4195 = vpack.c.b16 %v3979, %v3977
        %v4196 = vpack.c.b16 %v3980, %v3978
        %v4197 = vpack.c.b16 %v3983, %v3981
        %v4198 = vpack.c.b16 %v3984, %v3982
        %v4199 = vpack.c.b16 %v3987, %v3985
        %v4200 = vpack.c.b16 %v3988, %v3986
        %v4201 = vpack.c.b16 %v3991, %v3989
        %v4202 = vpack.c.b16 %v3992, %v3990
        %v4203 = vpack.c.b16 %v3995, %v3993
        %v4204 = vpack.c.b16 %v3996, %v3994
        %v4205 = vpack.c.b16 %v3999, %v3997
        %v4206 = vpack.c.b16 %v4000, %v3998
        %v4207 = vpack.c.b16 %v4003, %v4001
        %v4208 = vpack.c.b16 %v4004, %v4002
        %v4209 = vpack.c.b16 %v4007, %v4005
        %v4210 = vpack.c.b16 %v4008, %v4006
        %v4211 = vpack.c.b16 %v4011, %v4009
        %v4212 = vpack.c.b16 %v4012, %v4010
        %v4213 = vpack.c.b16 %v4015, %v4013
        %v4214 = vpack.c.b16 %v4016, %v4014
        %v4215 = vpack.c.b16 %v4019, %v4017
        %v4216 = vpack.c.b16 %v4020, %v4018
        %v4217 = vpack.c.b16 %v4023, %v4021
        %v4218 = vpack.c.b16 %v4024, %v4022
        %v4219 = vpack.c.b16 %v4027, %v4025
        %v4220 = vpack.c.b16 %v4028, %v4026
        %v4221 = vpack.c.b16 %v4031, %v4029
        %v4222 = vpack.c.b16 %v4032, %v4030
        %v4223 = vpack.c.b16 %v4035, %v4033
        %v4224 = vpack.c.b16 %v4036, %v4034
        %v4225 = vpack.c.b16 %v4039, %v4037
        %v4226 = vpack.c.b16 %v4040, %v4038
        %v4227 = vpack.c.b16 %v4043, %v4041
        %v4228 = vpack.c.b16 %v4044, %v4042
        %v4229 = vpack.c.b16 %v4047, %v4045
        %v4230 = vpack.c.b16 %v4048, %v4046
        %v4231 = vpack.c.b16 %v4051, %v4049
        %v4232 = vpack.c.b16 %v4052, %v4050
        %v4233 = vpack.c.b16 %v4055, %v4053
        %v4234 = vpack.c.b16 %v4056, %v4054
        %v4235 = vpack.c.b16 %v4059, %v4057
        %v4236 = vpack.c.b16 %v4060, %v4058
        %v4237 = vpack.c.b16 %v4063, %v4061
        %v4238 = vpack.c.b16 %v4064, %v4062
        %v4239 = vpack.c.b16 %v4067, %v4065
        %v4240 = vpack.c.b16 %v4068, %v4066
        %v4241 = vpack.c.b16 %v4071, %v4069
        %v4242 = vpack.c.b16 %v4072, %v4070
        %v4243 = vpack.c.b16 %v4075, %v4073
        %v4244 = vpack.c.b16 %v4076, %v4074
        %v4245 = vpack.c.b16 %v4079, %v4077
        %v4246 = vpack.c.b16 %v4080, %v4078
        %v4247 = vpack.c.b16 %v4083, %v4081
        %v4248 = vpack.c.b16 %v4084, %v4082
        %v4249 = vpack.c.b16 %v4087, %v4085
        %v4250 = vpack.c.b16 %v4088, %v4086
        %v4251 = vpack.c.b16 %v4091, %v4089
        %v4252 = vpack.c.b16 %v4092, %v4090
        %v4253 = vpack.c.b16 %v4095, %v4093
        %v4254 = vpack.c.b16 %v4096, %v4094
        %v4255 = vpack.c.b16 %v4099, %v4097
        %v4256 = vpack.c.b16 %v4100, %v4098
        %v4257 = vpack.c.b16 %v4103, %v4101
        %v4258 = vpack.c.b16 %v4104, %v4102
        %v4259 = vpack.c.b16 %v4107, %v4105
        %v4260 = vpack.c.b16 %v4108, %v4106
        %v4261 = vpack.c.b16 %v4111, %v4109
        %v4262 = vpack.c.b16 %v4112, %v4110
        %v4263 = vpack.c.b16 %v4115, %v4113
        %v4264 = vpack.c.b16 %v4116, %v4114
        %v4265 = vpack.c.b16 %v4119, %v4117
        %v4266 = vpack.c.b16 %v4120, %v4118
        %v4267 = vpack.c.b16 %v4123, %v4121
        %v4268 = vpack.c.b16 %v4124, %v4122
        %v4269 = vpack.c.b16 %v4127, %v4125
        %v4270 = vpack.c.b16 %v4128, %v4126
        %v4271 = vpack.c.b16 %v4131, %v4129
        %v4272 = vpack.c.b16 %v4132, %v4130
        %v4273 = vpack.c.b16 %v4135, %v4133
        %v4274 = vpack.c.b16 %v4136, %v4134
        %v4275 = vpack.c.b16 %v4139, %v4137
        %v4276 = vpack.c.b16 %v4140, %v4138
        %v4277 = vpack.c.b16 %v4143, %v4141
        %v4278 = vpack.c.b16 %v4144, %v4142
        %v4279 = vpack.c.b16 %v4147, %v4145
        %v4280 = vpack.c.b16 %v4148, %v4146
        %v4281 = vpack.c.b16 %v4151, %v4149
        %v4282 = vpack.c.b16 %v4152, %v4150
        %v4283 = vpack.c.b16 %v4155, %v4153
        %v4284 = vpack.c.b16 %v4156, %v4154
        %4413 = vmatprep.subr.bf16.mxu0 %v4158
        %4414 = vmatpush1.bf16.msra.mxu0 %v4157
        %4415 = vmatprep.subr.bf16.mxu0 %v4160
        %4416 = vmatpush1.bf16.msra.mxu0 %v4159
        %4417 = vmatprep.subr.bf16.mxu0 %v4162
        %4418 = vmatpush1.bf16.msra.mxu0 %v4161
        %4419 = vmatprep.subr.bf16.mxu0 %v4164
        %4420 = vmatpush1.bf16.msra.mxu0 %v4163
        %4421 = vmatprep.subr.bf16.mxu0 %v4166
        %4422 = vmatpush1.bf16.msra.mxu0 %v4165
        %4423 = vmatprep.subr.bf16.mxu0 %v4168
        %4424 = vmatpush1.bf16.msra.mxu0 %v4167
        %4425 = vmatprep.subr.bf16.mxu0 %v4170
        %4426 = vmatpush1.bf16.msra.mxu0 %v4169
        %4427 = vmatprep.subr.bf16.mxu0 %v4172
        %4428 = vmatpush1.bf16.msra.mxu0 %v4171
        %4429 = vmatprep.subr.bf16.mxu0 %v4174
        %4430 = vmatpush1.bf16.msra.mxu0 %v4173
        %4431 = vmatprep.subr.bf16.mxu0 %v4176
        %4432 = vmatpush1.bf16.msra.mxu0 %v4175
        %4433 = vmatprep.subr.bf16.mxu0 %v4178
        %4434 = vmatpush1.bf16.msra.mxu0 %v4177
        %4435 = vmatprep.subr.bf16.mxu0 %v4180
        %4436 = vmatpush1.bf16.msra.mxu0 %v4179
        %4437 = vmatprep.subr.bf16.mxu0 %v4182
        %4438 = vmatpush1.bf16.msra.mxu0 %v4181
        %4439 = vmatprep.subr.bf16.mxu0 %v4184
        %4440 = vmatpush1.bf16.msra.mxu0 %v4183
        %4441 = vmatprep.subr.bf16.mxu0 %v4186
        %4442 = vmatpush1.bf16.msra.mxu0 %v4185
        %4443 = vmatprep.subr.bf16.mxu0 %v4188
        %4444 = vmatpush1.bf16.msra.mxu0 %v4187
        %4445 = vmatprep.mubr.bf16.mxu0 %v3626
        %4446 = vmatmul.mubr.bf16.gmra.mrb[0].mxu0 %v3625
        %v4447 = vpop.f32.mrb[0].mxu0
        %v4448 = vadd.f32 %v3766, %v4447
        %v4449 = vpop.f32.mrb[0].mxu0
        %v4450 = vadd.f32 %v3770, %v4449
        %v4451 = vpop.f32.mrb[0].mxu0
        %v4452 = vadd.f32 %v3766, %v4451
        %v4453 = vpop.f32.mrb[0].mxu0
        %v4454 = vadd.f32 %v3770, %v4453
        %4455 = vdwg.mxu0
        %4456 = vmatprep.subr.bf16.mxu0 %v4190
        %4457 = vmatpush1.bf16.msra.mxu0 %v4189
        %4458 = vmatprep.subr.bf16.mxu0 %v4192
        %4459 = vmatpush1.bf16.msra.mxu0 %v4191
        %4460 = vmatprep.subr.bf16.mxu0 %v4194
        %4461 = vmatpush1.bf16.msra.mxu0 %v4193
        %4462 = vmatprep.subr.bf16.mxu0 %v4196
        %4463 = vmatpush1.bf16.msra.mxu0 %v4195
        %4464 = vmatprep.subr.bf16.mxu0 %v4198
        %4465 = vmatpush1.bf16.msra.mxu0 %v4197
        %4466 = vmatprep.subr.bf16.mxu0 %v4200
        %4467 = vmatpush1.bf16.msra.mxu0 %v4199
        %4468 = vmatprep.subr.bf16.mxu0 %v4202
        %4469 = vmatpush1.bf16.msra.mxu0 %v4201
        %4470 = vmatprep.subr.bf16.mxu0 %v4204
        %4471 = vmatpush1.bf16.msra.mxu0 %v4203
        %4472 = vmatprep.subr.bf16.mxu0 %v4206
        %4473 = vmatpush1.bf16.msra.mxu0 %v4205
        %4474 = vmatprep.subr.bf16.mxu0 %v4208
        %4475 = vmatpush1.bf16.msra.mxu0 %v4207
        %4476 = vmatprep.subr.bf16.mxu0 %v4210
        %4477 = vmatpush1.bf16.msra.mxu0 %v4209
        %4478 = vmatprep.subr.bf16.mxu0 %v4212
        %4479 = vmatpush1.bf16.msra.mxu0 %v4211
        %4480 = vmatprep.subr.bf16.mxu0 %v4214
        %4481 = vmatpush1.bf16.msra.mxu0 %v4213
        %4482 = vmatprep.subr.bf16.mxu0 %v4216
        %4483 = vmatpush1.bf16.msra.mxu0 %v4215
        %4484 = vmatprep.subr.bf16.mxu0 %v4218
        %4485 = vmatpush1.bf16.msra.mxu0 %v4217
        %4486 = vmatprep.subr.bf16.mxu0 %v4220
        %4487 = vmatpush1.bf16.msra.mxu0 %v4219
        %4488 = vmatprep.mubr.bf16.mxu0 %v3628
        %4489 = vmatmul.mubr.bf16.gmra.mrb[0].mxu0 %v3627
        %v4490 = vpop.f32.mrb[0].mxu0
        %v4491 = vadd.f32 %v4448, %v4490
        %v4492 = vpop.f32.mrb[0].mxu0
        %v4493 = vadd.f32 %v4450, %v4492
        %v4494 = vpop.f32.mrb[0].mxu0
        %v4495 = vadd.f32 %v4452, %v4494
        %v4496 = vpop.f32.mrb[0].mxu0
        %v4497 = vadd.f32 %v4454, %v4496
        %4498 = vdwg.mxu0
        %4499 = vmatprep.subr.bf16.mxu0 %v4222
        %4500 = vmatpush1.bf16.msra.mxu0 %v4221
        %4501 = vmatprep.subr.bf16.mxu0 %v4224
        %4502 = vmatpush1.bf16.msra.mxu0 %v4223
        %4503 = vmatprep.subr.bf16.mxu0 %v4226
        %4504 = vmatpush1.bf16.msra.mxu0 %v4225
        %4505 = vmatprep.subr.bf16.mxu0 %v4228
        %4506 = vmatpush1.bf16.msra.mxu0 %v4227
        %4507 = vmatprep.subr.bf16.mxu0 %v4230
        %4508 = vmatpush1.bf16.msra.mxu0 %v4229
        %4509 = vmatprep.subr.bf16.mxu0 %v4232
        %4510 = vmatpush1.bf16.msra.mxu0 %v4231
        %4511 = vmatprep.subr.bf16.mxu0 %v4234
        %4512 = vmatpush1.bf16.msra.mxu0 %v4233
        %4513 = vmatprep.subr.bf16.mxu0 %v4236
        %4514 = vmatpush1.bf16.msra.mxu0 %v4235
        %4515 = vmatprep.subr.bf16.mxu0 %v4238
        %4516 = vmatpush1.bf16.msra.mxu0 %v4237
        %4517 = vmatprep.subr.bf16.mxu0 %v4240
        %4518 = vmatpush1.bf16.msra.mxu0 %v4239
        %4519 = vmatprep.subr.bf16.mxu0 %v4242
        %4520 = vmatpush1.bf16.msra.mxu0 %v4241
        %4521 = vmatprep.subr.bf16.mxu0 %v4244
        %4522 = vmatpush1.bf16.msra.mxu0 %v4243
        %4523 = vmatprep.subr.bf16.mxu0 %v4246
        %4524 = vmatpush1.bf16.msra.mxu0 %v4245
        %4525 = vmatprep.subr.bf16.mxu0 %v4248
        %4526 = vmatpush1.bf16.msra.mxu0 %v4247
        %4527 = vmatprep.subr.bf16.mxu0 %v4250
        %4528 = vmatpush1.bf16.msra.mxu0 %v4249
        %4529 = vmatprep.subr.bf16.mxu0 %v4252
        %4530 = vmatpush1.bf16.msra.mxu0 %v4251
        %4531 = vmatprep.mubr.bf16.mxu0 %v3630
        %4532 = vmatmul.mubr.bf16.gmra.mrb[0].mxu0 %v3629
        %v4533 = vpop.f32.mrb[0].mxu0
        %v4534 = vadd.f32 %v4491, %v4533
        %v4535 = vpop.f32.mrb[0].mxu0
        %v4536 = vadd.f32 %v4493, %v4535
        %v4537 = vpop.f32.mrb[0].mxu0
        %v4538 = vadd.f32 %v4495, %v4537
        %v4539 = vpop.f32.mrb[0].mxu0
        %v4540 = vadd.f32 %v4497, %v4539
        %4541 = vdwg.mxu0
        %4542 = vmatprep.subr.bf16.mxu0 %v4254
        %4543 = vmatpush1.bf16.msra.mxu0 %v4253
        %4544 = vmatprep.subr.bf16.mxu0 %v4256
        %4545 = vmatpush1.bf16.msra.mxu0 %v4255
        %4546 = vmatprep.subr.bf16.mxu0 %v4258
        %4547 = vmatpush1.bf16.msra.mxu0 %v4257
        %4548 = vmatprep.subr.bf16.mxu0 %v4260
        %4549 = vmatpush1.bf16.msra.mxu0 %v4259
        %4550 = vmatprep.subr.bf16.mxu0 %v4262
        %4551 = vmatpush1.bf16.msra.mxu0 %v4261
        %4552 = vmatprep.subr.bf16.mxu0 %v4264
        %4553 = vmatpush1.bf16.msra.mxu0 %v4263
        %4554 = vmatprep.subr.bf16.mxu0 %v4266
        %4555 = vmatpush1.bf16.msra.mxu0 %v4265
        %4556 = vmatprep.subr.bf16.mxu0 %v4268
        %4557 = vmatpush1.bf16.msra.mxu0 %v4267
        %4558 = vmatprep.subr.bf16.mxu0 %v4270
        %4559 = vmatpush1.bf16.msra.mxu0 %v4269
        %4560 = vmatprep.subr.bf16.mxu0 %v4272
        %4561 = vmatpush1.bf16.msra.mxu0 %v4271
        %4562 = vmatprep.subr.bf16.mxu0 %v4274
        %4563 = vmatpush1.bf16.msra.mxu0 %v4273
        %4564 = vmatprep.subr.bf16.mxu0 %v4276
        %4565 = vmatpush1.bf16.msra.mxu0 %v4275
        %4566 = vmatprep.subr.bf16.mxu0 %v4278
        %4567 = vmatpush1.bf16.msra.mxu0 %v4277
        %4568 = vmatprep.subr.bf16.mxu0 %v4280
        %4569 = vmatpush1.bf16.msra.mxu0 %v4279
        %4570 = vmatprep.subr.bf16.mxu0 %v4282
        %4571 = vmatpush1.bf16.msra.mxu0 %v4281
        %4572 = vmatprep.subr.bf16.mxu0 %v4284
        %4573 = vmatpush1.bf16.msra.mxu0 %v4283
        %4574 = vmatprep.mubr.bf16.mxu0 %v3632
        %4575 = vmatmul.mubr.bf16.gmra.mrb[0].mxu0 %v3631
        %v4576 = vpop.f32.mrb[0].mxu0
        %v4577 = vadd.f32 %v4534, %v4576
        %v4578 = vpop.f32.mrb[0].mxu0
        %v4579 = vadd.f32 %v4536, %v4578
        %v4580 = vpop.f32.mrb[0].mxu0
        %v4581 = vadd.f32 %v4538, %v4580
        %v4582 = vpop.f32.mrb[0].mxu0
        %v4583 = vadd.f32 %v4540, %v4582
        %4584 = vdwg.mxu0
        %v4585 = vadd.f32 %v4577, %v2493
        %v4586 = vadd.f32 %v4579, %v2494
        %v4587 = vadd.f32 %v4581, %v2495
        %v4588 = vadd.f32 %v4583, %v2496
        %v4589 = vld [vmem:[%s1006] sm:$0x3]
        %v4590 = vld [vmem:[%s1010] sm:$0x3]
        %v4591 = vadd.f32 %v4585, %v4586
        %4592 = vadd.xlane.f32.xlu0 %v4591
        %v4593 = vpop.xlane.xlu0 %4592
        %v4594 = vadd.f32 %v4587, %v4588
        %4595 = vadd.xlane.f32.xlu0 %v4594
        %v4596 = vpop.xlane.xlu0 %4595
        %v4597 = vmul.f32 %v4593, %v2440
        %v4598 = vmul.f32 %v4596, %v2440
        %v4599 = vsub.f32 %v4585, %v4597
        %v4600 = vsub.f32 %v4586, %v4597
        %v4601 = vsub.f32 %v4587, %v4598
        %v4602 = vsub.f32 %v4588, %v4598
        %v4603 = vmul.f32 %v4599, %v4599
        %v4604 = vmul.f32 %v4600, %v4600
        %v4605 = vmul.f32 %v4601, %v4601
        %v4606 = vmul.f32 %v4602, %v4602
        %v4607 = vadd.f32 %v4603, %v4604
        %4608 = vadd.xlane.f32.xlu0 %v4607
        %v4609 = vpop.xlane.xlu0 %4608
        %v4610 = vadd.f32 %v4605, %v4606
        %4611 = vadd.xlane.f32.xlu0 %v4610
        %v4612 = vpop.xlane.xlu0 %4611
        %v4613 = vmul.f32 %v4609, %v2440
        %v4614 = vmul.f32 %v4612, %v2440
        %v4615 = vadd.f32 %v4613, 1e-12
        %v4616 = vadd.f32 %v4614, 1e-12
        %v4617 = vrsqrt.pop %v4615
        %v4618 = vrsqrt.pop %v4616
        %v4619 = vmul.f32 %v4599, %v4617
        %v4620 = vmul.f32 %v4600, %v4617
        %v4621 = vmul.f32 %v4601, %v4618
        %v4622 = vmul.f32 %v4602, %v4618
        %v4624 = vlaneseq
        %v4625 = vshrl.u32 %v4624, 7
        %v4626 = vsub.s32 0, %v4625
        %v4627 = vrot.slane %v4589, %v4626
        %v4628 = vlaneseq
        %v4629 = vshrl.u32 %v4628, 7
        %v4630 = vsub.s32 1, %v4629
        %v4631 = vrot.slane %v4589, %v4630
        %v4634 = vmul.f32 %v4627, %v4619
        %v4635 = vmul.f32 %v4631, %v4620
        %v4636 = vmul.f32 %v4627, %v4621
        %v4637 = vmul.f32 %v4631, %v4622
        %v4639 = vlaneseq
        %v4640 = vshrl.u32 %v4639, 7
        %v4641 = vsub.s32 0, %v4640
        %v4642 = vrot.slane %v4590, %v4641
        %v4643 = vlaneseq
        %v4644 = vshrl.u32 %v4643, 7
        %v4645 = vsub.s32 1, %v4644
        %v4646 = vrot.slane %v4590, %v4645
        %v4649 = vadd.f32 %v4634, %v4642
        %v4650 = vadd.f32 %v4635, %v4646
        %v4651 = vadd.f32 %v4636, %v4642
        %v4652 = vadd.f32 %v4637, %v4646
        %v4653 = vadd.f32 %v4649, %v2493
        %v4654 = vadd.f32 %v4650, %v2494
        %v4655 = vadd.f32 %v4651, %v2495
        %v4656 = vadd.f32 %v4652, %v2496
        %v4657 = vld [vmem:[%s1014] sm:$0x3]
        %v4658 = vld [vmem:[%s1018] sm:$0x3]
        %v4659 = vadd.f32 %v4653, %v4654
        %4660 = vadd.xlane.f32.xlu0 %v4659
        %v4661 = vpop.xlane.xlu0 %4660
        %v4662 = vadd.f32 %v4655, %v4656
        %4663 = vadd.xlane.f32.xlu0 %v4662
        %v4664 = vpop.xlane.xlu0 %4663
        %v4665 = vmul.f32 %v4661, %v2440
        %v4666 = vmul.f32 %v4664, %v2440
        %v4667 = vsub.f32 %v4653, %v4665
        %v4668 = vsub.f32 %v4654, %v4665
        %v4669 = vsub.f32 %v4655, %v4666
        %v4670 = vsub.f32 %v4656, %v4666
        %v4671 = vmul.f32 %v4667, %v4667
        %v4672 = vmul.f32 %v4668, %v4668
        %v4673 = vmul.f32 %v4669, %v4669
        %v4674 = vmul.f32 %v4670, %v4670
        %v4675 = vadd.f32 %v4671, %v4672
        %4676 = vadd.xlane.f32.xlu0 %v4675
        %v4677 = vpop.xlane.xlu0 %4676
        %v4678 = vadd.f32 %v4673, %v4674
        %4679 = vadd.xlane.f32.xlu0 %v4678
        %v4680 = vpop.xlane.xlu0 %4679
        %v4681 = vmul.f32 %v4677, %v2440
        %v4682 = vmul.f32 %v4680, %v2440
        %v4683 = vadd.f32 %v4681, 1e-12
        %v4684 = vadd.f32 %v4682, 1e-12
        %v4685 = vrsqrt.pop %v4683
        %v4686 = vrsqrt.pop %v4684
        %v4687 = vmul.f32 %v4667, %v4685
        %v4688 = vmul.f32 %v4668, %v4685
        %v4689 = vmul.f32 %v4669, %v4686
        %v4690 = vmul.f32 %v4670, %v4686
        %v4692 = vlaneseq
        %v4693 = vshrl.u32 %v4692, 7
        %v4694 = vsub.s32 0, %v4693
        %v4695 = vrot.slane %v4657, %v4694
        %v4696 = vlaneseq
        %v4697 = vshrl.u32 %v4696, 7
        %v4698 = vsub.s32 1, %v4697
        %v4699 = vrot.slane %v4657, %v4698
        %v4702 = vmul.f32 %v4695, %v4687
        %v4703 = vmul.f32 %v4699, %v4688
        %v4704 = vmul.f32 %v4695, %v4689
        %v4705 = vmul.f32 %v4699, %v4690
        %v4707 = vlaneseq
        %v4708 = vshrl.u32 %v4707, 7
        %v4709 = vsub.s32 0, %v4708
        %v4710 = vrot.slane %v4658, %v4709
        %v4711 = vlaneseq
        %v4712 = vshrl.u32 %v4711, 7
        %v4713 = vsub.s32 1, %v4712
        %v4714 = vrot.slane %v4658, %v4713
        %v4717 = vadd.f32 %v4702, %v4710
        %v4718 = vadd.f32 %v4703, %v4714
        %v4719 = vadd.f32 %v4704, %v4710
        %v4720 = vadd.f32 %v4705, %v4714
        %4721 = vst [vmem:[%s983] sm:$0xff] %v4717
        %4722 = vst [vmem:[%s983 + $0x8] sm:$0xff] %v4718
        %4723 = vst [vmem:[%s983 + $0x10] sm:$0xff] %v4719
        %4724 = vst [vmem:[%s983 + $0x18] sm:$0xff] %v4720
        %s4725 = sand.u32 %s514, 1
        %s4726 = scalar_lea.sflag [#allocation5], %s4725
        %s4727 = sand.u32 %s514, 1
        %s4728 = smul.addr %s4727, 32
        %s4729 = scalar_lea.vmem [#allocation18], %s4728
        // Predicated region
        $region125: #{tpu_custom_call.1} parent=87 // pred_check
          %p4730 = pneg %p524
        $region126: #{tpu_custom_call.1} parent=87 // pred_check_branch
          %4732 = sbr.rel (%p4730) target = $region128
        $region127: #{tpu_custom_call.1} parent=87 // pred_region
          %s4733 = smul.u32 2, %s51
          %s4735 = ssub.s32 512, 512
          %4736 = vsyncadd %s4726, %s4735
          %s4737 = smul.addr %s4733, 2
          %s4738 = smul.addr %s50, 4
          %s4739 = sadd.s32 %s4737, %s4738
          %s4740 = smul.addr %s4739, 128
          %s4741 = scalar_lea.hbm %s17, %s4740
          %s4742 = sshll.u32 %s4729, 4
          %s4743 = int_to_ptr.vmem [resolvable:$true] %s4742
          %4748 = dma.vmem_to_hbm [thread:$0]  %s4743, 512, %s4741, %s4726, 256, 256, 16
        $region128: #{tpu_custom_call.1} parent=87 // pred_fallthru
          _
      $region88: #{tpu_custom_call.1} parent=5 // pred_fallthru
        _
      %p4749 = scmp.le.s32.totalorder 2, %s41
      // Predicated region
      $region129: #{tpu_custom_call.1} parent=5 // pred_check
        %p4750 = pneg %p4749
      $region130: #{tpu_custom_call.1} parent=5 // pred_check_branch
        %4752 = sbr.rel (%p4750) target = $region132
      $region131: #{tpu_custom_call.1} parent=5 // pred_region
        %s4753 = ssub.s32 %s41, 2
        // Predicated region
        $region133: #{tpu_custom_call.1} parent=131 // pred_check
          %p4754 = pneg %p530
        $region134: #{tpu_custom_call.1} parent=131 // pred_check_branch
          %4756 = sbr.rel (%p4754) target = $region136
        $region135: #{tpu_custom_call.1} parent=131 // pred_region
          %s4757 = sand.u32 %s515, 1
          %s4758 = scalar_lea.sflag [#allocation5], %s4757
          %s4759 = sand.u32 %s515, 1
          %s4760 = smul.addr %s4759, 32
          %s4761 = scalar_lea.vmem [#allocation18], %s4760
          %4762 = dma.done %s4758, 512
        $region136: #{tpu_custom_call.1} parent=131 // pred_fallthru
          _
      $region132: #{tpu_custom_call.1} parent=5 // pred_fallthru
        _
    $region6: #{tpu_custom_call.1} parent=1 // loop_footer
      %s45 = sadd.s32 1, %s41
    $region7: #{tpu_custom_call.1} parent=1 // loop_footer_branch
      %40 = sbr.rel target = $region3
    $region8: #{tpu_custom_call.1} parent=1 // loop_exit
      _
    %4763 = vsyncpa [#allocation4], 1
    %s4764 = scalar_lea.sflag [#allocation4], 1
    %4765 = vsyncpa %s4764, 1
    %4766 = vsyncpa [#allocation7], 1
    %s4767 = scalar_lea.sflag [#allocation7], 1
    %4768 = vsyncpa %s4767, 1
    %4769 = vsyncpa [#allocation10], 1
    %s4770 = scalar_lea.sflag [#allocation10], 1
    %4771 = vsyncpa %s4770, 1
    %4772 = vsyncpa [#allocation13], 1
    %s4773 = scalar_lea.sflag [#allocation13], 1
    %4774 = vsyncpa %s4773, 1
    %4775 = vsyncpa [#allocation16], 1
    %s4776 = scalar_lea.sflag [#allocation16], 1
    %4777 = vsyncpa %s4776, 1
    %4778 = vsyncpa [#allocation5], 1
    %s4779 = scalar_lea.sflag [#allocation5], 1
    %4780 = vsyncpa %s4779, 1

</llo_original>
